<compile_context>
chip_gen: v7x
topology: tpu7x:2x2x1
jax: 0.10.0
libtpu: 0.0.40
codegen_flags: <defaults>
</compile_context>

<pallas_src>
import functools
import math

import jax
import jax.numpy as jnp
from jax.experimental import pallas as pl
from jax.experimental.pallas import tpu as pltpu

NEG_SLOPE = 0.01          # nn.LeakyReLU default
NEG_MASK = -1e30          # finite "-inf": fully padded rows never NaN
MXU_DTYPE = jnp.bfloat16  # MXU operand dtype for weight matmuls (f32 accumulate)


@functools.lru_cache(maxsize=None)
def _vmem_limit_bytes():
    # Explicit scoped-VMEM budget: <= 3/4 of physical, capped at 48 MiB (v7x
    # has only 64 MiB physical; v5e/v6e scoped default is 16/32 MiB).
    try:
        cap = int(pltpu.get_tpu_info().vmem_capacity_bytes)
    except Exception:
        cap = 64 * 1024 * 1024
    return int(min(48 * 1024 * 1024, (cap * 3) // 4))


def _pick_tile_n(n):
    # 256-512 row tiles at production size; smaller divisors for the demo.
    for t in (512, 256, 128, 64, 32, 16):
        if n % t == 0 and n // t >= 2:
            return t
    return n


def _leaky(x):
    return jnp.where(x >= 0, x, NEG_SLOPE * x)


def _mm(a, b):
    # Weight matmul path: bf16 operands, f32 accumulation.
    return jnp.dot(a.astype(MXU_DTYPE), b.astype(MXU_DTYPE),
                   preferred_element_type=jnp.float32)


def _mm32(a, b):
    # Exact f32 matmul (structural one-hots, softmax-weight broadcasts, ...).
    return jnp.dot(a.astype(jnp.float32), b.astype(jnp.float32),
                   preferred_element_type=jnp.float32)


def _layernorm(z, g, b, eps=1e-5):
    mu = jnp.mean(z, axis=-1, keepdims=True)
    var = jnp.mean((z - mu) ** 2, axis=-1, keepdims=True)
    return (z - mu) * jax.lax.rsqrt(var + eps) * g + b


def _erf(x):
    # Abramowitz & Stegun 7.1.26 (|err| < 1.5e-7): erf built only from
    # exp / div / select so it lowers inside the Mosaic kernel.
    a1, a2, a3, a4, a5 = (0.254829592, -0.284496736, 1.421413741,
                          -1.453152027, 1.061405429)
    p = 0.3275911
    ax = jnp.abs(x)
    t = 1.0 / (1.0 + p * ax)
    poly = ((((a5 * t + a4) * t + a3) * t + a2) * t + a1) * t
    y = 1.0 - poly * jnp.exp(-ax * ax)
    return jnp.where(x >= 0, y, -y)


def _gelu(x):
    return 0.5 * x * (1.0 + _erf(x * (1.0 / math.sqrt(2.0))))


# ----------------------------------------------------------------------------
# Kernel 1a: SnapshotWeighter on the selected rows, grid = (T,)
# ----------------------------------------------------------------------------
def _snap_weighter_kernel(fsel_ref, ets_ref, embs_ref, inw_ref, dww_ref, pk_ref,
                          newe_ref, *, B, P, H):
    D = embs_ref.shape[2]
    Nsel = B * P
    dh = D // H

    pk = pk_ref[0]                                   # [8, D] f32 param pack
    in_b, src_b, dst_b, out_b = pk[0:1], pk[1:2], pk[2:3], pk[3:4]
    attn = pk[5:6]                                   # [1, D]

    embs = embs_ref[0]                               # [B, D] f32 (residual kept f32)

    # 1) input_trans HeteroLinear ('paper') on the selected rows.
    # TODO(synk): CustomHeteroGCN graph encoder (class not provided) -> identity.
    h_src = _mm(fsel_ref[0], inw_ref[0]) + in_b      # [Nsel, D]

    # 2) SnapshotWeighter multi-head additive attention over uniform segments.
    feat_src = _mm(h_src, dww_ref[0, 0]) + src_b     # fc_src
    feat_dst = _mm(embs, dww_ref[0, 1]) + dst_b      # fc_dst  [B, D]
    e_pre = _leaky(feat_src.reshape(B, P, D)
                   + feat_dst[:, None, :]).reshape(Nsel, D)

    # Block one-hot head matrices built in-kernel (no HBM traffic, no int div).
    d_i = jax.lax.broadcasted_iota(jnp.int32, (D, H), 0)
    h_i = jax.lax.broadcasted_iota(jnp.int32, (D, H), 1)
    lo = h_i * dh
    oh_dh = ((d_i >= lo) & (d_i < lo + dh)).astype(jnp.float32)     # [D, H]
    h_j = jax.lax.broadcasted_iota(jnp.int32, (H, D), 0)
    d_j = jax.lax.broadcasted_iota(jnp.int32, (H, D), 1)
    lo2 = h_j * dh
    oh_hd = ((d_j >= lo2) & (d_j < lo2 + dh)).astype(jnp.float32)   # [H, D]

    # Per-head additive-attention scores (+ precomputed type scores).
    s = _mm32(e_pre * attn, oh_dh) + ets_ref[0]      # [Nsel, H]
    s3 = s.reshape(B, P, H)

    # edge_softmax over each snapshot's segment (exact division for parity).
    # TODO(synk): assumes uniform fully-valid segments (valid_num_nodes == P);
    # ragged-segment masking is not modeled.
    m = jnp.max(s3, axis=1, keepdims=True)
    w = jnp.exp(s3 - m)
    w = w / jnp.sum(w, axis=1, keepdims=True)
    w_full = _mm32(w.reshape(Nsel, H), oh_hd)        # head weight -> its dh lanes

    seg_sum = jnp.sum((feat_src * w_full).reshape(B, P, D), axis=1)  # [B, D]
    sum_out = _mm(seg_sum, dww_ref[0, 2]) + out_b    # fc_out
    newe_ref[0] = (embs + sum_out).astype(newe_ref.dtype)


def snapshot_weighter_fused(in_w, dww, pk, feats_sel, et_score, embs, *, n_heads):
    T, Nsel, IN = feats_sel.shape
    _, B, D = embs.shape
    P = Nsel // B
    kern = functools.partial(_snap_weighter_kernel, B=B, P=P, H=n_heads)
    return pl.pallas_call(
        kern,
        grid=(T,),
        in_specs=[
            pl.BlockSpec((1, Nsel, IN), lambda t: (t, 0, 0)),
            pl.BlockSpec((1, Nsel, n_heads), lambda t: (t, 0, 0)),
            pl.BlockSpec((1, B, D), lambda t: (t, 0, 0)),
            pl.BlockSpec((1, IN, D), lambda t: (t, 0, 0)),
            pl.BlockSpec((1, 3, D, D), lambda t: (t, 0, 0, 0)),
            pl.BlockSpec((1, 8, D), lambda t: (t, 0, 0)),
        ],
        out_specs=pl.BlockSpec((1, B, D), lambda t: (t, 0, 0)),
        out_shape=jax.ShapeDtypeStruct((T, B, D), jnp.float32),
        compiler_params=pltpu.CompilerParams(
            dimension_semantics=("parallel",),
            vmem_limit_bytes=_vmem_limit_bytes()),
    )(feats_sel, et_score, embs, in_w, dww, pk)


# ----------------------------------------------------------------------------
# Kernel 1b: per-paper input_trans + fc_mix, grid = (T, N // tile_n)
# ----------------------------------------------------------------------------
def _mixer_kernel(feats_ref, midx_ref, embs_ref, inw_ref, mixw_ref, pk_ref,
                  newh_ref, *, B):
    pk = pk_ref[0]
    in_b = pk[0:1]
    mix_b = pk[4:5]

    # input_trans ('paper') for this N tile.
    h_paper = _mm(feats_ref[0], inw_ref[0]) + in_b                 # [tile_n, D]

    # One-hot gather of new snapshot embs by int32 mixer index (MXU matmul,
    # one-hot built in-kernel -> no [T, N, B] f32 input in HBM).
    midx = midx_ref[0]                                             # [tile_n, 1] int32
    iota_b = jax.lax.broadcasted_iota(jnp.int32, (midx.shape[0], B), 1)
    oh = (midx == iota_b).astype(jnp.float32)                      # [tile_n, B]
    gathered = _mm32(oh, embs_ref[0])                              # exact gather

    # TODO(synk): MLP class not provided; modeled as Linear(2D->D) + LeakyReLU.
    mixed = _leaky(_mm(h_paper, mixw_ref[0, 0])
                   + _mm(gathered, mixw_ref[0, 1]) + mix_b)
    newh_ref[0] = mixed.astype(newh_ref.dtype)


def mixer_fused(in_w, mix_w4, pk, feats_full, mix_idx3, new_embs):
    T, N, IN = feats_full.shape
    _, B, D = new_embs.shape
    tile_n = _pick_tile_n(N)
    kern = functools.partial(_mixer_kernel, B=B)
    return pl.pallas_call(
        kern,
        grid=(T, N // tile_n),
        in_specs=[
            pl.BlockSpec((1, tile_n, IN), lambda t, n: (t, n, 0)),
            pl.BlockSpec((1, tile_n, 1), lambda t, n: (t, n, 0)),
            pl.BlockSpec((1, B, D), lambda t, n: (t, 0, 0)),
            pl.BlockSpec((1, IN, D), lambda t, n: (t, 0, 0)),
            pl.BlockSpec((1, 2, D, D), lambda t, n: (t, 0, 0, 0)),
            pl.BlockSpec((1, 8, D), lambda t, n: (t, 0, 0)),
        ],
        out_specs=pl.BlockSpec((1, tile_n, D), lambda t, n: (t, n, 0)),
        out_shape=jax.ShapeDtypeStruct((T, N, D), jnp.float32),
        compiler_params=pltpu.CompilerParams(
            dimension_semantics=("parallel", "parallel"),
            vmem_limit_bytes=_vmem_limit_bytes()),
    )(feats_full, mix_idx3, new_embs, in_w, mix_w4, pk)


# ----------------------------------------------------------------------------
# Kernel 2: fused TransformerEncoderLayer (post-norm, gelu), grid = (B,)
# ----------------------------------------------------------------------------
def _encoder_kernel(x_ref, kbias_ref, keep_ref, wqkv_ref, bqkv_ref, wo_ref,
                    pk_ref, l1w_ref, l1b_ref, l2w_ref, o_ref, *, nheads):
    D = x_ref.shape[2]
    dh = D // nheads
    scale = 1.0 / math.sqrt(dh)

    x = x_ref[0]                                     # [T, D] f32
    xb = x.astype(MXU_DTYPE)
    kbias = kbias_ref[0]                             # [1, T] additive key mask
    pk = pk_ref[...]                                 # [8, D]
    out_b, g1, b1 = pk[0:1], pk[1:2], pk[2:3]
    g2, b2, l2b = pk[3:4], pk[4:5], pk[5:6]

    # Per-head weight slices (no lane-slicing of activations, no VMEM scratch,
    # out_proj folded into a register accumulator).
    att = jnp.zeros(x.shape, jnp.float32)
    for h in range(nheads):
        q = jnp.dot(xb, wqkv_ref[0, h], preferred_element_type=jnp.float32) + bqkv_ref[0, h]
        k = jnp.dot(xb, wqkv_ref[1, h], preferred_element_type=jnp.float32) + bqkv_ref[1, h]
        v = jnp.dot(xb, wqkv_ref[2, h], preferred_element_type=jnp.float32) + bqkv_ref[2, h]
        s = jax.lax.dot_general(q, k, (((1,), (1,)), ((), ())),
                                preferred_element_type=jnp.float32)
        s = s * scale + kbias
        m = jnp.max(s, axis=-1, keepdims=True)
        p = jnp.exp(s - m)
        p = p / jnp.sum(p, axis=-1, keepdims=True)   # exact division (f32 softmax)
        att_h = jnp.dot(p, v, preferred_element_type=jnp.float32)
        att = att + _mm(att_h, wo_ref[h])            # fold out_proj per head
    att = att + out_b

    x1 = _layernorm(x + att, g1, b1)                 # add & LN 1 (post-norm, f32)
    ff = _gelu(_mm(x1, l1w_ref[...]) + l1b_ref[...])
    ff = _mm(ff, l2w_ref[...]) + l2b
    out = _layernorm(x1 + ff, g2, b2)                # add & LN 2
    o_ref[0] = (out * keep_ref[0]).astype(o_ref.dtype)   # final time-mask, one store


def transformer_encoder_fused(te, x3, kbias, keep, n_heads):
    B, T, D = x3.shape
    dh = D // n_heads
    dff = te["lin1_w"].shape[1]

    # Lay weights out per head (heads on the leading axis -> free ref slices).
    wq = te["in_proj_w"][:, 0 * D:1 * D].reshape(D, n_heads, dh).transpose(1, 0, 2)
    wk = te["in_proj_w"][:, 1 * D:2 * D].reshape(D, n_heads, dh).transpose(1, 0, 2)
    wv = te["in_proj_w"][:, 2 * D:3 * D].reshape(D, n_heads, dh).transpose(1, 0, 2)
    w_qkv = jnp.stack([wq, wk, wv])                                   # [3,H,D,dh] bf16
    b_qkv = te["in_proj_b"].reshape(3, n_heads, 1, dh).astype(jnp.float32)
    wo = te["out_proj_w"].reshape(n_heads, dh, D)                     # [H,dh,D] bf16
    pack2 = jnp.concatenate(
        [te["out_proj_b"], te["ln1_g"], te["ln1_b"], te["ln2_g"], te["ln2_b"],
         te["lin2_b"], jnp.zeros((2, D), jnp.float32)], axis=0)       # [8, D]

    kern = functools.partial(_encoder_kernel, nheads=n_heads)
    return pl.pallas_call(
        kern,
        grid=(B,),
        in_specs=[
            pl.BlockSpec((1, T, D), lambda b: (b, 0, 0)),
            pl.BlockSpec((1, 1, T), lambda b: (b, 0, 0)),
            pl.BlockSpec((1, T, 1), lambda b: (b, 0, 0)),
            pl.BlockSpec((3, n_heads, D, dh), lambda b: (0, 0, 0, 0)),
            pl.BlockSpec((3, n_heads, 1, dh), lambda b: (0, 0, 0, 0)),
            pl.BlockSpec((n_heads, dh, D), lambda b: (0, 0, 0)),
            pl.BlockSpec((8, D), lambda b: (0, 0)),
            pl.BlockSpec((D, dff), lambda b: (0, 0)),
            pl.BlockSpec((1, dff), lambda b: (0, 0)),
            pl.BlockSpec((dff, D), lambda b: (0, 0)),
        ],
        out_specs=pl.BlockSpec((1, T, D), lambda b: (b, 0, 0)),
        out_shape=jax.ShapeDtypeStruct((B, T, D), jnp.float32),
        compiler_params=pltpu.CompilerParams(
            dimension_semantics=("parallel",),
            vmem_limit_bytes=_vmem_limit_bytes()),
    )(x3, kbias, keep, w_qkv, b_qkv, wo, pack2,
      te["lin1_w"], te["lin1_b"], te["lin2_w"])


# ----------------------------------------------------------------------------
# Module forward (thin XLA glue around the three fused Pallas kernels)
# ----------------------------------------------------------------------------
def single_dhgcn_forward(params, feats, cur_snapshot_types, snapshot_embs,
                         index_dicts, graph_is_cite, snapshot_mask):
    sw = params["sw"]
    te = params["te"]
    H = params["n_heads_sw"]
    T, B, D = snapshot_embs.shape

    # --- cheap XLA glue: stack per-t inputs, resolve the tiny gathers once ---
    feats_full = jnp.stack([feats[t]["paper"] for t in range(T)])          # [T,N,IN]
    feats_sel = jnp.stack(
        [feats[t]["paper"][index_dicts[t]["selected_indicator"]] for t in range(T)])
    is_cite_sel = jnp.stack(
        [graph_is_cite[t][index_dicts[t]["selected_indicator"]] for t in range(T)])
    snap_types = jnp.stack(list(cur_snapshot_types))                       # [T,B]
    mixer_idx = jnp.stack([index_dicts[t]["mixer_index"] for t in range(T)])

    N = feats_full.shape[1]
    Nsel = feats_sel.shape[1]
    P = Nsel // B
    dh = D // H

    gather_rows = jax.vmap(lambda tab, idx: jnp.take(tab, idx, axis=0))
    # NOTE: the source module indexes all three attr embeddings with 'is_cite';
    # their sum is precomputed into one [2, D] table per timestep.
    src_type_h = gather_rows(sw["attr_comb"], is_cite_sel)                 # [T,Nsel,D]
    dst_type_h = gather_rows(sw["snap_type_emb"], snap_types)              # [T,B,D]
    dst_rep = jnp.repeat(dst_type_h, P, axis=1)                            # [T,Nsel,D]
    # Type-embedding attention score reduced to [T, Nsel, H] here (tiny) so the
    # kernel never streams the [T,B,P,D] tensor or does its extra matmul.
    et = _leaky(src_type_h + dst_rep) * sw["attn_t"]
    et_score = et.reshape(T, Nsel, H, dh).sum(-1).astype(jnp.float32)      # [T,Nsel,H]

    # Pack per-t vectors (biases + attn row) into one [T, 8, D] DMA.
    param_pack = jnp.concatenate(
        [sw["in_b"], sw["src_b"], sw["dst_b"], sw["out_b"], sw["mix_b"],
         sw["attn"], jnp.zeros((T, 2, D), jnp.float32)], axis=1)           # [T,8,D]
    dww = jnp.stack([sw["src_w"], sw["dst_w"], sw["out_w"]], axis=1)       # [T,3,D,D] bf16
    mix_w4 = sw["mix_w"].reshape(T, 2, D, D)                               # bf16

    feats_sel_b = feats_sel.astype(jnp.bfloat16)
    feats_full_b = feats_full.astype(jnp.bfloat16)
    mix_idx3 = mixer_idx.astype(jnp.int32).reshape(T, N, 1)

    # --- Kernel 1a: SnapshotWeighter + snapshot_embs residual add ---
    new_embs = snapshot_weighter_fused(sw["in_w"], dww, param_pack,
                                       feats_sel_b, et_score,
                                       snapshot_embs.astype(jnp.float32),
                                       n_heads=H)                          # [T,B,D]

    # --- Kernel 1b: per-paper input_trans + fc_mix, tiled over N ---
    new_h = mixer_fused(sw["in_w"], mix_w4, param_pack, feats_full_b,
                        mix_idx3, new_embs)                                # [T,N,D]

    # --- Kernel 2: fused TransformerEncoderLayer over the time axis ---
    x3 = jnp.transpose(new_embs, (1, 0, 2))                                # [B,T,D]
    kbias = jnp.where(snapshot_mask, NEG_MASK, 0.0).astype(jnp.float32)[:, None, :]
    keep = (~snapshot_mask).astype(jnp.float32)[:, :, None]                # [B,T,1]
    out3 = transformer_encoder_fused(te, x3, kbias, keep, params["n_heads_te"])
    out_embs = jnp.transpose(out3, (1, 0, 2))                              # [T,B,D]

    new_feats = [{"paper": new_h[t]} for t in range(T)]
    return new_feats, out_embs


# ----------------------------------------------------------------------------
# Deterministic parameter init (synthetic, stacked over timesteps)
# ----------------------------------------------------------------------------
def init_params(key, in_feat, D, T_len, n_heads_sw, n_heads_te, dff):
    def nxt():
        nonlocal key
        key, sub = jax.random.split(key)
        return sub

    def w(shape, dtype=jnp.float32, scale=0.1):
        return (scale * jax.random.normal(nxt(), shape)).astype(dtype)

    bf = jnp.bfloat16
    snap_emb = w((T_len, 4, D)).at[:, 3, :].set(0.0)   # Embedding(3+1,D,padding_idx=-1)
    attr_comb = jnp.zeros((T_len, 2, D), jnp.float32)
    for _ in range(3):                                  # is_cite / is_ref / is_target
        attr_comb = attr_comb + w((T_len, 2, D)).at[:, 0, :].set(0.0)

    sw = dict(
        in_w=w((T_len, in_feat, D), bf), in_b=w((T_len, 1, D)),
        src_w=w((T_len, D, D), bf), src_b=w((T_len, 1, D)),
        dst_w=w((T_len, D, D), bf), dst_b=w((T_len, 1, D)),
        out_w=w((T_len, D, D), bf), out_b=w((T_len, 1, D)),
        attn=w((T_len, 1, D)), attn_t=w((T_len, 1, D)),
        snap_type_emb=snap_emb, attr_comb=attr_comb,
        mix_w=w((T_len, 2 * D, D), bf), mix_b=w((T_len, 1, D)),
    )
    te = dict(
        in_proj_w=w((D, 3 * D), bf), in_proj_b=w((1, 3 * D)),
        out_proj_w=w((D, D), bf), out_proj_b=w((1, D)),
        ln1_g=jnp.ones((1, D), jnp.float32), ln1_b=jnp.zeros((1, D), jnp.float32),
        lin1_w=w((D, dff), bf), lin1_b=w((1, dff)),
        lin2_w=w((dff, D), bf), lin2_b=w((1, D)),
        ln2_g=jnp.ones((1, D), jnp.float32), ln2_b=jnp.zeros((1, D), jnp.float32),
    )
    return dict(sw=sw, te=te, n_heads_sw=n_heads_sw, n_heads_te=n_heads_te)


# ----------------------------------------------------------------------------
if __name__ == "__main__":
    IN_FEAT, D = 32, 64            # out_feat=64 -> transformer nhead = 64//32 = 2
    T_LEN = 4                      # time_length
    B = 2                          # snapshots (batched graphs) per timestep
    P = 16                         # papers per snapshot (uniform segments)
    N = B * P                      # 32 papers per timestep -> 2 N-tiles of 16
    N_HEADS_SW = 4                 # SnapshotWeighter default n_heads
    N_HEADS_TE = D // 32
    DFF = 4 * D

    key = jax.random.PRNGKey(0)
    key, *ks = jax.random.split(key, 8)

    params = init_params(ks[0], IN_FEAT, D, T_LEN, N_HEADS_SW, N_HEADS_TE, DFF)

    feats = [{"paper": jax.random.normal(jax.random.fold_in(ks[1], t),
                                         (N, IN_FEAT), jnp.float32)}
             for t in range(T_LEN)]
    cur_snapshot_types = [jax.random.randint(jax.random.fold_in(ks[2], t),
                                             (B,), 0, 3) for t in range(T_LEN)]
    snapshot_embs = jax.random.normal(ks[3], (T_LEN, B, D), jnp.float32)
    graph_is_cite = [jax.random.randint(jax.random.fold_in(ks[4], t),
                                        (N,), 0, 2) for t in range(T_LEN)]
    seg_index = jnp.repeat(jnp.arange(B), P)
    index_dicts = [dict(index=seg_index,
                        valid_num_nodes=jnp.full((B,), P, jnp.int32),
                        selected_indicator=jnp.arange(N),
                        mixer_index=seg_index) for _ in range(T_LEN)]
    snapshot_mask = jnp.array([[False, False, False, True],
                               [False, False, True, True]])   # [B, T], True = pad

    fwd = jax.jit(functools.partial(single_dhgcn_forward, params))
    new_feats, out_embs = fwd(feats, cur_snapshot_types, snapshot_embs,
                              index_dicts, graph_is_cite, snapshot_mask)

    jax.block_until_ready(out_embs)
    for f in new_feats:
        jax.block_until_ready(f["paper"])
    assert out_embs.shape == (T_LEN, B, D)
    assert new_feats[0]["paper"].shape == (N, D)
    assert bool(jnp.all(jnp.isfinite(out_embs)))
    assert bool(jnp.all(jnp.isfinite(new_feats[0]["paper"])))
    print("KERNEL_OK")
</pallas_src>

<mosaic_0001>
module attributes {stable_mosaic.version = 11 : i64} {
  func.func @_snap_weighter_kernel(%arg0: i32, %arg1: memref<1x32x32xbf16, #tpu.memory_space<vmem>>, %arg2: memref<1x32x4xf32, #tpu.memory_space<vmem>>, %arg3: memref<1x2x64xf32, #tpu.memory_space<vmem>>, %arg4: memref<1x32x64xbf16, #tpu.memory_space<vmem>>, %arg5: memref<1x3x64x64xbf16, #tpu.memory_space<vmem>>, %arg6: memref<1x8x64xf32, #tpu.memory_space<vmem>>, %arg7: memref<1x2x64xf32, #tpu.memory_space<vmem>>) attributes {dimension_semantics = [#tpu.dimension_semantics<parallel>], iteration_bounds = array<i64: 4>, scalar_prefetch = 0 : i64, scratch_operands = 0 : i64, tpu.core_type = #tpu.core_type<tc>, window_params = [{transform_indices = @transform_0, window_bounds = array<i64: 1, 32, 32>}, {transform_indices = @transform_1, window_bounds = array<i64: 1, 32, 4>}, {transform_indices = @transform_2, window_bounds = array<i64: 1, 2, 64>}, {transform_indices = @transform_3, window_bounds = array<i64: 1, 32, 64>}, {transform_indices = @transform_4, window_bounds = array<i64: 1, 3, 64, 64>}, {transform_indices = @transform_5, window_bounds = array<i64: 1, 8, 64>}, {transform_indices = @transform_6, window_bounds = array<i64: 1, 2, 64>}]} {
    %c0 = arith.constant 0 : index
    %c0_0 = arith.constant 0 : index
    %c0_1 = arith.constant 0 : index
    %0 = vector.load %arg6[%c0, %c0_0, %c0_1] : memref<1x8x64xf32, #tpu.memory_space<vmem>>, vector<1x8x64xf32>
    %1 = vector.shape_cast %0 : vector<1x8x64xf32> to vector<8x64xf32>
    %2 = vector.extract_strided_slice %1 {offsets = [0, 0], sizes = [1, 64], strides = [1, 1]} : vector<8x64xf32> to vector<1x64xf32>
    %3 = vector.extract_strided_slice %1 {offsets = [1, 0], sizes = [1, 64], strides = [1, 1]} : vector<8x64xf32> to vector<1x64xf32>
    %4 = vector.extract_strided_slice %1 {offsets = [2, 0], sizes = [1, 64], strides = [1, 1]} : vector<8x64xf32> to vector<1x64xf32>
    %5 = vector.extract_strided_slice %1 {offsets = [3, 0], sizes = [1, 64], strides = [1, 1]} : vector<8x64xf32> to vector<1x64xf32>
    %6 = vector.extract_strided_slice %1 {offsets = [5, 0], sizes = [1, 64], strides = [1, 1]} : vector<8x64xf32> to vector<1x64xf32>
    %c0_2 = arith.constant 0 : index
    %c0_3 = arith.constant 0 : index
    %c0_4 = arith.constant 0 : index
    %7 = vector.load %arg3[%c0_2, %c0_3, %c0_4] : memref<1x2x64xf32, #tpu.memory_space<vmem>>, vector<1x2x64xf32>
    %8 = vector.shape_cast %7 : vector<1x2x64xf32> to vector<2x64xf32>
    %c0_5 = arith.constant 0 : index
    %c0_6 = arith.constant 0 : index
    %c0_7 = arith.constant 0 : index
    %9 = vector.load %arg1[%c0_5, %c0_6, %c0_7] : memref<1x32x32xbf16, #tpu.memory_space<vmem>>, vector<1x32x32xbf16>
    %10 = vector.shape_cast %9 : vector<1x32x32xbf16> to vector<32x32xbf16>
    %c0_8 = arith.constant 0 : index
    %c0_9 = arith.constant 0 : index
    %c0_10 = arith.constant 0 : index
    %11 = vector.load %arg4[%c0_8, %c0_9, %c0_10] : memref<1x32x64xbf16, #tpu.memory_space<vmem>>, vector<1x32x64xbf16>
    %12 = vector.shape_cast %11 : vector<1x32x64xbf16> to vector<32x64xbf16>
    %cst = arith.constant dense<0.000000e+00> : vector<32x64xf32>
    %13 = tpu.matmul %10, %12, %cst {dimension_numbers = #tpu.dot_dimension_numbers<[1], [0], [0], [1], [0, 0, 1, 1], [], []>} : vector<32x32xbf16>, vector<32x64xbf16>, vector<32x64xf32> -> vector<32x64xf32>
    %14 = vector.broadcast %2 : vector<1x64xf32> to vector<32x64xf32>
    %15 = arith.addf %13, %14 : vector<32x64xf32>
    %c0_11 = arith.constant 0 : index
    %c0_12 = arith.constant 0 : index
    %c0_13 = arith.constant 0 : index
    %c0_14 = arith.constant 0 : index
    %16 = vector.load %arg5[%c0_11, %c0_12, %c0_13, %c0_14] : memref<1x3x64x64xbf16, #tpu.memory_space<vmem>>, vector<1x1x64x64xbf16>
    %17 = vector.shape_cast %16 : vector<1x1x64x64xbf16> to vector<64x64xbf16>
    %18 = arith.truncf %15 : vector<32x64xf32> to vector<32x64xbf16>
    %cst_15 = arith.constant dense<0.000000e+00> : vector<32x64xf32>
    %19 = tpu.matmul %18, %17, %cst_15 {dimension_numbers = #tpu.dot_dimension_numbers<[1], [0], [0], [1], [0, 0, 1, 1], [], []>} : vector<32x64xbf16>, vector<64x64xbf16>, vector<32x64xf32> -> vector<32x64xf32>
    %20 = vector.broadcast %3 : vector<1x64xf32> to vector<32x64xf32>
    %21 = arith.addf %19, %20 : vector<32x64xf32>
    %c0_16 = arith.constant 0 : index
    %c1 = arith.constant 1 : index
    %c0_17 = arith.constant 0 : index
    %c0_18 = arith.constant 0 : index
    %22 = vector.load %arg5[%c0_16, %c1, %c0_17, %c0_18] : memref<1x3x64x64xbf16, #tpu.memory_space<vmem>>, vector<1x1x64x64xbf16>
    %23 = vector.shape_cast %22 : vector<1x1x64x64xbf16> to vector<64x64xbf16>
    %24 = arith.truncf %8 : vector<2x64xf32> to vector<2x64xbf16>
    %cst_19 = arith.constant dense<0.000000e+00> : vector<2x64xf32>
    %25 = tpu.matmul %24, %23, %cst_19 {dimension_numbers = #tpu.dot_dimension_numbers<[1], [0], [0], [1], [0, 0, 1, 1], [], []>} : vector<2x64xbf16>, vector<64x64xbf16>, vector<2x64xf32> -> vector<2x64xf32>
    %26 = vector.broadcast %4 : vector<1x64xf32> to vector<2x64xf32>
    %27 = arith.addf %25, %26 : vector<2x64xf32>
    %28 = vector.shape_cast %21 : vector<32x64xf32> to vector<2x16x64xf32>
    %29 = vector.shape_cast %27 : vector<2x64xf32> to vector<2x1x64xf32>
    %30 = vector.broadcast %29 : vector<2x1x64xf32> to vector<2x16x64xf32>
    %31 = arith.addf %28, %30 : vector<2x16x64xf32>
    %cst_20 = arith.constant 0.000000e+00 : f32
    %32 = vector.broadcast %cst_20 : f32 to vector<2x16x64xf32>
    %33 = arith.cmpf oge, %31, %32 : vector<2x16x64xf32>
    %cst_21 = arith.constant 0.00999999977 : f32
    %34 = vector.broadcast %cst_21 : f32 to vector<2x16x64xf32>
    %35 = arith.mulf %34, %31 : vector<2x16x64xf32>
    %36 = arith.select %33, %31, %35 : vector<2x16x64xi1>, vector<2x16x64xf32>
    %37 = vector.shape_cast %36 : vector<2x16x64xf32> to vector<32x64xf32>
    %38 = tpu.iota {dimensions = array<i32: 0>} : vector<64x4xi32>
    %39 = tpu.iota {dimensions = array<i32: 1>} : vector<64x4xi32>
    %c16_i32 = arith.constant 16 : i32
    %40 = vector.broadcast %c16_i32 : i32 to vector<64x4xi32>
    %41 = arith.muli %39, %40 : vector<64x4xi32>
    %42 = arith.cmpi sge, %38, %41 : vector<64x4xi32>
    %c16_i32_22 = arith.constant 16 : i32
    %43 = vector.broadcast %c16_i32_22 : i32 to vector<64x4xi32>
    %44 = arith.addi %41, %43 : vector<64x4xi32>
    %45 = arith.cmpi slt, %38, %44 : vector<64x4xi32>
    %46 = arith.andi %42, %45 : vector<64x4xi1>
    %47 = arith.extui %46 : vector<64x4xi1> to vector<64x4xi32>
    %48 = arith.sitofp %47 : vector<64x4xi32> to vector<64x4xf32>
    %49 = tpu.iota {dimensions = array<i32: 0>} : vector<4x64xi32>
    %50 = tpu.iota {dimensions = array<i32: 1>} : vector<4x64xi32>
    %c16_i32_23 = arith.constant 16 : i32
    %51 = vector.broadcast %c16_i32_23 : i32 to vector<4x64xi32>
    %52 = arith.muli %49, %51 : vector<4x64xi32>
    %53 = arith.cmpi sge, %50, %52 : vector<4x64xi32>
    %c16_i32_24 = arith.constant 16 : i32
    %54 = vector.broadcast %c16_i32_24 : i32 to vector<4x64xi32>
    %55 = arith.addi %52, %54 : vector<4x64xi32>
    %56 = arith.cmpi slt, %50, %55 : vector<4x64xi32>
    %57 = arith.andi %53, %56 : vector<4x64xi1>
    %58 = arith.extui %57 : vector<4x64xi1> to vector<4x64xi32>
    %59 = arith.sitofp %58 : vector<4x64xi32> to vector<4x64xf32>
    %60 = vector.broadcast %6 : vector<1x64xf32> to vector<32x64xf32>
    %61 = arith.mulf %37, %60 : vector<32x64xf32>
    %cst_25 = arith.constant dense<0.000000e+00> : vector<32x4xf32>
    %62 = tpu.matmul %61, %48, %cst_25 {dimension_numbers = #tpu.dot_dimension_numbers<[1], [0], [0], [1], [0, 0, 1, 1], [], []>} : vector<32x64xf32>, vector<64x4xf32>, vector<32x4xf32> -> vector<32x4xf32>
    %c0_26 = arith.constant 0 : index
    %c0_27 = arith.constant 0 : index
    %c0_28 = arith.constant 0 : index
    %63 = vector.load %arg2[%c0_26, %c0_27, %c0_28] : memref<1x32x4xf32, #tpu.memory_space<vmem>>, vector<1x32x4xf32>
    %64 = vector.shape_cast %63 : vector<1x32x4xf32> to vector<32x4xf32>
    %65 = arith.addf %62, %64 : vector<32x4xf32>
    %66 = vector.shape_cast %65 : vector<32x4xf32> to vector<2x16x4xf32>
    %cst_29 = arith.constant dense<0xFF800000> : vector<2x4xf32>
    %67 = vector.multi_reduction <maximumf>, %66, %cst_29 [1] : vector<2x16x4xf32> to vector<2x4xf32>
    %68 = vector.shape_cast %67 : vector<2x4xf32> to vector<2x1x4xf32>
    %69 = vector.broadcast %68 : vector<2x1x4xf32> to vector<2x16x4xf32>
    %70 = arith.subf %66, %69 : vector<2x16x4xf32>
    %71 = math.exp %70 : vector<2x16x4xf32>
    %cst_30 = arith.constant dense<0.000000e+00> : vector<2x4xf32>
    %72 = vector.multi_reduction <add>, %71, %cst_30 [1] : vector<2x16x4xf32> to vector<2x4xf32>
    %73 = vector.shape_cast %72 : vector<2x4xf32> to vector<2x1x4xf32>
    %74 = vector.broadcast %73 : vector<2x1x4xf32> to vector<2x16x4xf32>
    %75 = arith.divf %71, %74 : vector<2x16x4xf32>
    %76 = vector.shape_cast %75 : vector<2x16x4xf32> to vector<32x4xf32>
    %cst_31 = arith.constant dense<0.000000e+00> : vector<32x64xf32>
    %77 = tpu.matmul %76, %59, %cst_31 {dimension_numbers = #tpu.dot_dimension_numbers<[1], [0], [0], [1], [0, 0, 1, 1], [], []>} : vector<32x4xf32>, vector<4x64xf32>, vector<32x64xf32> -> vector<32x64xf32>
    %78 = arith.mulf %21, %77 : vector<32x64xf32>
    %79 = vector.shape_cast %78 : vector<32x64xf32> to vector<2x16x64xf32>
    %cst_32 = arith.constant dense<0.000000e+00> : vector<2x64xf32>
    %80 = vector.multi_reduction <add>, %79, %cst_32 [1] : vector<2x16x64xf32> to vector<2x64xf32>
    %c0_33 = arith.constant 0 : index
    %c2 = arith.constant 2 : index
    %c0_34 = arith.constant 0 : index
    %c0_35 = arith.constant 0 : index
    %81 = vector.load %arg5[%c0_33, %c2, %c0_34, %c0_35] : memref<1x3x64x64xbf16, #tpu.memory_space<vmem>>, vector<1x1x64x64xbf16>
    %82 = vector.shape_cast %81 : vector<1x1x64x64xbf16> to vector<64x64xbf16>
    %83 = arith.truncf %80 : vector<2x64xf32> to vector<2x64xbf16>
    %cst_36 = arith.constant dense<0.000000e+00> : vector<2x64xf32>
    %84 = tpu.matmul %83, %82, %cst_36 {dimension_numbers = #tpu.dot_dimension_numbers<[1], [0], [0], [1], [0, 0, 1, 1], [], []>} : vector<2x64xbf16>, vector<64x64xbf16>, vector<2x64xf32> -> vector<2x64xf32>
    %85 = vector.broadcast %5 : vector<1x64xf32> to vector<2x64xf32>
    %86 = arith.addf %84, %85 : vector<2x64xf32>
    %87 = arith.addf %8, %86 : vector<2x64xf32>
    %c0_37 = arith.constant 0 : index
    %c0_38 = arith.constant 0 : index
    %c0_39 = arith.constant 0 : index
    %88 = vector.load %arg7[%c0_37, %c0_38, %c0_39] : memref<1x2x64xf32, #tpu.memory_space<vmem>>, vector<1x2x64xf32>
    %89 = vector.shape_cast %88 : vector<1x2x64xf32> to vector<2x64xf32>
    %90 = vector.shape_cast %87 : vector<2x64xf32> to vector<1x2x64xf32>
    tpu.vector_store %arg7[%c0_37, %c0_38, %c0_39], %90 {strides = array<i32>} : memref<1x2x64xf32, #tpu.memory_space<vmem>>, vector<1x2x64xf32>,
    return
  }
  func.func @transform_0(%arg0: i32) -> (i32, i32, i32) {
    %c0_i32 = arith.constant 0 : i32
    %c0_i32_0 = arith.constant 0 : i32
    %c0_i32_1 = arith.constant 0 : i32
    return %arg0, %c0_i32, %c0_i32_0 : i32, i32, i32
  }
  func.func @transform_1(%arg0: i32) -> (i32, i32, i32) {
    %c0_i32 = arith.constant 0 : i32
    %c0_i32_0 = arith.constant 0 : i32
    %c0_i32_1 = arith.constant 0 : i32
    return %arg0, %c0_i32, %c0_i32_0 : i32, i32, i32
  }
  func.func @transform_2(%arg0: i32) -> (i32, i32, i32) {
    %c0_i32 = arith.constant 0 : i32
    %c0_i32_0 = arith.constant 0 : i32
    %c0_i32_1 = arith.constant 0 : i32
    return %arg0, %c0_i32, %c0_i32_0 : i32, i32, i32
  }
  func.func @transform_3(%arg0: i32) -> (i32, i32, i32) {
    %c0_i32 = arith.constant 0 : i32
    %c0_i32_0 = arith.constant 0 : i32
    %c0_i32_1 = arith.constant 0 : i32
    return %arg0, %c0_i32, %c0_i32_0 : i32, i32, i32
  }
  func.func @transform_4(%arg0: i32) -> (i32, i32, i32, i32) {
    %c0_i32 = arith.constant 0 : i32
    %c0_i32_0 = arith.constant 0 : i32
    %c0_i32_1 = arith.constant 0 : i32
    %c0_i32_2 = arith.constant 0 : i32
    return %arg0, %c0_i32, %c0_i32_0, %c0_i32_1 : i32, i32, i32, i32
  }
  func.func @transform_5(%arg0: i32) -> (i32, i32, i32) {
    %c0_i32 = arith.constant 0 : i32
    %c0_i32_0 = arith.constant 0 : i32
    %c0_i32_1 = arith.constant 0 : i32
    return %arg0, %c0_i32, %c0_i32_0 : i32, i32, i32
  }
  func.func @transform_6(%arg0: i32) -> (i32, i32, i32) {
    %c0_i32 = arith.constant 0 : i32
    %c0_i32_0 = arith.constant 0 : i32
    %c0_i32_1 = arith.constant 0 : i32
    return %arg0, %c0_i32, %c0_i32_0 : i32, i32, i32
  }
}

module attributes {stable_mosaic.version = 11 : i64} {
  func.func @_mixer_kernel(%arg0: i32, %arg1: i32, %arg2: memref<1x16x32xbf16, #tpu.memory_space<vmem>>, %arg3: memref<1x16x1xi32, #tpu.memory_space<vmem>>, %arg4: memref<1x2x64xf32, #tpu.memory_space<vmem>>, %arg5: memref<1x32x64xbf16, #tpu.memory_space<vmem>>, %arg6: memref<1x2x64x64xbf16, #tpu.memory_space<vmem>>, %arg7: memref<1x8x64xf32, #tpu.memory_space<vmem>>, %arg8: memref<1x16x64xf32, #tpu.memory_space<vmem>>) attributes {dimension_semantics = [#tpu.dimension_semantics<parallel>, #tpu.dimension_semantics<parallel>], iteration_bounds = array<i64: 4, 2>, scalar_prefetch = 0 : i64, scratch_operands = 0 : i64, tpu.core_type = #tpu.core_type<tc>, window_params = [{transform_indices = @transform_0, window_bounds = array<i64: 1, 16, 32>}, {transform_indices = @transform_1, window_bounds = array<i64: 1, 16, 1>}, {transform_indices = @transform_2, window_bounds = array<i64: 1, 2, 64>}, {transform_indices = @transform_3, window_bounds = array<i64: 1, 32, 64>}, {transform_indices = @transform_4, window_bounds = array<i64: 1, 2, 64, 64>}, {transform_indices = @transform_5, window_bounds = array<i64: 1, 8, 64>}, {transform_indices = @transform_6, window_bounds = array<i64: 1, 16, 64>}]} {
    %c0 = arith.constant 0 : index
    %c0_0 = arith.constant 0 : index
    %c0_1 = arith.constant 0 : index
    %0 = vector.load %arg7[%c0, %c0_0, %c0_1] : memref<1x8x64xf32, #tpu.memory_space<vmem>>, vector<1x8x64xf32>
    %1 = vector.shape_cast %0 : vector<1x8x64xf32> to vector<8x64xf32>
    %2 = vector.extract_strided_slice %1 {offsets = [0, 0], sizes = [1, 64], strides = [1, 1]} : vector<8x64xf32> to vector<1x64xf32>
    %3 = vector.extract_strided_slice %1 {offsets = [4, 0], sizes = [1, 64], strides = [1, 1]} : vector<8x64xf32> to vector<1x64xf32>
    %c0_2 = arith.constant 0 : index
    %c0_3 = arith.constant 0 : index
    %c0_4 = arith.constant 0 : index
    %4 = vector.load %arg2[%c0_2, %c0_3, %c0_4] : memref<1x16x32xbf16, #tpu.memory_space<vmem>>, vector<1x16x32xbf16>
    %5 = vector.shape_cast %4 : vector<1x16x32xbf16> to vector<16x32xbf16>
    %c0_5 = arith.constant 0 : index
    %c0_6 = arith.constant 0 : index
    %c0_7 = arith.constant 0 : index
    %6 = vector.load %arg5[%c0_5, %c0_6, %c0_7] : memref<1x32x64xbf16, #tpu.memory_space<vmem>>, vector<1x32x64xbf16>
    %7 = vector.shape_cast %6 : vector<1x32x64xbf16> to vector<32x64xbf16>
    %cst = arith.constant dense<0.000000e+00> : vector<16x64xf32>
    %8 = tpu.matmul %5, %7, %cst {dimension_numbers = #tpu.dot_dimension_numbers<[1], [0], [0], [1], [0, 0, 1, 1], [], []>} : vector<16x32xbf16>, vector<32x64xbf16>, vector<16x64xf32> -> vector<16x64xf32>
    %9 = vector.broadcast %2 : vector<1x64xf32> to vector<16x64xf32>
    %10 = arith.addf %8, %9 : vector<16x64xf32>
    %c0_8 = arith.constant 0 : index
    %c0_9 = arith.constant 0 : index
    %c0_10 = arith.constant 0 : index
    %11 = vector.load %arg3[%c0_8, %c0_9, %c0_10] : memref<1x16x1xi32, #tpu.memory_space<vmem>>, vector<1x16x1xi32>
    %12 = vector.shape_cast %11 : vector<1x16x1xi32> to vector<16x1xi32>
    %13 = tpu.iota {dimensions = array<i32: 1>} : vector<16x2xi32>
    %14 = vector.broadcast %12 : vector<16x1xi32> to vector<16x2xi32>
    %15 = arith.cmpi eq, %14, %13 : vector<16x2xi32>
    %16 = arith.extui %15 : vector<16x2xi1> to vector<16x2xi32>
    %17 = arith.sitofp %16 : vector<16x2xi32> to vector<16x2xf32>
    %c0_11 = arith.constant 0 : index
    %c0_12 = arith.constant 0 : index
    %c0_13 = arith.constant 0 : index
    %18 = vector.load %arg4[%c0_11, %c0_12, %c0_13] : memref<1x2x64xf32, #tpu.memory_space<vmem>>, vector<1x2x64xf32>
    %19 = vector.shape_cast %18 : vector<1x2x64xf32> to vector<2x64xf32>
    %cst_14 = arith.constant dense<0.000000e+00> : vector<16x64xf32>
    %20 = tpu.matmul %17, %19, %cst_14 {dimension_numbers = #tpu.dot_dimension_numbers<[1], [0], [0], [1], [0, 0, 1, 1], [], []>} : vector<16x2xf32>, vector<2x64xf32>, vector<16x64xf32> -> vector<16x64xf32>
    %c0_15 = arith.constant 0 : index
    %c0_16 = arith.constant 0 : index
    %c0_17 = arith.constant 0 : index
    %c0_18 = arith.constant 0 : index
    %21 = vector.load %arg6[%c0_15, %c0_16, %c0_17, %c0_18] : memref<1x2x64x64xbf16, #tpu.memory_space<vmem>>, vector<1x1x64x64xbf16>
    %22 = vector.shape_cast %21 : vector<1x1x64x64xbf16> to vector<64x64xbf16>
    %23 = arith.truncf %10 : vector<16x64xf32> to vector<16x64xbf16>
    %cst_19 = arith.constant dense<0.000000e+00> : vector<16x64xf32>
    %24 = tpu.matmul %23, %22, %cst_19 {dimension_numbers = #tpu.dot_dimension_numbers<[1], [0], [0], [1], [0, 0, 1, 1], [], []>} : vector<16x64xbf16>, vector<64x64xbf16>, vector<16x64xf32> -> vector<16x64xf32>
    %c0_20 = arith.constant 0 : index
    %c1 = arith.constant 1 : index
    %c0_21 = arith.constant 0 : index
    %c0_22 = arith.constant 0 : index
    %25 = vector.load %arg6[%c0_20, %c1, %c0_21, %c0_22] : memref<1x2x64x64xbf16, #tpu.memory_space<vmem>>, vector<1x1x64x64xbf16>
    %26 = vector.shape_cast %25 : vector<1x1x64x64xbf16> to vector<64x64xbf16>
    %27 = arith.truncf %20 : vector<16x64xf32> to vector<16x64xbf16>
    %cst_23 = arith.constant dense<0.000000e+00> : vector<16x64xf32>
    %28 = tpu.matmul %27, %26, %cst_23 {dimension_numbers = #tpu.dot_dimension_numbers<[1], [0], [0], [1], [0, 0, 1, 1], [], []>} : vector<16x64xbf16>, vector<64x64xbf16>, vector<16x64xf32> -> vector<16x64xf32>
    %29 = arith.addf %24, %28 : vector<16x64xf32>
    %30 = vector.broadcast %3 : vector<1x64xf32> to vector<16x64xf32>
    %31 = arith.addf %29, %30 : vector<16x64xf32>
    %cst_24 = arith.constant 0.000000e+00 : f32
    %32 = vector.broadcast %cst_24 : f32 to vector<16x64xf32>
    %33 = arith.cmpf oge, %31, %32 : vector<16x64xf32>
    %cst_25 = arith.constant 0.00999999977 : f32
    %34 = vector.broadcast %cst_25 : f32 to vector<16x64xf32>
    %35 = arith.mulf %34, %31 : vector<16x64xf32>
    %36 = arith.select %33, %31, %35 : vector<16x64xi1>, vector<16x64xf32>
    %c0_26 = arith.constant 0 : index
    %c0_27 = arith.constant 0 : index
    %c0_28 = arith.constant 0 : index
    %37 = vector.load %arg8[%c0_26, %c0_27, %c0_28] : memref<1x16x64xf32, #tpu.memory_space<vmem>>, vector<1x16x64xf32>
    %38 = vector.shape_cast %37 : vector<1x16x64xf32> to vector<16x64xf32>
    %39 = vector.shape_cast %36 : vector<16x64xf32> to vector<1x16x64xf32>
    tpu.vector_store %arg8[%c0_26, %c0_27, %c0_28], %39 {strides = array<i32>} : memref<1x16x64xf32, #tpu.memory_space<vmem>>, vector<1x16x64xf32>,
    return
  }
  func.func @transform_0(%arg0: i32, %arg1: i32) -> (i32, i32, i32) {
    %c0_i32 = arith.constant 0 : i32
    %c0_i32_0 = arith.constant 0 : i32
    return %arg0, %arg1, %c0_i32 : i32, i32, i32
  }
  func.func @transform_1(%arg0: i32, %arg1: i32) -> (i32, i32, i32) {
    %c0_i32 = arith.constant 0 : i32
    %c0_i32_0 = arith.constant 0 : i32
    return %arg0, %arg1, %c0_i32 : i32, i32, i32
  }
  func.func @transform_2(%arg0: i32, %arg1: i32) -> (i32, i32, i32) {
    %c0_i32 = arith.constant 0 : i32
    %c0_i32_0 = arith.constant 0 : i32
    %c0_i32_1 = arith.constant 0 : i32
    return %arg0, %c0_i32, %c0_i32_0 : i32, i32, i32
  }
  func.func @transform_3(%arg0: i32, %arg1: i32) -> (i32, i32, i32) {
    %c0_i32 = arith.constant 0 : i32
    %c0_i32_0 = arith.constant 0 : i32
    %c0_i32_1 = arith.constant 0 : i32
    return %arg0, %c0_i32, %c0_i32_0 : i32, i32, i32
  }
  func.func @transform_4(%arg0: i32, %arg1: i32) -> (i32, i32, i32, i32) {
    %c0_i32 = arith.constant 0 : i32
    %c0_i32_0 = arith.constant 0 : i32
    %c0_i32_1 = arith.constant 0 : i32
    %c0_i32_2 = arith.constant 0 : i32
    return %arg0, %c0_i32, %c0_i32_0, %c0_i32_1 : i32, i32, i32, i32
  }
  func.func @transform_5(%arg0: i32, %arg1: i32) -> (i32, i32, i32) {
    %c0_i32 = arith.constant 0 : i32
    %c0_i32_0 = arith.constant 0 : i32
    %c0_i32_1 = arith.constant 0 : i32
    return %arg0, %c0_i32, %c0_i32_0 : i32, i32, i32
  }
  func.func @transform_6(%arg0: i32, %arg1: i32) -> (i32, i32, i32) {
    %c0_i32 = arith.constant 0 : i32
    %c0_i32_0 = arith.constant 0 : i32
    return %arg0, %arg1, %c0_i32 : i32, i32, i32
  }
}

module attributes {stable_mosaic.version = 11 : i64} {
  func.func @_encoder_kernel(%arg0: i32, %arg1: memref<1x4x64xf32, #tpu.memory_space<vmem>>, %arg2: memref<1x1x4xf32, #tpu.memory_space<vmem>>, %arg3: memref<1x4x1xf32, #tpu.memory_space<vmem>>, %arg4: memref<3x2x64x32xbf16, #tpu.memory_space<vmem>>, %arg5: memref<3x2x1x32xf32, #tpu.memory_space<vmem>>, %arg6: memref<2x32x64xbf16, #tpu.memory_space<vmem>>, %arg7: memref<8x64xf32, #tpu.memory_space<vmem>>, %arg8: memref<64x256xbf16, #tpu.memory_space<vmem>>, %arg9: memref<1x256xf32, #tpu.memory_space<vmem>>, %arg10: memref<256x64xbf16, #tpu.memory_space<vmem>>, %arg11: memref<1x4x64xf32, #tpu.memory_space<vmem>>) attributes {dimension_semantics = [#tpu.dimension_semantics<parallel>], iteration_bounds = array<i64: 2>, scalar_prefetch = 0 : i64, scratch_operands = 0 : i64, tpu.core_type = #tpu.core_type<tc>, window_params = [{transform_indices = @transform_0, window_bounds = array<i64: 1, 4, 64>}, {transform_indices = @transform_1, window_bounds = array<i64: 1, 1, 4>}, {transform_indices = @transform_2, window_bounds = array<i64: 1, 4, 1>}, {pipeline_mode = #tpu.pipeline_mode<synchronous>, transform_indices = @transform_3, window_bounds = array<i64: 3, 2, 64, 32>}, {pipeline_mode = #tpu.pipeline_mode<synchronous>, transform_indices = @transform_4, window_bounds = array<i64: 3, 2, 1, 32>}, {pipeline_mode = #tpu.pipeline_mode<synchronous>, transform_indices = @transform_5, window_bounds = array<i64: 2, 32, 64>}, {pipeline_mode = #tpu.pipeline_mode<synchronous>, transform_indices = @transform_6, window_bounds = array<i64: 8, 64>}, {pipeline_mode = #tpu.pipeline_mode<synchronous>, transform_indices = @transform_7, window_bounds = array<i64: 64, 256>}, {pipeline_mode = #tpu.pipeline_mode<synchronous>, transform_indices = @transform_8, window_bounds = array<i64: 1, 256>}, {pipeline_mode = #tpu.pipeline_mode<synchronous>, transform_indices = @transform_9, window_bounds = array<i64: 256, 64>}, {transform_indices = @transform_10, window_bounds = array<i64: 1, 4, 64>}]} {
    %c0 = arith.constant 0 : index
    %c0_0 = arith.constant 0 : index
    %c0_1 = arith.constant 0 : index
    %0 = vector.load %arg1[%c0, %c0_0, %c0_1] : memref<1x4x64xf32, #tpu.memory_space<vmem>>, vector<1x4x64xf32>
    %1 = vector.shape_cast %0 : vector<1x4x64xf32> to vector<4x64xf32>
    %2 = arith.truncf %1 : vector<4x64xf32> to vector<4x64xbf16>
    %c0_2 = arith.constant 0 : index
    %c0_3 = arith.constant 0 : index
    %c0_4 = arith.constant 0 : index
    %3 = vector.load %arg2[%c0_2, %c0_3, %c0_4] : memref<1x1x4xf32, #tpu.memory_space<vmem>>, vector<1x1x4xf32>
    %4 = vector.shape_cast %3 : vector<1x1x4xf32> to vector<1x4xf32>
    %c0_5 = arith.constant 0 : index
    %c0_6 = arith.constant 0 : index
    %5 = vector.load %arg7[%c0_5, %c0_6] : memref<8x64xf32, #tpu.memory_space<vmem>>, vector<8x64xf32>
    %6 = vector.extract_strided_slice %5 {offsets = [0, 0], sizes = [1, 64], strides = [1, 1]} : vector<8x64xf32> to vector<1x64xf32>
    %7 = vector.extract_strided_slice %5 {offsets = [1, 0], sizes = [1, 64], strides = [1, 1]} : vector<8x64xf32> to vector<1x64xf32>
    %8 = vector.extract_strided_slice %5 {offsets = [2, 0], sizes = [1, 64], strides = [1, 1]} : vector<8x64xf32> to vector<1x64xf32>
    %9 = vector.extract_strided_slice %5 {offsets = [3, 0], sizes = [1, 64], strides = [1, 1]} : vector<8x64xf32> to vector<1x64xf32>
    %10 = vector.extract_strided_slice %5 {offsets = [4, 0], sizes = [1, 64], strides = [1, 1]} : vector<8x64xf32> to vector<1x64xf32>
    %11 = vector.extract_strided_slice %5 {offsets = [5, 0], sizes = [1, 64], strides = [1, 1]} : vector<8x64xf32> to vector<1x64xf32>
    %cst = arith.constant 0.000000e+00 : f32
    %12 = vector.broadcast %cst : f32 to vector<4x64xf32>
    %c0_7 = arith.constant 0 : index
    %c0_8 = arith.constant 0 : index
    %c0_9 = arith.constant 0 : index
    %c0_10 = arith.constant 0 : index
    %13 = vector.load %arg4[%c0_7, %c0_8, %c0_9, %c0_10] : memref<3x2x64x32xbf16, #tpu.memory_space<vmem>>, vector<1x1x64x32xbf16>
    %14 = vector.shape_cast %13 : vector<1x1x64x32xbf16> to vector<64x32xbf16>
    %cst_11 = arith.constant dense<0.000000e+00> : vector<4x32xf32>
    %15 = tpu.matmul %2, %14, %cst_11 {dimension_numbers = #tpu.dot_dimension_numbers<[1], [0], [0], [1], [0, 0, 1, 1], [], []>} : vector<4x64xbf16>, vector<64x32xbf16>, vector<4x32xf32> -> vector<4x32xf32>
    %c0_12 = arith.constant 0 : index
    %c0_13 = arith.constant 0 : index
    %c0_14 = arith.constant 0 : index
    %c0_15 = arith.constant 0 : index
    %16 = vector.load %arg5[%c0_12, %c0_13, %c0_14, %c0_15] : memref<3x2x1x32xf32, #tpu.memory_space<vmem>>, vector<1x1x1x32xf32>
    %17 = vector.shape_cast %16 : vector<1x1x1x32xf32> to vector<1x32xf32>
    %18 = vector.broadcast %17 : vector<1x32xf32> to vector<4x32xf32>
    %19 = arith.addf %15, %18 : vector<4x32xf32>
    %c1 = arith.constant 1 : index
    %c0_16 = arith.constant 0 : index
    %c0_17 = arith.constant 0 : index
    %c0_18 = arith.constant 0 : index
    %20 = vector.load %arg4[%c1, %c0_16, %c0_17, %c0_18] : memref<3x2x64x32xbf16, #tpu.memory_space<vmem>>, vector<1x1x64x32xbf16>
    %21 = vector.shape_cast %20 : vector<1x1x64x32xbf16> to vector<64x32xbf16>
    %cst_19 = arith.constant dense<0.000000e+00> : vector<4x32xf32>
    %22 = tpu.matmul %2, %21, %cst_19 {dimension_numbers = #tpu.dot_dimension_numbers<[1], [0], [0], [1], [0, 0, 1, 1], [], []>} : vector<4x64xbf16>, vector<64x32xbf16>, vector<4x32xf32> -> vector<4x32xf32>
    %c1_20 = arith.constant 1 : index
    %c0_21 = arith.constant 0 : index
    %c0_22 = arith.constant 0 : index
    %c0_23 = arith.constant 0 : index
    %23 = vector.load %arg5[%c1_20, %c0_21, %c0_22, %c0_23] : memref<3x2x1x32xf32, #tpu.memory_space<vmem>>, vector<1x1x1x32xf32>
    %24 = vector.shape_cast %23 : vector<1x1x1x32xf32> to vector<1x32xf32>
    %25 = vector.broadcast %24 : vector<1x32xf32> to vector<4x32xf32>
    %26 = arith.addf %22, %25 : vector<4x32xf32>
    %c2 = arith.constant 2 : index
    %c0_24 = arith.constant 0 : index
    %c0_25 = arith.constant 0 : index
    %c0_26 = arith.constant 0 : index
    %27 = vector.load %arg4[%c2, %c0_24, %c0_25, %c0_26] : memref<3x2x64x32xbf16, #tpu.memory_space<vmem>>, vector<1x1x64x32xbf16>
    %28 = vector.shape_cast %27 : vector<1x1x64x32xbf16> to vector<64x32xbf16>
    %cst_27 = arith.constant dense<0.000000e+00> : vector<4x32xf32>
    %29 = tpu.matmul %2, %28, %cst_27 {dimension_numbers = #tpu.dot_dimension_numbers<[1], [0], [0], [1], [0, 0, 1, 1], [], []>} : vector<4x64xbf16>, vector<64x32xbf16>, vector<4x32xf32> -> vector<4x32xf32>
    %c2_28 = arith.constant 2 : index
    %c0_29 = arith.constant 0 : index
    %c0_30 = arith.constant 0 : index
    %c0_31 = arith.constant 0 : index
    %30 = vector.load %arg5[%c2_28, %c0_29, %c0_30, %c0_31] : memref<3x2x1x32xf32, #tpu.memory_space<vmem>>, vector<1x1x1x32xf32>
    %31 = vector.shape_cast %30 : vector<1x1x1x32xf32> to vector<1x32xf32>
    %32 = vector.broadcast %31 : vector<1x32xf32> to vector<4x32xf32>
    %33 = arith.addf %29, %32 : vector<4x32xf32>
    %cst_32 = arith.constant dense<0.000000e+00> : vector<4x4xf32>
    %34 = tpu.matmul %19, %26, %cst_32 {dimension_numbers = #tpu.dot_dimension_numbers<[1], [1], [0], [0], [0, 0, 1, 0], [], []>} : vector<4x32xf32>, vector<4x32xf32>, vector<4x4xf32> -> vector<4x4xf32>
    %cst_33 = arith.constant 0.176776692 : f32
    %35 = vector.broadcast %cst_33 : f32 to vector<4x4xf32>
    %36 = arith.mulf %34, %35 : vector<4x4xf32>
    %37 = vector.broadcast %4 : vector<1x4xf32> to vector<4x4xf32>
    %38 = arith.addf %36, %37 : vector<4x4xf32>
    %cst_34 = arith.constant dense<0xFF800000> : vector<4xf32>
    %39 = vector.multi_reduction <maximumf>, %38, %cst_34 [1] : vector<4x4xf32> to vector<4xf32>
    %40 = vector.shape_cast %39 : vector<4xf32> to vector<4x1xf32>
    %41 = vector.broadcast %40 : vector<4x1xf32> to vector<4x4xf32>
    %42 = arith.subf %38, %41 : vector<4x4xf32>
    %43 = math.exp %42 : vector<4x4xf32>
    %cst_35 = arith.constant dense<0.000000e+00> : vector<4xf32>
    %44 = vector.multi_reduction <add>, %43, %cst_35 [1] : vector<4x4xf32> to vector<4xf32>
    %45 = vector.shape_cast %44 : vector<4xf32> to vector<4x1xf32>
    %46 = vector.broadcast %45 : vector<4x1xf32> to vector<4x4xf32>
    %47 = arith.divf %43, %46 : vector<4x4xf32>
    %cst_36 = arith.constant dense<0.000000e+00> : vector<4x32xf32>
    %48 = tpu.matmul %47, %33, %cst_36 {dimension_numbers = #tpu.dot_dimension_numbers<[1], [0], [0], [1], [0, 0, 1, 1], [], []>} : vector<4x4xf32>, vector<4x32xf32>, vector<4x32xf32> -> vector<4x32xf32>
    %c0_37 = arith.constant 0 : index
    %c0_38 = arith.constant 0 : index
    %c0_39 = arith.constant 0 : index
    %49 = vector.load %arg6[%c0_37, %c0_38, %c0_39] : memref<2x32x64xbf16, #tpu.memory_space<vmem>>, vector<1x32x64xbf16>
    %50 = vector.shape_cast %49 : vector<1x32x64xbf16> to vector<32x64xbf16>
    %51 = arith.truncf %48 : vector<4x32xf32> to vector<4x32xbf16>
    %cst_40 = arith.constant dense<0.000000e+00> : vector<4x64xf32>
    %52 = tpu.matmul %51, %50, %cst_40 {dimension_numbers = #tpu.dot_dimension_numbers<[1], [0], [0], [1], [0, 0, 1, 1], [], []>} : vector<4x32xbf16>, vector<32x64xbf16>, vector<4x64xf32> -> vector<4x64xf32>
    %53 = arith.addf %12, %52 : vector<4x64xf32>
    %c0_41 = arith.constant 0 : index
    %c1_42 = arith.constant 1 : index
    %c0_43 = arith.constant 0 : index
    %c0_44 = arith.constant 0 : index
    %54 = vector.load %arg4[%c0_41, %c1_42, %c0_43, %c0_44] : memref<3x2x64x32xbf16, #tpu.memory_space<vmem>>, vector<1x1x64x32xbf16>
    %55 = vector.shape_cast %54 : vector<1x1x64x32xbf16> to vector<64x32xbf16>
    %cst_45 = arith.constant dense<0.000000e+00> : vector<4x32xf32>
    %56 = tpu.matmul %2, %55, %cst_45 {dimension_numbers = #tpu.dot_dimension_numbers<[1], [0], [0], [1], [0, 0, 1, 1], [], []>} : vector<4x64xbf16>, vector<64x32xbf16>, vector<4x32xf32> -> vector<4x32xf32>
    %c0_46 = arith.constant 0 : index
    %c1_47 = arith.constant 1 : index
    %c0_48 = arith.constant 0 : index
    %c0_49 = arith.constant 0 : index
    %57 = vector.load %arg5[%c0_46, %c1_47, %c0_48, %c0_49] : memref<3x2x1x32xf32, #tpu.memory_space<vmem>>, vector<1x1x1x32xf32>
    %58 = vector.shape_cast %57 : vector<1x1x1x32xf32> to vector<1x32xf32>
    %59 = vector.broadcast %58 : vector<1x32xf32> to vector<4x32xf32>
    %60 = arith.addf %56, %59 : vector<4x32xf32>
    %c1_50 = arith.constant 1 : index
    %c1_51 = arith.constant 1 : index
    %c0_52 = arith.constant 0 : index
    %c0_53 = arith.constant 0 : index
    %61 = vector.load %arg4[%c1_50, %c1_51, %c0_52, %c0_53] : memref<3x2x64x32xbf16, #tpu.memory_space<vmem>>, vector<1x1x64x32xbf16>
    %62 = vector.shape_cast %61 : vector<1x1x64x32xbf16> to vector<64x32xbf16>
    %cst_54 = arith.constant dense<0.000000e+00> : vector<4x32xf32>
    %63 = tpu.matmul %2, %62, %cst_54 {dimension_numbers = #tpu.dot_dimension_numbers<[1], [0], [0], [1], [0, 0, 1, 1], [], []>} : vector<4x64xbf16>, vector<64x32xbf16>, vector<4x32xf32> -> vector<4x32xf32>
    %c1_55 = arith.constant 1 : index
    %c1_56 = arith.constant 1 : index
    %c0_57 = arith.constant 0 : index
    %c0_58 = arith.constant 0 : index
    %64 = vector.load %arg5[%c1_55, %c1_56, %c0_57, %c0_58] : memref<3x2x1x32xf32, #tpu.memory_space<vmem>>, vector<1x1x1x32xf32>
    %65 = vector.shape_cast %64 : vector<1x1x1x32xf32> to vector<1x32xf32>
    %66 = vector.broadcast %65 : vector<1x32xf32> to vector<4x32xf32>
    %67 = arith.addf %63, %66 : vector<4x32xf32>
    %c2_59 = arith.constant 2 : index
    %c1_60 = arith.constant 1 : index
    %c0_61 = arith.constant 0 : index
    %c0_62 = arith.constant 0 : index
    %68 = vector.load %arg4[%c2_59, %c1_60, %c0_61, %c0_62] : memref<3x2x64x32xbf16, #tpu.memory_space<vmem>>, vector<1x1x64x32xbf16>
    %69 = vector.shape_cast %68 : vector<1x1x64x32xbf16> to vector<64x32xbf16>
    %cst_63 = arith.constant dense<0.000000e+00> : vector<4x32xf32>
    %70 = tpu.matmul %2, %69, %cst_63 {dimension_numbers = #tpu.dot_dimension_numbers<[1], [0], [0], [1], [0, 0, 1, 1], [], []>} : vector<4x64xbf16>, vector<64x32xbf16>, vector<4x32xf32> -> vector<4x32xf32>
    %c2_64 = arith.constant 2 : index
    %c1_65 = arith.constant 1 : index
    %c0_66 = arith.constant 0 : index
    %c0_67 = arith.constant 0 : index
    %71 = vector.load %arg5[%c2_64, %c1_65, %c0_66, %c0_67] : memref<3x2x1x32xf32, #tpu.memory_space<vmem>>, vector<1x1x1x32xf32>
    %72 = vector.shape_cast %71 : vector<1x1x1x32xf32> to vector<1x32xf32>
    %73 = vector.broadcast %72 : vector<1x32xf32> to vector<4x32xf32>
    %74 = arith.addf %70, %73 : vector<4x32xf32>
    %cst_68 = arith.constant dense<0.000000e+00> : vector<4x4xf32>
    %75 = tpu.matmul %60, %67, %cst_68 {dimension_numbers = #tpu.dot_dimension_numbers<[1], [1], [0], [0], [0, 0, 1, 0], [], []>} : vector<4x32xf32>, vector<4x32xf32>, vector<4x4xf32> -> vector<4x4xf32>
    %cst_69 = arith.constant 0.176776692 : f32
    %76 = vector.broadcast %cst_69 : f32 to vector<4x4xf32>
    %77 = arith.mulf %75, %76 : vector<4x4xf32>
    %78 = vector.broadcast %4 : vector<1x4xf32> to vector<4x4xf32>
    %79 = arith.addf %77, %78 : vector<4x4xf32>
    %cst_70 = arith.constant dense<0xFF800000> : vector<4xf32>
    %80 = vector.multi_reduction <maximumf>, %79, %cst_70 [1] : vector<4x4xf32> to vector<4xf32>
    %81 = vector.shape_cast %80 : vector<4xf32> to vector<4x1xf32>
    %82 = vector.broadcast %81 : vector<4x1xf32> to vector<4x4xf32>
    %83 = arith.subf %79, %82 : vector<4x4xf32>
    %84 = math.exp %83 : vector<4x4xf32>
    %cst_71 = arith.constant dense<0.000000e+00> : vector<4xf32>
    %85 = vector.multi_reduction <add>, %84, %cst_71 [1] : vector<4x4xf32> to vector<4xf32>
    %86 = vector.shape_cast %85 : vector<4xf32> to vector<4x1xf32>
    %87 = vector.broadcast %86 : vector<4x1xf32> to vector<4x4xf32>
    %88 = arith.divf %84, %87 : vector<4x4xf32>
    %cst_72 = arith.constant dense<0.000000e+00> : vector<4x32xf32>
    %89 = tpu.matmul %88, %74, %cst_72 {dimension_numbers = #tpu.dot_dimension_numbers<[1], [0], [0], [1], [0, 0, 1, 1], [], []>} : vector<4x4xf32>, vector<4x32xf32>, vector<4x32xf32> -> vector<4x32xf32>
    %c1_73 = arith.constant 1 : index
    %c0_74 = arith.constant 0 : index
    %c0_75 = arith.constant 0 : index
    %90 = vector.load %arg6[%c1_73, %c0_74, %c0_75] : memref<2x32x64xbf16, #tpu.memory_space<vmem>>, vector<1x32x64xbf16>
    %91 = vector.shape_cast %90 : vector<1x32x64xbf16> to vector<32x64xbf16>
    %92 = arith.truncf %89 : vector<4x32xf32> to vector<4x32xbf16>
    %cst_76 = arith.constant dense<0.000000e+00> : vector<4x64xf32>
    %93 = tpu.matmul %92, %91, %cst_76 {dimension_numbers = #tpu.dot_dimension_numbers<[1], [0], [0], [1], [0, 0, 1, 1], [], []>} : vector<4x32xbf16>, vector<32x64xbf16>, vector<4x64xf32> -> vector<4x64xf32>
    %94 = arith.addf %53, %93 : vector<4x64xf32>
    %95 = vector.broadcast %6 : vector<1x64xf32> to vector<4x64xf32>
    %96 = arith.addf %94, %95 : vector<4x64xf32>
    %97 = arith.addf %1, %96 : vector<4x64xf32>
    %cst_77 = arith.constant dense<0.000000e+00> : vector<4xf32>
    %98 = vector.multi_reduction <add>, %97, %cst_77 [1] : vector<4x64xf32> to vector<4xf32>
    %99 = vector.shape_cast %98 : vector<4xf32> to vector<4x1xf32>
    %cst_78 = arith.constant 6.400000e+01 : f32
    %100 = vector.broadcast %cst_78 : f32 to vector<4x1xf32>
    %101 = arith.divf %99, %100 : vector<4x1xf32>
    %102 = vector.broadcast %101 : vector<4x1xf32> to vector<4x64xf32>
    %103 = arith.subf %97, %102 : vector<4x64xf32>
    %104 = arith.mulf %103, %103 : vector<4x64xf32>
    %cst_79 = arith.constant dense<0.000000e+00> : vector<4xf32>
    %105 = vector.multi_reduction <add>, %104, %cst_79 [1] : vector<4x64xf32> to vector<4xf32>
    %106 = vector.shape_cast %105 : vector<4xf32> to vector<4x1xf32>
    %cst_80 = arith.constant 6.400000e+01 : f32
    %107 = vector.broadcast %cst_80 : f32 to vector<4x1xf32>
    %108 = arith.divf %106, %107 : vector<4x1xf32>
    %109 = vector.broadcast %101 : vector<4x1xf32> to vector<4x64xf32>
    %110 = arith.subf %97, %109 : vector<4x64xf32>
    %cst_81 = arith.constant 9.99999974E-6 : f32
    %111 = vector.broadcast %cst_81 : f32 to vector<4x1xf32>
    %112 = arith.addf %108, %111 : vector<4x1xf32>
    %113 = math.rsqrt %112 : vector<4x1xf32>
    %114 = vector.broadcast %113 : vector<4x1xf32> to vector<4x64xf32>
    %115 = arith.mulf %110, %114 : vector<4x64xf32>
    %116 = vector.broadcast %7 : vector<1x64xf32> to vector<4x64xf32>
    %117 = arith.mulf %115, %116 : vector<4x64xf32>
    %118 = vector.broadcast %8 : vector<1x64xf32> to vector<4x64xf32>
    %119 = arith.addf %117, %118 : vector<4x64xf32>
    %c0_82 = arith.constant 0 : index
    %c0_83 = arith.constant 0 : index
    %120 = vector.load %arg8[%c0_82, %c0_83] : memref<64x256xbf16, #tpu.memory_space<vmem>>, vector<64x256xbf16>
    %121 = arith.truncf %119 : vector<4x64xf32> to vector<4x64xbf16>
    %cst_84 = arith.constant dense<0.000000e+00> : vector<4x256xf32>
    %122 = tpu.matmul %121, %120, %cst_84 {dimension_numbers = #tpu.dot_dimension_numbers<[1], [0], [0], [1], [0, 0, 1, 1], [], []>} : vector<4x64xbf16>, vector<64x256xbf16>, vector<4x256xf32> -> vector<4x256xf32>
    %c0_85 = arith.constant 0 : index
    %c0_86 = arith.constant 0 : index
    %123 = vector.load %arg9[%c0_85, %c0_86] : memref<1x256xf32, #tpu.memory_space<vmem>>, vector<1x256xf32>
    %124 = vector.broadcast %123 : vector<1x256xf32> to vector<4x256xf32>
    %125 = arith.addf %122, %124 : vector<4x256xf32>
    %cst_87 = arith.constant 5.000000e-01 : f32
    %126 = vector.broadcast %cst_87 : f32 to vector<4x256xf32>
    %127 = arith.mulf %126, %125 : vector<4x256xf32>
    %cst_88 = arith.constant 0.707106769 : f32
    %128 = vector.broadcast %cst_88 : f32 to vector<4x256xf32>
    %129 = arith.mulf %125, %128 : vector<4x256xf32>
    %130 = math.absf %129 : vector<4x256xf32>
    %cst_89 = arith.constant 0.327591091 : f32
    %131 = vector.broadcast %cst_89 : f32 to vector<4x256xf32>
    %132 = arith.mulf %131, %130 : vector<4x256xf32>
    %cst_90 = arith.constant 1.000000e+00 : f32
    %133 = vector.broadcast %cst_90 : f32 to vector<4x256xf32>
    %134 = arith.addf %133, %132 : vector<4x256xf32>
    %cst_91 = arith.constant 1.000000e+00 : f32
    %135 = vector.broadcast %cst_91 : f32 to vector<4x256xf32>
    %136 = arith.divf %135, %134 : vector<4x256xf32>
    %cst_92 = arith.constant 1.06140542 : f32
    %137 = vector.broadcast %cst_92 : f32 to vector<4x256xf32>
    %138 = arith.mulf %137, %136 : vector<4x256xf32>
    %cst_93 = arith.constant -1.45315206 : f32
    %139 = vector.broadcast %cst_93 : f32 to vector<4x256xf32>
    %140 = arith.addf %138, %139 : vector<4x256xf32>
    %141 = arith.mulf %140, %136 : vector<4x256xf32>
    %cst_94 = arith.constant 1.42141378 : f32
    %142 = vector.broadcast %cst_94 : f32 to vector<4x256xf32>
    %143 = arith.addf %141, %142 : vector<4x256xf32>
    %144 = arith.mulf %143, %136 : vector<4x256xf32>
    %cst_95 = arith.constant -0.284496725 : f32
    %145 = vector.broadcast %cst_95 : f32 to vector<4x256xf32>
    %146 = arith.addf %144, %145 : vector<4x256xf32>
    %147 = arith.mulf %146, %136 : vector<4x256xf32>
    %cst_96 = arith.constant 0.254829586 : f32
    %148 = vector.broadcast %cst_96 : f32 to vector<4x256xf32>
    %149 = arith.addf %147, %148 : vector<4x256xf32>
    %150 = arith.mulf %149, %136 : vector<4x256xf32>
    %cst_97 = arith.constant 0.000000e+00 : f32
    %151 = vector.broadcast %cst_97 : f32 to vector<4x256xf32>
    %152 = arith.subf %151, %130 : vector<4x256xf32>
    %153 = arith.mulf %152, %130 : vector<4x256xf32>
    %154 = math.exp %153 : vector<4x256xf32>
    %155 = arith.mulf %150, %154 : vector<4x256xf32>
    %cst_98 = arith.constant 1.000000e+00 : f32
    %156 = vector.broadcast %cst_98 : f32 to vector<4x256xf32>
    %157 = arith.subf %156, %155 : vector<4x256xf32>
    %cst_99 = arith.constant 0.000000e+00 : f32
    %158 = vector.broadcast %cst_99 : f32 to vector<4x256xf32>
    %159 = arith.cmpf oge, %129, %158 : vector<4x256xf32>
    %cst_100 = arith.constant 0.000000e+00 : f32
    %160 = vector.broadcast %cst_100 : f32 to vector<4x256xf32>
    %161 = arith.subf %160, %157 : vector<4x256xf32>
    %162 = arith.select %159, %157, %161 : vector<4x256xi1>, vector<4x256xf32>
    %cst_101 = arith.constant 1.000000e+00 : f32
    %163 = vector.broadcast %cst_101 : f32 to vector<4x256xf32>
    %164 = arith.addf %163, %162 : vector<4x256xf32>
    %165 = arith.mulf %127, %164 : vector<4x256xf32>
    %c0_102 = arith.constant 0 : index
    %c0_103 = arith.constant 0 : index
    %166 = vector.load %arg10[%c0_102, %c0_103] : memref<256x64xbf16, #tpu.memory_space<vmem>>, vector<256x64xbf16>
    %167 = arith.truncf %165 : vector<4x256xf32> to vector<4x256xbf16>
    %cst_104 = arith.constant dense<0.000000e+00> : vector<4x64xf32>
    %168 = tpu.matmul %167, %166, %cst_104 {dimension_numbers = #tpu.dot_dimension_numbers<[1], [0], [0], [1], [0, 0, 1, 1], [], []>} : vector<4x256xbf16>, vector<256x64xbf16>, vector<4x64xf32> -> vector<4x64xf32>
    %169 = vector.broadcast %11 : vector<1x64xf32> to vector<4x64xf32>
    %170 = arith.addf %168, %169 : vector<4x64xf32>
    %171 = arith.addf %119, %170 : vector<4x64xf32>
    %cst_105 = arith.constant dense<0.000000e+00> : vector<4xf32>
    %172 = vector.multi_reduction <add>, %171, %cst_105 [1] : vector<4x64xf32> to vector<4xf32>
    %173 = vector.shape_cast %172 : vector<4xf32> to vector<4x1xf32>
    %cst_106 = arith.constant 6.400000e+01 : f32
    %174 = vector.broadcast %cst_106 : f32 to vector<4x1xf32>
    %175 = arith.divf %173, %174 : vector<4x1xf32>
    %176 = vector.broadcast %175 : vector<4x1xf32> to vector<4x64xf32>
    %177 = arith.subf %171, %176 : vector<4x64xf32>
    %178 = arith.mulf %177, %177 : vector<4x64xf32>
    %cst_107 = arith.constant dense<0.000000e+00> : vector<4xf32>
    %179 = vector.multi_reduction <add>, %178, %cst_107 [1] : vector<4x64xf32> to vector<4xf32>
    %180 = vector.shape_cast %179 : vector<4xf32> to vector<4x1xf32>
    %cst_108 = arith.constant 6.400000e+01 : f32
    %181 = vector.broadcast %cst_108 : f32 to vector<4x1xf32>
    %182 = arith.divf %180, %181 : vector<4x1xf32>
    %183 = vector.broadcast %175 : vector<4x1xf32> to vector<4x64xf32>
    %184 = arith.subf %171, %183 : vector<4x64xf32>
    %cst_109 = arith.constant 9.99999974E-6 : f32
    %185 = vector.broadcast %cst_109 : f32 to vector<4x1xf32>
    %186 = arith.addf %182, %185 : vector<4x1xf32>
    %187 = math.rsqrt %186 : vector<4x1xf32>
    %188 = vector.broadcast %187 : vector<4x1xf32> to vector<4x64xf32>
    %189 = arith.mulf %184, %188 : vector<4x64xf32>
    %190 = vector.broadcast %9 : vector<1x64xf32> to vector<4x64xf32>
    %191 = arith.mulf %189, %190 : vector<4x64xf32>
    %192 = vector.broadcast %10 : vector<1x64xf32> to vector<4x64xf32>
    %193 = arith.addf %191, %192 : vector<4x64xf32>
    %c0_110 = arith.constant 0 : index
    %c0_111 = arith.constant 0 : index
    %c0_112 = arith.constant 0 : index
    %194 = vector.load %arg3[%c0_110, %c0_111, %c0_112] : memref<1x4x1xf32, #tpu.memory_space<vmem>>, vector<1x4x1xf32>
    %195 = vector.shape_cast %194 : vector<1x4x1xf32> to vector<4x1xf32>
    %196 = vector.broadcast %195 : vector<4x1xf32> to vector<4x64xf32>
    %197 = arith.mulf %193, %196 : vector<4x64xf32>
    %c0_113 = arith.constant 0 : index
    %c0_114 = arith.constant 0 : index
    %c0_115 = arith.constant 0 : index
    %198 = vector.load %arg11[%c0_113, %c0_114, %c0_115] : memref<1x4x64xf32, #tpu.memory_space<vmem>>, vector<1x4x64xf32>
    %199 = vector.shape_cast %198 : vector<1x4x64xf32> to vector<4x64xf32>
    %200 = vector.shape_cast %197 : vector<4x64xf32> to vector<1x4x64xf32>
    tpu.vector_store %arg11[%c0_113, %c0_114, %c0_115], %200 {strides = array<i32>} : memref<1x4x64xf32, #tpu.memory_space<vmem>>, vector<1x4x64xf32>,
    return
  }
  func.func @transform_0(%arg0: i32) -> (i32, i32, i32) {
    %c0_i32 = arith.constant 0 : i32
    %c0_i32_0 = arith.constant 0 : i32
    %c0_i32_1 = arith.constant 0 : i32
    return %arg0, %c0_i32, %c0_i32_0 : i32, i32, i32
  }
  func.func @transform_1(%arg0: i32) -> (i32, i32, i32) {
    %c0_i32 = arith.constant 0 : i32
    %c0_i32_0 = arith.constant 0 : i32
    %c0_i32_1 = arith.constant 0 : i32
    return %arg0, %c0_i32, %c0_i32_0 : i32, i32, i32
  }
  func.func @transform_2(%arg0: i32) -> (i32, i32, i32) {
    %c0_i32 = arith.constant 0 : i32
    %c0_i32_0 = arith.constant 0 : i32
    %c0_i32_1 = arith.constant 0 : i32
    return %arg0, %c0_i32, %c0_i32_0 : i32, i32, i32
  }
  func.func @transform_3(%arg0: i32) -> (i32, i32, i32, i32) {
    %c0_i32 = arith.constant 0 : i32
    %c0_i32_0 = arith.constant 0 : i32
    %c0_i32_1 = arith.constant 0 : i32
    %c0_i32_2 = arith.constant 0 : i32
    %c0_i32_3 = arith.constant 0 : i32
    return %c0_i32, %c0_i32_0, %c0_i32_1, %c0_i32_2 : i32, i32, i32, i32
  }
  func.func @transform_4(%arg0: i32) -> (i32, i32, i32, i32) {
    %c0_i32 = arith.constant 0 : i32
    %c0_i32_0 = arith.constant 0 : i32
    %c0_i32_1 = arith.constant 0 : i32
    %c0_i32_2 = arith.constant 0 : i32
    %c0_i32_3 = arith.constant 0 : i32
    return %c0_i32, %c0_i32_0, %c0_i32_1, %c0_i32_2 : i32, i32, i32, i32
  }
  func.func @transform_5(%arg0: i32) -> (i32, i32, i32) {
    %c0_i32 = arith.constant 0 : i32
    %c0_i32_0 = arith.constant 0 : i32
    %c0_i32_1 = arith.constant 0 : i32
    %c0_i32_2 = arith.constant 0 : i32
    return %c0_i32, %c0_i32_0, %c0_i32_1 : i32, i32, i32
  }
  func.func @transform_6(%arg0: i32) -> (i32, i32) {
    %c0_i32 = arith.constant 0 : i32
    %c0_i32_0 = arith.constant 0 : i32
    %c0_i32_1 = arith.constant 0 : i32
    return %c0_i32, %c0_i32_0 : i32, i32
  }
  func.func @transform_7(%arg0: i32) -> (i32, i32) {
    %c0_i32 = arith.constant 0 : i32
    %c0_i32_0 = arith.constant 0 : i32
    %c0_i32_1 = arith.constant 0 : i32
    return %c0_i32, %c0_i32_0 : i32, i32
  }
  func.func @transform_8(%arg0: i32) -> (i32, i32) {
    %c0_i32 = arith.constant 0 : i32
    %c0_i32_0 = arith.constant 0 : i32
    %c0_i32_1 = arith.constant 0 : i32
    return %c0_i32, %c0_i32_0 : i32, i32
  }
  func.func @transform_9(%arg0: i32) -> (i32, i32) {
    %c0_i32 = arith.constant 0 : i32
    %c0_i32_0 = arith.constant 0 : i32
    %c0_i32_1 = arith.constant 0 : i32
    return %c0_i32, %c0_i32_0 : i32, i32
  }
  func.func @transform_10(%arg0: i32) -> (i32, i32, i32) {
    %c0_i32 = arith.constant 0 : i32
    %c0_i32_0 = arith.constant 0 : i32
    %c0_i32_1 = arith.constant 0 : i32
    return %arg0, %c0_i32, %c0_i32_0 : i32, i32, i32
  }
}

</mosaic_0001>

<llo_original>
// kernel: single_dhgcn_forward.3
$region0: #{single_dhgcn_forward.3}
  #allocation0 [shape = 'u32[]', space=smem, size = 0x4, offset = 0x4, fixed_abs, tag = 'smem constant byte address 0x4 - core index']
  #allocation1 [shape = 'u32[144,128]{1,0:T(1,128)}', space=vmem, size = 0x12000, scoped, tag = 'internal scratch']
  %s0 = inlined_call_operand.vmem [shape: bf16[4,32,32], index: 0, kind: input, shape index: {}]
  %s1 = inlined_call_operand.vmem [shape: f32[4,32,4], index: 1, kind: input, shape index: {}]
  %s2 = inlined_call_operand.vmem [shape: f32[4,2,64], index: 2, kind: input, shape index: {}]
  %s3 = inlined_call_operand.vmem [shape: bf16[4,32,64], index: 3, kind: input, shape index: {}]
  %s4 = inlined_call_operand.vmem [shape: bf16[4,3,64,64], index: 4, kind: input, shape index: {}]
  %s5 = inlined_call_operand.vmem [shape: f32[4,8,64], index: 5, kind: input, shape index: {}]
  %s6 = inlined_call_operand.vmem [shape: f32[4,2,64], index: 6, kind: output, shape index: {}]
  %s7 = sld [smem:[#allocation0]]
  $region57: #{single_dhgcn_forward.3} parent=0
    _
  %s9 = ssub.s32 1, %s7
  %s10 = scalar_select 0, %s9, %s7
  loop: start=0, step=1, limit=6
  $region2: #{single_dhgcn_forward.3} parent=0 // loop_pre_header
    _
  $region3: #{single_dhgcn_forward.3} parent=0 // loop_header
    %s12 = sphi 0, %s16
    %p13 = scmp.ge.s32.totalorder %s12, 6
    %s22 = sphi 0, %s24
    %s25 = sphi 0, %s22
    %s26 = sphi 0, %s25
    %s42 = sphi 0, %s26
    %s48 = sphi 0, %s50
    %s51 = sphi 0, %s48
    %s52 = sphi 0, %s51
    %s68 = sphi 0, %s52
    %s74 = sphi 0, %s76
    %s77 = sphi 0, %s74
    %s78 = sphi 0, %s77
    %s94 = sphi 0, %s78
    %s100 = sphi 0, %s102
    %s103 = sphi 0, %s100
    %s104 = sphi 0, %s103
    %s120 = sphi 0, %s104
    %s126 = sphi 0, %s128
    %s129 = sphi 0, %s126
    %s130 = sphi 0, %s129
    %s146 = sphi 0, %s130
    %s152 = sphi 0, %s154
    %s155 = sphi 0, %s152
    %s156 = sphi 0, %s155
    %s172 = sphi 0, %s156
    %s178 = sphi 0, %s180
    %s181 = sphi 0, %s178
    %s182 = sphi 0, %s181
    %s198 = sphi 0, %s182
  $region4: #{single_dhgcn_forward.3} parent=0 // loop_header_branch
    %15 = sbr.rel (%p13) target = $region8
  $region5: #{single_dhgcn_forward.3} parent=0 // loop_body
    %s17 = ssub.s32 %s12, 1
    %s18 = ssub.s32 %s12, 2
    %s19 = sadd.s32 %s12, 1
    %s20 = ssub.s32 %s12, %s19
    %p21 = scmp.eq.s32.totalorder %s20, 0
    %s23 = sadd.s32 %s22, 1
    %s24 = scalar_select %p21, %s22, %s23
    %p27 = pneg %p21
    %p28 = scmp.eq.s32.totalorder %s12, 3
    %p29 = por %p27, %p28
    %p30 = scmp.ne.s32.totalorder %s22, %s25
    %p31 = scmp.eq.s32.totalorder %s12, 0
    %p32 = por %p30, %p31
    %p33 = scmp.ne.s32.totalorder %s22, %s25
    %p34 = scmp.eq.s32.totalorder %s17, 3
    %p35 = por %p33, %p34
    %p36 = scmp.ne.s32.totalorder %s25, %s26
    %p37 = scmp.eq.s32.totalorder %s17, 0
    %p38 = por %p36, %p37
    %p39 = scmp.ne.s32.totalorder %s25, %s26
    %p40 = scmp.eq.s32.totalorder %s18, 3
    %p41 = por %p39, %p40
    %p43 = scmp.ne.s32.totalorder %s26, %s42
    %p44 = scmp.eq.s32.totalorder %s18, 0
    %p45 = por %p43, %p44
    %s46 = ssub.s32 %s12, %s19
    %p47 = scmp.eq.s32.totalorder %s46, 0
    %s49 = sadd.s32 %s48, 1
    %s50 = scalar_select %p47, %s48, %s49
    %p53 = pneg %p47
    %p54 = scmp.eq.s32.totalorder %s12, 3
    %p55 = por %p53, %p54
    %p56 = scmp.ne.s32.totalorder %s48, %s51
    %p57 = scmp.eq.s32.totalorder %s12, 0
    %p58 = por %p56, %p57
    %p59 = scmp.ne.s32.totalorder %s48, %s51
    %p60 = scmp.eq.s32.totalorder %s17, 3
    %p61 = por %p59, %p60
    %p62 = scmp.ne.s32.totalorder %s51, %s52
    %p63 = scmp.eq.s32.totalorder %s17, 0
    %p64 = por %p62, %p63
    %p65 = scmp.ne.s32.totalorder %s51, %s52
    %p66 = scmp.eq.s32.totalorder %s18, 3
    %p67 = por %p65, %p66
    %p69 = scmp.ne.s32.totalorder %s52, %s68
    %p70 = scmp.eq.s32.totalorder %s18, 0
    %p71 = por %p69, %p70
    %s72 = ssub.s32 %s12, %s19
    %p73 = scmp.eq.s32.totalorder %s72, 0
    %s75 = sadd.s32 %s74, 1
    %s76 = scalar_select %p73, %s74, %s75
    %p79 = pneg %p73
    %p80 = scmp.eq.s32.totalorder %s12, 3
    %p81 = por %p79, %p80
    %p82 = scmp.ne.s32.totalorder %s74, %s77
    %p83 = scmp.eq.s32.totalorder %s12, 0
    %p84 = por %p82, %p83
    %p85 = scmp.ne.s32.totalorder %s74, %s77
    %p86 = scmp.eq.s32.totalorder %s17, 3
    %p87 = por %p85, %p86
    %p88 = scmp.ne.s32.totalorder %s77, %s78
    %p89 = scmp.eq.s32.totalorder %s17, 0
    %p90 = por %p88, %p89
    %p91 = scmp.ne.s32.totalorder %s77, %s78
    %p92 = scmp.eq.s32.totalorder %s18, 3
    %p93 = por %p91, %p92
    %p95 = scmp.ne.s32.totalorder %s78, %s94
    %p96 = scmp.eq.s32.totalorder %s18, 0
    %p97 = por %p95, %p96
    %s98 = ssub.s32 %s12, %s19
    %p99 = scmp.eq.s32.totalorder %s98, 0
    %s101 = sadd.s32 %s100, 1
    %s102 = scalar_select %p99, %s100, %s101
    %p105 = pneg %p99
    %p106 = scmp.eq.s32.totalorder %s12, 3
    %p107 = por %p105, %p106
    %p108 = scmp.ne.s32.totalorder %s100, %s103
    %p109 = scmp.eq.s32.totalorder %s12, 0
    %p110 = por %p108, %p109
    %p111 = scmp.ne.s32.totalorder %s100, %s103
    %p112 = scmp.eq.s32.totalorder %s17, 3
    %p113 = por %p111, %p112
    %p114 = scmp.ne.s32.totalorder %s103, %s104
    %p115 = scmp.eq.s32.totalorder %s17, 0
    %p116 = por %p114, %p115
    %p117 = scmp.ne.s32.totalorder %s103, %s104
    %p118 = scmp.eq.s32.totalorder %s18, 3
    %p119 = por %p117, %p118
    %p121 = scmp.ne.s32.totalorder %s104, %s120
    %p122 = scmp.eq.s32.totalorder %s18, 0
    %p123 = por %p121, %p122
    %s124 = ssub.s32 %s12, %s19
    %p125 = scmp.eq.s32.totalorder %s124, 0
    %s127 = sadd.s32 %s126, 1
    %s128 = scalar_select %p125, %s126, %s127
    %p131 = pneg %p125
    %p132 = scmp.eq.s32.totalorder %s12, 3
    %p133 = por %p131, %p132
    %p134 = scmp.ne.s32.totalorder %s126, %s129
    %p135 = scmp.eq.s32.totalorder %s12, 0
    %p136 = por %p134, %p135
    %p137 = scmp.ne.s32.totalorder %s126, %s129
    %p138 = scmp.eq.s32.totalorder %s17, 3
    %p139 = por %p137, %p138
    %p140 = scmp.ne.s32.totalorder %s129, %s130
    %p141 = scmp.eq.s32.totalorder %s17, 0
    %p142 = por %p140, %p141
    %p143 = scmp.ne.s32.totalorder %s129, %s130
    %p144 = scmp.eq.s32.totalorder %s18, 3
    %p145 = por %p143, %p144
    %p147 = scmp.ne.s32.totalorder %s130, %s146
    %p148 = scmp.eq.s32.totalorder %s18, 0
    %p149 = por %p147, %p148
    %s150 = ssub.s32 %s12, %s19
    %p151 = scmp.eq.s32.totalorder %s150, 0
    %s153 = sadd.s32 %s152, 1
    %s154 = scalar_select %p151, %s152, %s153
    %p157 = pneg %p151
    %p158 = scmp.eq.s32.totalorder %s12, 3
    %p159 = por %p157, %p158
    %p160 = scmp.ne.s32.totalorder %s152, %s155
    %p161 = scmp.eq.s32.totalorder %s12, 0
    %p162 = por %p160, %p161
    %p163 = scmp.ne.s32.totalorder %s152, %s155
    %p164 = scmp.eq.s32.totalorder %s17, 3
    %p165 = por %p163, %p164
    %p166 = scmp.ne.s32.totalorder %s155, %s156
    %p167 = scmp.eq.s32.totalorder %s17, 0
    %p168 = por %p166, %p167
    %p169 = scmp.ne.s32.totalorder %s155, %s156
    %p170 = scmp.eq.s32.totalorder %s18, 3
    %p171 = por %p169, %p170
    %p173 = scmp.ne.s32.totalorder %s156, %s172
    %p174 = scmp.eq.s32.totalorder %s18, 0
    %p175 = por %p173, %p174
    %s176 = ssub.s32 %s12, %s19
    %p177 = scmp.eq.s32.totalorder %s176, 0
    %s179 = sadd.s32 %s178, 1
    %s180 = scalar_select %p177, %s178, %s179
    %p183 = pneg %p177
    %p184 = scmp.eq.s32.totalorder %s12, 3
    %p185 = por %p183, %p184
    %p186 = scmp.ne.s32.totalorder %s178, %s181
    %p187 = scmp.eq.s32.totalorder %s12, 0
    %p188 = por %p186, %p187
    %p189 = scmp.ne.s32.totalorder %s178, %s181
    %p190 = scmp.eq.s32.totalorder %s17, 3
    %p191 = por %p189, %p190
    %p192 = scmp.ne.s32.totalorder %s181, %s182
    %p193 = scmp.eq.s32.totalorder %s17, 0
    %p194 = por %p192, %p193
    %p195 = scmp.ne.s32.totalorder %s181, %s182
    %p196 = scmp.eq.s32.totalorder %s18, 3
    %p197 = por %p195, %p196
    %p199 = scmp.ne.s32.totalorder %s182, %s198
    %p200 = scmp.eq.s32.totalorder %s18, 0
    %p201 = por %p199, %p200
    %p202 = scmp.le.s32.totalorder 1, %s12
    %p203 = scmp.lt.s32.totalorder %s12, 5
    %p204 = pnand %p202, %p203
    %p205 = pneg %p204
    // Predicated region
    $region9: #{single_dhgcn_forward.3} parent=5 // pred_check
      _
    $region10: #{single_dhgcn_forward.3} parent=5 // pred_check_branch
      %207 = sbr.rel (%p204) target = $region12
    $region11: #{single_dhgcn_forward.3} parent=5 // pred_region
      %s208 = ssub.s32 %s12, 1
    $region12: #{single_dhgcn_forward.3} parent=5 // pred_fallthru
      _
    %p209 = scmp.lt.s32.totalorder %s12, 4
    // Predicated region
    $region13: #{single_dhgcn_forward.3} parent=5 // pred_check
      %p210 = pneg %p209
    $region14: #{single_dhgcn_forward.3} parent=5 // pred_check_branch
      %212 = sbr.rel (%p210) target = $region16
    $region15: #{single_dhgcn_forward.3} parent=5 // pred_region
      // Predicated region
      $region17: #{single_dhgcn_forward.3} parent=15 // pred_check
        %p213 = pneg %p32
      $region18: #{single_dhgcn_forward.3} parent=15 // pred_check_branch
        %215 = sbr.rel (%p213) target = $region20
      $region19: #{single_dhgcn_forward.3} parent=15 // pred_region
        %p216 = scmp.lt.s32.totalorder %s12, 3
        %s217 = scalar_select %p216, %s12, 3
        %s218 = smul.addr %s217, 4
        %s219 = smul.addr %s218, 4
        %s220 = scalar_lea.vmem %s0, %s219
      $region20: #{single_dhgcn_forward.3} parent=15 // pred_fallthru
        _
      // Predicated region
      $region21: #{single_dhgcn_forward.3} parent=15 // pred_check
        %p221 = pneg %p58
      $region22: #{single_dhgcn_forward.3} parent=15 // pred_check_branch
        %223 = sbr.rel (%p221) target = $region24
      $region23: #{single_dhgcn_forward.3} parent=15 // pred_region
        %p224 = scmp.lt.s32.totalorder %s12, 3
        %s225 = scalar_select %p224, %s12, 3
        %s226 = smul.addr %s225, 4
        %s227 = smul.addr %s226, 8
        %s228 = scalar_lea.vmem %s1, %s227
      $region24: #{single_dhgcn_forward.3} parent=15 // pred_fallthru
        _
      // Predicated region
      $region25: #{single_dhgcn_forward.3} parent=15 // pred_check
        %p229 = pneg %p84
      $region26: #{single_dhgcn_forward.3} parent=15 // pred_check_branch
        %231 = sbr.rel (%p229) target = $region28
      $region27: #{single_dhgcn_forward.3} parent=15 // pred_region
        %p232 = scmp.lt.s32.totalorder %s12, 3
        %s233 = scalar_select %p232, %s12, 3
        %s234 = smul.addr %s233, 2
        %s235 = scalar_lea.vmem %s2, %s234
      $region28: #{single_dhgcn_forward.3} parent=15 // pred_fallthru
        _
      // Predicated region
      $region29: #{single_dhgcn_forward.3} parent=15 // pred_check
        %p236 = pneg %p110
      $region30: #{single_dhgcn_forward.3} parent=15 // pred_check_branch
        %238 = sbr.rel (%p236) target = $region32
      $region31: #{single_dhgcn_forward.3} parent=15 // pred_region
        %p239 = scmp.lt.s32.totalorder %s12, 3
        %s240 = scalar_select %p239, %s12, 3
        %s241 = smul.addr %s240, 4
        %s242 = smul.addr %s241, 4
        %s243 = scalar_lea.vmem %s3, %s242
      $region32: #{single_dhgcn_forward.3} parent=15 // pred_fallthru
        _
      // Predicated region
      $region33: #{single_dhgcn_forward.3} parent=15 // pred_check
        %p244 = pneg %p136
      $region34: #{single_dhgcn_forward.3} parent=15 // pred_check_branch
        %246 = sbr.rel (%p244) target = $region36
      $region35: #{single_dhgcn_forward.3} parent=15 // pred_region
        %p247 = scmp.lt.s32.totalorder %s12, 3
        %s248 = scalar_select %p247, %s12, 3
        %s249 = smul.addr %s248, 24
        %s250 = smul.addr %s249, 4
        %s251 = scalar_lea.vmem %s4, %s250
      $region36: #{single_dhgcn_forward.3} parent=15 // pred_fallthru
        _
      // Predicated region
      $region37: #{single_dhgcn_forward.3} parent=15 // pred_check
        %p252 = pneg %p162
      $region38: #{single_dhgcn_forward.3} parent=15 // pred_check_branch
        %254 = sbr.rel (%p252) target = $region40
      $region39: #{single_dhgcn_forward.3} parent=15 // pred_region
        %p255 = scmp.lt.s32.totalorder %s12, 3
        %s256 = scalar_select %p255, %s12, 3
        %s257 = smul.addr %s256, 8
        %s258 = scalar_lea.vmem %s5, %s257
      $region40: #{single_dhgcn_forward.3} parent=15 // pred_fallthru
        _
    $region16: #{single_dhgcn_forward.3} parent=5 // pred_fallthru
      _
    %p259 = scmp.le.s32.totalorder 1, %s12
    %p260 = scmp.lt.s32.totalorder %s12, 5
    %p261 = pnand %p259, %p260
    %p262 = pneg %p261
    // Predicated region
    $region41: #{single_dhgcn_forward.3} parent=5 // pred_check
      _
    $region42: #{single_dhgcn_forward.3} parent=5 // pred_check_branch
      %264 = sbr.rel (%p261) target = $region44
    $region43: #{single_dhgcn_forward.3} parent=5 // pred_region
      %s265 = ssub.s32 %s12, 1
      %p266 = scmp.lt.s32.totalorder %s17, 3
      %s267 = scalar_select %p266, %s17, 3
      %s268 = smul.addr %s267, 4
      %s269 = smul.addr %s268, 4
      %s270 = scalar_lea.vmem %s0, %s269
      %p271 = pneg %p38
      %p272 = pneg %p35
      %p273 = scmp.lt.s32.totalorder %s17, 3
      %s274 = scalar_select %p273, %s17, 3
      %s275 = smul.addr %s274, 4
      %s276 = smul.addr %s275, 8
      %s277 = scalar_lea.vmem %s1, %s276
      %p278 = pneg %p64
      %p279 = pneg %p61
      %p280 = scmp.lt.s32.totalorder %s17, 3
      %s281 = scalar_select %p280, %s17, 3
      %s282 = smul.addr %s281, 2
      %s283 = scalar_lea.vmem %s2, %s282
      %p284 = pneg %p90
      %p285 = pneg %p87
      %p286 = scmp.lt.s32.totalorder %s17, 3
      %s287 = scalar_select %p286, %s17, 3
      %s288 = smul.addr %s287, 4
      %s289 = smul.addr %s288, 4
      %s290 = scalar_lea.vmem %s3, %s289
      %p291 = pneg %p116
      %p292 = pneg %p113
      %p293 = scmp.lt.s32.totalorder %s17, 3
      %s294 = scalar_select %p293, %s17, 3
      %s295 = smul.addr %s294, 24
      %s296 = smul.addr %s295, 4
      %s297 = scalar_lea.vmem %s4, %s296
      %p298 = pneg %p142
      %p299 = pneg %p139
      %p300 = scmp.lt.s32.totalorder %s17, 3
      %s301 = scalar_select %p300, %s17, 3
      %s302 = smul.addr %s301, 8
      %s303 = scalar_lea.vmem %s5, %s302
      %p304 = pneg %p168
      %p305 = pneg %p165
      %p306 = pneg %p194
      %p307 = pneg %p191
      %p308 = scmp.lt.s32.totalorder %s17, 3
      %s309 = scalar_select %p308, %s17, 3
      %s310 = smul.addr %s309, 2
      %s311 = scalar_lea.vmem %s6, %s310
      %p312 = scmp.lt.s32.totalorder %s17, 3
      %s313 = scalar_select %p312, %s17, 3
      %s314 = smul.addr %s313, 4
      %s315 = smul.addr %s314, 4
      %s316 = scalar_lea.vmem %s0, %s315
      %p317 = scmp.lt.s32.totalorder %s17, 3
      %s318 = scalar_select %p317, %s17, 3
      %s319 = smul.addr %s318, 4
      %s320 = smul.addr %s319, 8
      %s321 = scalar_lea.vmem %s1, %s320
      %p322 = scmp.lt.s32.totalorder %s17, 3
      %s323 = scalar_select %p322, %s17, 3
      %s324 = smul.addr %s323, 2
      %s325 = scalar_lea.vmem %s2, %s324
      %p326 = scmp.lt.s32.totalorder %s17, 3
      %s327 = scalar_select %p326, %s17, 3
      %s328 = smul.addr %s327, 4
      %s329 = smul.addr %s328, 4
      %s330 = scalar_lea.vmem %s3, %s329
      %p331 = scmp.lt.s32.totalorder %s17, 3
      %s332 = scalar_select %p331, %s17, 3
      %s333 = smul.addr %s332, 24
      %s334 = smul.addr %s333, 4
      %s335 = scalar_lea.vmem %s4, %s334
      %p336 = scmp.lt.s32.totalorder %s17, 3
      %s337 = scalar_select %p336, %s17, 3
      %s338 = smul.addr %s337, 8
      %s339 = scalar_lea.vmem %s5, %s338
      %p340 = scmp.lt.s32.totalorder %s17, 3
      %s341 = scalar_select %p340, %s17, 3
      %s342 = smul.addr %s341, 2
      %s343 = scalar_lea.vmem %s6, %s342
      %v345 = vld [vmem:[%s339] sm:$0xff]
      %v346 = vld [vmem:[%s325] sm:$0x3]
      %v347 = vld [vmem:[%s316] sm:$0xf]
      %v348 = vld [vmem:[%s316 + $0x4] sm:$0xf]
      %v349 = vld [vmem:[%s316 + $0x8] sm:$0xf]
      %v350 = vld [vmem:[%s316 + $0xc] sm:$0xf]
      %v351 = vld [vmem:[%s330] sm:$0xf]
      %v352 = vld [vmem:[%s330 + $0x4] sm:$0xf]
      %v353 = vld [vmem:[%s330 + $0x8] sm:$0xf]
      %v354 = vld [vmem:[%s330 + $0xc] sm:$0xf]
      %v355 = vlaneseq
      %v356 = vshrl.u32 %v355, 7
      %v357 = vsub.s32 0, %v356
      %v358 = vrot.slane %v345, %v357
      %v363 = vunpack.c.l.b16 %v347
      %v364 = vunpack.c.l.b16 %v348
      %v365 = vunpack.c.l.b16 %v349
      %v366 = vunpack.c.l.b16 %v350
      %v367 = vpack.c.b16 %v364, %v363
      %v368 = vpack.c.b16 %v366, %v365
      %v373 = vunpack.c.l.b16 %v351
      %v374 = vunpack.c.l.b16 %v352
      %v375 = vunpack.c.l.b16 %v353
      %v376 = vunpack.c.l.b16 %v354
      %v377 = vpack.c.b16 %v374, %v373
      %v378 = vpack.c.b16 %v376, %v375
      %vm381 = vcmask 261120
      %v383 = vsel %vm381, %v367, 0
      %v386 = vsel %vm381, %v368, 0
      %388 = vmatprep.subr.bf16.mxu0 0
      %389 = vmatpush1.bf16.msra.mxu0 %v377
      %390 = vmatprep.subr.bf16.mxu0 0
      %391 = vmatpush1.bf16.msra.mxu0 %v378
      %392 = vmatprep.subr.bf16.mxu0 0
      %393 = vmatpush1.bf16.msra.mxu0 0
      %394 = vmatprep.subr.bf16.mxu0 0
      %395 = vmatpush1.bf16.msra.mxu0 0
      %396 = vmatprep.subr.bf16.mxu0 0
      %397 = vmatpush1.bf16.msra.mxu0 0
      %398 = vmatprep.subr.bf16.mxu0 0
      %399 = vmatpush1.bf16.msra.mxu0 0
      %400 = vmatprep.subr.bf16.mxu0 0
      %401 = vmatpush1.bf16.msra.mxu0 0
      %402 = vmatprep.subr.bf16.mxu0 0
      %403 = vmatpush1.bf16.msra.mxu0 0
      %404 = vmatprep.subr.bf16.mxu0 0
      %405 = vmatpush1.bf16.msra.mxu0 0
      %406 = vmatprep.subr.bf16.mxu0 0
      %407 = vmatpush1.bf16.msra.mxu0 0
      %408 = vmatprep.subr.bf16.mxu0 0
      %409 = vmatpush1.bf16.msra.mxu0 0
      %410 = vmatprep.subr.bf16.mxu0 0
      %411 = vmatpush1.bf16.msra.mxu0 0
      %412 = vmatprep.subr.bf16.mxu0 0
      %413 = vmatpush1.bf16.msra.mxu0 0
      %414 = vmatprep.subr.bf16.mxu0 0
      %415 = vmatpush1.bf16.msra.mxu0 0
      %416 = vmatprep.subr.bf16.mxu0 0
      %417 = vmatpush1.bf16.msra.mxu0 0
      %418 = vmatprep.subr.bf16.mxu0 0
      %419 = vmatpush1.bf16.msra.mxu0 0
      %420 = vmatprep.mubr.bf16.mxu0 0
      %421 = vmatmul.mubr.bf16.gmra.mrb[0].mxu0 %v383
      %v422 = vpop.f32.mrb[0].mxu0
      %v423 = vadd.f32 %v358, %v422
      %v424 = vpop.f32.mrb[0].mxu0
      %v425 = vpop.f32.mrb[0].mxu0
      %v426 = vadd.f32 %v358, %v425
      %v427 = vpop.f32.mrb[0].mxu0
      %428 = vmatprep.mubr.bf16.mxu0 0
      %429 = vmatmul.mubr.bf16.gmra.mrb[0].mxu0 %v386
      %v430 = vpop.f32.mrb[0].mxu0
      %v431 = vadd.f32 %v358, %v430
      %v432 = vpop.f32.mrb[0].mxu0
      %v433 = vpop.f32.mrb[0].mxu0
      %v434 = vadd.f32 %v358, %v433
      %v435 = vpop.f32.mrb[0].mxu0
      %436 = vdwg.mxu0
      %v437 = vld [vmem:[%s335] sm:$0xf]
      %v438 = vld [vmem:[%s335 + $0x4] sm:$0xf]
      %v439 = vld [vmem:[%s335 + $0x8] sm:$0xf]
      %v440 = vld [vmem:[%s335 + $0xc] sm:$0xf]
      %v441 = vld [vmem:[%s335 + $0x10] sm:$0xf]
      %v442 = vld [vmem:[%s335 + $0x14] sm:$0xf]
      %v443 = vld [vmem:[%s335 + $0x18] sm:$0xf]
      %v444 = vld [vmem:[%s335 + $0x1c] sm:$0xf]
      %v445 = vpack.c.bf16 %v426, %v423
      %v446 = vpack.c.bf16 %v434, %v431
      %v447 = vlaneseq
      %v448 = vshrl.u32 %v447, 7
      %v449 = vsub.s32 1, %v448
      %v450 = vrot.slane %v345, %v449
      %v459 = vunpack.c.l.b16 %v437
      %v460 = vunpack.c.l.b16 %v438
      %v461 = vunpack.c.l.b16 %v439
      %v462 = vunpack.c.l.b16 %v440
      %v463 = vunpack.c.l.b16 %v441
      %v464 = vunpack.c.l.b16 %v442
      %v465 = vunpack.c.l.b16 %v443
      %v466 = vunpack.c.l.b16 %v444
      %v467 = vpack.c.b16 %v460, %v459
      %v468 = vpack.c.b16 %v462, %v461
      %v469 = vpack.c.b16 %v464, %v463
      %v470 = vpack.c.b16 %v466, %v465
      %vm475 = vcmask 523264
      %v477 = vsel %vm475, %v445, 0
      %v480 = vsel %vm475, %v446, 0
      %482 = vmatprep.subr.bf16.mxu0 0
      %483 = vmatpush1.bf16.msra.mxu0 %v467
      %484 = vmatprep.subr.bf16.mxu0 0
      %485 = vmatpush1.bf16.msra.mxu0 %v468
      %486 = vmatprep.subr.bf16.mxu0 0
      %487 = vmatpush1.bf16.msra.mxu0 %v469
      %488 = vmatprep.subr.bf16.mxu0 0
      %489 = vmatpush1.bf16.msra.mxu0 %v470
      %490 = vmatprep.subr.bf16.mxu0 0
      %491 = vmatpush1.bf16.msra.mxu0 0
      %492 = vmatprep.subr.bf16.mxu0 0
      %493 = vmatpush1.bf16.msra.mxu0 0
      %494 = vmatprep.subr.bf16.mxu0 0
      %495 = vmatpush1.bf16.msra.mxu0 0
      %496 = vmatprep.subr.bf16.mxu0 0
      %497 = vmatpush1.bf16.msra.mxu0 0
      %498 = vmatprep.subr.bf16.mxu0 0
      %499 = vmatpush1.bf16.msra.mxu0 0
      %500 = vmatprep.subr.bf16.mxu0 0
      %501 = vmatpush1.bf16.msra.mxu0 0
      %502 = vmatprep.subr.bf16.mxu0 0
      %503 = vmatpush1.bf16.msra.mxu0 0
      %504 = vmatprep.subr.bf16.mxu0 0
      %505 = vmatpush1.bf16.msra.mxu0 0
      %506 = vmatprep.subr.bf16.mxu0 0
      %507 = vmatpush1.bf16.msra.mxu0 0
      %508 = vmatprep.subr.bf16.mxu0 0
      %509 = vmatpush1.bf16.msra.mxu0 0
      %510 = vmatprep.subr.bf16.mxu0 0
      %511 = vmatpush1.bf16.msra.mxu0 0
      %512 = vmatprep.subr.bf16.mxu0 0
      %513 = vmatpush1.bf16.msra.mxu0 0
      %514 = vmatprep.mubr.bf16.mxu0 0
      %515 = vmatmul.mubr.bf16.gmra.mrb[0].mxu0 %v477
      %v516 = vpop.f32.mrb[0].mxu0
      %v517 = vadd.f32 %v450, %v516
      %v518 = vpop.f32.mrb[0].mxu0
      %v519 = vpop.f32.mrb[0].mxu0
      %v520 = vadd.f32 %v450, %v519
      %v521 = vpop.f32.mrb[0].mxu0
      %522 = vmatprep.mubr.bf16.mxu0 0
      %523 = vmatmul.mubr.bf16.gmra.mrb[0].mxu0 %v480
      %v524 = vpop.f32.mrb[0].mxu0
      %v525 = vadd.f32 %v450, %v524
      %v526 = vpop.f32.mrb[0].mxu0
      %v527 = vpop.f32.mrb[0].mxu0
      %v528 = vadd.f32 %v450, %v527
      %v529 = vpop.f32.mrb[0].mxu0
      %530 = vdwg.mxu0
      %s531 = scalar_lea.vmem %s335, 32
      %v532 = vld [vmem:[%s531] sm:$0xf]
      %v533 = vld [vmem:[%s531 + $0x4] sm:$0xf]
      %v534 = vld [vmem:[%s531 + $0x8] sm:$0xf]
      %v535 = vld [vmem:[%s531 + $0xc] sm:$0xf]
      %v536 = vld [vmem:[%s531 + $0x10] sm:$0xf]
      %v537 = vld [vmem:[%s531 + $0x14] sm:$0xf]
      %v538 = vld [vmem:[%s531 + $0x18] sm:$0xf]
      %v539 = vld [vmem:[%s531 + $0x1c] sm:$0xf]
      %v540 = vpack.c.bf16 %v346, %v346
      %v541 = vlaneseq
      %v542 = vshrl.u32 %v541, 7
      %v543 = vsub.s32 2, %v542
      %v544 = vrot.slane %v345, %v543
      %v553 = vunpack.c.l.b16 %v532
      %v554 = vunpack.c.l.b16 %v533
      %v555 = vunpack.c.l.b16 %v534
      %v556 = vunpack.c.l.b16 %v535
      %v557 = vunpack.c.l.b16 %v536
      %v558 = vunpack.c.l.b16 %v537
      %v559 = vunpack.c.l.b16 %v538
      %v560 = vunpack.c.l.b16 %v539
      %v561 = vpack.c.b16 %v554, %v553
      %v562 = vpack.c.b16 %v556, %v555
      %v563 = vpack.c.b16 %v558, %v557
      %v564 = vpack.c.b16 %v560, %v559
      %v570 = vsel %vm475, %v540, 0
      %572 = vmatprep.subr.bf16.mxu0 0
      %573 = vmatpush1.bf16.msra.mxu0 %v561
      %574 = vmatprep.subr.bf16.mxu0 0
      %575 = vmatpush1.bf16.msra.mxu0 %v562
      %576 = vmatprep.subr.bf16.mxu0 0
      %577 = vmatpush1.bf16.msra.mxu0 %v563
      %578 = vmatprep.subr.bf16.mxu0 0
      %579 = vmatpush1.bf16.msra.mxu0 %v564
      %580 = vmatprep.subr.bf16.mxu0 0
      %581 = vmatpush1.bf16.msra.mxu0 0
      %582 = vmatprep.subr.bf16.mxu0 0
      %583 = vmatpush1.bf16.msra.mxu0 0
      %584 = vmatprep.subr.bf16.mxu0 0
      %585 = vmatpush1.bf16.msra.mxu0 0
      %586 = vmatprep.subr.bf16.mxu0 0
      %587 = vmatpush1.bf16.msra.mxu0 0
      %588 = vmatprep.subr.bf16.mxu0 0
      %589 = vmatpush1.bf16.msra.mxu0 0
      %590 = vmatprep.subr.bf16.mxu0 0
      %591 = vmatpush1.bf16.msra.mxu0 0
      %592 = vmatprep.subr.bf16.mxu0 0
      %593 = vmatpush1.bf16.msra.mxu0 0
      %594 = vmatprep.subr.bf16.mxu0 0
      %595 = vmatpush1.bf16.msra.mxu0 0
      %596 = vmatprep.subr.bf16.mxu0 0
      %597 = vmatpush1.bf16.msra.mxu0 0
      %598 = vmatprep.subr.bf16.mxu0 0
      %599 = vmatpush1.bf16.msra.mxu0 0
      %600 = vmatprep.subr.bf16.mxu0 0
      %601 = vmatpush1.bf16.msra.mxu0 0
      %602 = vmatprep.subr.bf16.mxu0 0
      %603 = vmatpush1.bf16.msra.mxu0 0
      %604 = vmatprep.mubr.bf16.mxu0 0
      %605 = vmatmul.mubr.bf16.gmra.mrb[0].mxu0 %v570
      %v606 = vpop.f32.mrb[0].mxu0
      %v607 = vadd.f32 %v544, %v606
      %v608 = vpop.f32.mrb[0].mxu0
      %v609 = vpop.f32.mrb[0].mxu0
      %v610 = vpop.f32.mrb[0].mxu0
      %611 = vdwg.mxu0
      %v614 = vunpack.c.l.s4 1966171168
      %v615 = vunpack.c.0.s8 %v614
      %v616 = vlaneseq
      %v617 = vshrl.u32 %v616, 7
      %v618 = vsub.s32 %v615, %v617
      %v619 = vrot.slane %v607, %v618
      %v620 = vcombine.high %v619, %v619
      %v622 = vunpack.c.l.s4 1966171168
      %v623 = vunpack.c.0.s8 %v622
      %v624 = vlaneseq
      %v625 = vshrl.u32 %v624, 7
      %v626 = vsub.s32 %v623, %v625
      %v627 = vrot.slane %v619, %v626
      %v629 = vunpack.c.l.s4 1966171168
      %v630 = vunpack.c.0.s8 %v629
      %v631 = vlaneseq
      %v632 = vshrl.u32 %v631, 7
      %v633 = vsub.s32 %v630, %v632
      %v634 = vrot.slane %v620, %v633
      %v635 = vlaneseq
      %v636 = vshrl.u32 %v635, 7
      %v637 = vsub.s32 0, %v636
      %v638 = vrot.slane %v627, %v637
      %v639 = vlaneseq
      %v640 = vshrl.u32 %v639, 7
      %v641 = vsub.s32 0, %v640
      %v642 = vrot.slane %v634, %v641
      %v645 = vadd.f32 %v517, %v638
      %v646 = vadd.f32 %v520, %v638
      %v647 = vadd.f32 %v525, %v642
      %v648 = vadd.f32 %v528, %v642
      %vm649 = vcmp.ge.f32.partialorder %v645, 0.0
      %vm650 = vcmp.ge.f32.partialorder %v646, 0.0
      %vm651 = vcmp.ge.f32.partialorder %v647, 0.0
      %vm652 = vcmp.ge.f32.partialorder %v648, 0.0
      %v653 = vmul.f32 %v645, 0.01
      %v654 = vmul.f32 %v646, 0.01
      %v655 = vmul.f32 %v647, 0.01
      %v656 = vmul.f32 %v648, 0.01
      %v657 = vsel %vm649, %v645, %v653
      %v658 = vsel %vm650, %v646, %v654
      %v659 = vsel %vm651, %v647, %v655
      %v660 = vsel %vm652, %v648, %v656
      %v661 = vlaneseq
      %v662 = vshrl.u32 %v661, 7
      %v663 = vadd.s32 %v662, 8
      %v664 = vadd.s32 %v662, 16
      %v665 = vadd.s32 %v662, 24
      %v666 = vadd.s32 %v662, 32
      %v667 = vadd.s32 %v662, 40
      %v668 = vadd.s32 %v662, 48
      %v669 = vadd.s32 %v662, 56
      %v670 = vlaneseq
      %v671 = vand.u32 %v670, 127
      %v672 = vmul.u32 %v671, 16
      %vm673 = vcmp.ge.s32.totalorder %v662, %v672
      %vm674 = vcmp.ge.s32.totalorder %v663, %v672
      %vm675 = vcmp.ge.s32.totalorder %v664, %v672
      %vm676 = vcmp.ge.s32.totalorder %v665, %v672
      %vm677 = vcmp.ge.s32.totalorder %v666, %v672
      %vm678 = vcmp.ge.s32.totalorder %v667, %v672
      %vm679 = vcmp.ge.s32.totalorder %v668, %v672
      %vm680 = vcmp.ge.s32.totalorder %v669, %v672
      %v681 = vadd.s32 %v672, 16
      %vm682 = vcmp.lt.s32.totalorder %v662, %v681
      %vm683 = vcmp.lt.s32.totalorder %v663, %v681
      %vm684 = vcmp.lt.s32.totalorder %v664, %v681
      %vm685 = vcmp.lt.s32.totalorder %v665, %v681
      %vm686 = vcmp.lt.s32.totalorder %v666, %v681
      %vm687 = vcmp.lt.s32.totalorder %v667, %v681
      %vm688 = vcmp.lt.s32.totalorder %v668, %v681
      %vm689 = vcmp.lt.s32.totalorder %v669, %v681
      %vm690 = vmand %vm673, %vm682
      %vm691 = vmand %vm674, %vm683
      %vm692 = vmand %vm675, %vm684
      %vm693 = vmand %vm676, %vm685
      %vm694 = vmand %vm677, %vm686
      %vm695 = vmand %vm678, %vm687
      %vm696 = vmand %vm679, %vm688
      %vm697 = vmand %vm680, %vm689
      %v698 = vsel %vm690, 1, 0
      %v699 = vsel %vm691, 1, 0
      %v700 = vsel %vm692, 1, 0
      %v701 = vsel %vm693, 1, 0
      %v702 = vsel %vm694, 1, 0
      %v703 = vsel %vm695, 1, 0
      %v704 = vsel %vm696, 1, 0
      %v705 = vsel %vm697, 1, 0
      %v706 = vcvt.s32.f32 %v698
      %v707 = vcvt.s32.f32 %v699
      %v708 = vcvt.s32.f32 %v700
      %v709 = vcvt.s32.f32 %v701
      %v710 = vcvt.s32.f32 %v702
      %v711 = vcvt.s32.f32 %v703
      %v712 = vcvt.s32.f32 %v704
      %v713 = vcvt.s32.f32 %v705
      %v714 = vmul.u32 %v662, 16
      %vm715 = vcmp.ge.s32.totalorder %v671, %v714
      %v716 = vadd.s32 %v714, 16
      %vm717 = vcmp.lt.s32.totalorder %v671, %v716
      %vm718 = vmand %vm715, %vm717
      %v719 = vsel %vm718, 1, 0
      %v720 = vcvt.s32.f32 %v719
      %v721 = vlaneseq
      %v722 = vshrl.u32 %v721, 7
      %v723 = vsub.s32 5, %v722
      %v724 = vrot.slane %v345, %v723
      %v725 = vmul.f32 %v657, %v724
      %v726 = vmul.f32 %v658, %v724
      %v727 = vmul.f32 %v659, %v724
      %v728 = vmul.f32 %v660, %v724
      %v729 = vld [vmem:[%s321] sm:$0xff]
      %v730 = vld [vmem:[%s321 + $0x8] sm:$0xff]
      %v731 = vld [vmem:[%s321 + $0x10] sm:$0xff]
      %v732 = vld [vmem:[%s321 + $0x18] sm:$0xff]
      %v734 = vsel %vm475, %v725, 0
      %v737 = vsel %vm475, %v726, 0
      %v740 = vsel %vm475, %v727, 0
      %v743 = vsel %vm475, %v728, 0
      %745 = vmatprep.subr.mxu0 0.0
      %746 = vmatpush1.msra.mxu0 %v706
      %747 = vmatprep.subr.mxu0 0.0
      %748 = vmatpush1.msra.mxu0 %v707
      %749 = vmatprep.subr.mxu0 0.0
      %750 = vmatpush1.msra.mxu0 %v708
      %751 = vmatprep.subr.mxu0 0.0
      %752 = vmatpush1.msra.mxu0 %v709
      %753 = vmatprep.subr.mxu0 0.0
      %754 = vmatpush1.msra.mxu0 %v710
      %755 = vmatprep.subr.mxu0 0.0
      %756 = vmatpush1.msra.mxu0 %v711
      %757 = vmatprep.subr.mxu0 0.0
      %758 = vmatpush1.msra.mxu0 %v712
      %759 = vmatprep.subr.mxu0 0.0
      %760 = vmatpush1.msra.mxu0 %v713
      %761 = vmatprep.subr.mxu0 0.0
      %762 = vmatpush1.msra.mxu0 0.0
      %763 = vmatprep.subr.mxu0 0.0
      %764 = vmatpush1.msra.mxu0 0.0
      %765 = vmatprep.subr.mxu0 0.0
      %766 = vmatpush1.msra.mxu0 0.0
      %767 = vmatprep.subr.mxu0 0.0
      %768 = vmatpush1.msra.mxu0 0.0
      %769 = vmatprep.subr.mxu0 0.0
      %770 = vmatpush1.msra.mxu0 0.0
      %771 = vmatprep.subr.mxu0 0.0
      %772 = vmatpush1.msra.mxu0 0.0
      %773 = vmatprep.subr.mxu0 0.0
      %774 = vmatpush1.msra.mxu0 0.0
      %775 = vmatprep.subr.mxu0 0.0
      %776 = vmatpush1.msra.mxu0 0.0
      %777 = vmatprep.subr.mxu0 0.0
      %778 = vmatpush1.msra.mxu0 0.0
      %779 = vmatprep.subr.mxu0 0.0
      %780 = vmatpush1.msra.mxu0 0.0
      %781 = vmatprep.subr.mxu0 0.0
      %782 = vmatpush1.msra.mxu0 0.0
      %783 = vmatprep.subr.mxu0 0.0
      %784 = vmatpush1.msra.mxu0 0.0
      %785 = vmatprep.subr.mxu0 0.0
      %786 = vmatpush1.msra.mxu0 0.0
      %787 = vmatprep.subr.mxu0 0.0
      %788 = vmatpush1.msra.mxu0 0.0
      %789 = vmatprep.subr.mxu0 0.0
      %790 = vmatpush1.msra.mxu0 0.0
      %791 = vmatprep.subr.mxu0 0.0
      %792 = vmatpush1.msra.mxu0 0.0
      %793 = vmatprep.subr.mxu0 0.0
      %794 = vmatpush1.msra.mxu0 0.0
      %795 = vmatprep.subr.mxu0 0.0
      %796 = vmatpush1.msra.mxu0 0.0
      %797 = vmatprep.subr.mxu0 0.0
      %798 = vmatpush1.msra.mxu0 0.0
      %799 = vmatprep.subr.mxu0 0.0
      %800 = vmatpush1.msra.mxu0 0.0
      %801 = vmatprep.subr.mxu0 0.0
      %802 = vmatpush1.msra.mxu0 0.0
      %803 = vmatprep.subr.mxu0 0.0
      %804 = vmatpush1.msra.mxu0 0.0
      %805 = vmatprep.subr.mxu0 0.0
      %806 = vmatpush1.msra.mxu0 0.0
      %807 = vmatprep.subr.mxu0 0.0
      %808 = vmatpush1.msra.mxu0 0.0
      %809 = vmatprep.mubr.f32.mxu0 0.0
      %810 = vmatmul.mubr.f32.gmra.mrb[0].mxu0 %v734
      %v811 = vpop.f32.mrb[0].mxu0
      %v812 = vadd.f32 %v729, %v811
      %v813 = vpop.f32.mrb[0].mxu0
      %814 = vmatprep.mubr.f32.mxu0 0.0
      %815 = vmatmul.mubr.f32.gmra.mrb[0].mxu0 %v737
      %v816 = vpop.f32.mrb[0].mxu0
      %v817 = vadd.f32 %v730, %v816
      %v818 = vpop.f32.mrb[0].mxu0
      %819 = vmatprep.mubr.f32.mxu0 0.0
      %820 = vmatmul.mubr.f32.gmra.mrb[0].mxu0 %v740
      %v821 = vpop.f32.mrb[0].mxu0
      %v822 = vadd.f32 %v731, %v821
      %v823 = vpop.f32.mrb[0].mxu0
      %824 = vmatprep.mubr.f32.mxu0 0.0
      %825 = vmatmul.mubr.f32.gmra.mrb[0].mxu0 %v743
      %v826 = vpop.f32.mrb[0].mxu0
      %v827 = vadd.f32 %v732, %v826
      %v828 = vpop.f32.mrb[0].mxu0
      %829 = vdwg.mxu0
      %vm830 = vcmask 31744
      %v831 = vsel %vm830, %v812, -inf
      %v832 = vsel %vm830, %v817, -inf
      %v833 = vmax.f32 %v831, %v832
      %v834 = vrot.slane %v833, 4
      %v835 = vmax.f32 %v833, %v834
      %v836 = vrot.slane %v835, 2
      %v837 = vmax.f32 %v835, %v836
      %v838 = vrot.slane %v837, 1
      %v839 = vmax.f32 %v837, %v838
      %v840 = vsel %vm830, %v822, -inf
      %v841 = vsel %vm830, %v827, -inf
      %v842 = vmax.f32 %v840, %v841
      %v843 = vrot.slane %v842, 4
      %v844 = vmax.f32 %v842, %v843
      %v845 = vrot.slane %v844, 2
      %v846 = vmax.f32 %v844, %v845
      %v847 = vrot.slane %v846, 1
      %v848 = vmax.f32 %v846, %v847
      %v849 = vsub.f32 %v812, %v839
      %v850 = vsub.f32 %v817, %v839
      %v851 = vsub.f32 %v822, %v848
      %v852 = vsub.f32 %v827, %v848
      %v853 = vmul.f32 %v849, 1.442695
      %v854 = vpow.pop %v853
      %v855 = vmul.f32 %v850, 1.442695
      %v856 = vpow.pop %v855
      %v857 = vmul.f32 %v851, 1.442695
      %v858 = vpow.pop %v857
      %v859 = vmul.f32 %v852, 1.442695
      %v860 = vpow.pop %v859
      %v861 = vsel %vm830, %v854, 0.0
      %v862 = vsel %vm830, %v856, 0.0
      %v863 = vadd.f32 %v861, %v862
      %v864 = vrot.slane %v863, 4
      %v865 = vadd.f32 %v863, %v864
      %v866 = vrot.slane %v865, 2
      %v867 = vadd.f32 %v865, %v866
      %v868 = vrot.slane %v867, 1
      %v869 = vadd.f32 %v867, %v868
      %v870 = vsel %vm830, %v858, 0.0
      %v871 = vsel %vm830, %v860, 0.0
      %v872 = vadd.f32 %v870, %v871
      %v873 = vrot.slane %v872, 4
      %v874 = vadd.f32 %v872, %v873
      %v875 = vrot.slane %v874, 2
      %v876 = vadd.f32 %v874, %v875
      %v877 = vrot.slane %v876, 1
      %v878 = vadd.f32 %v876, %v877
      %v879 = vrcp.pop %v869
      %v880 = vmul.f32 %v854, %v879
      %v881 = vmul.f32 %v856, %v879
      %v882 = vrcp.pop %v878
      %v883 = vmul.f32 %v858, %v882
      %v884 = vmul.f32 %v860, %v882
      %v886 = vsel %vm830, %v880, 0
      %v889 = vsel %vm830, %v881, 0
      %v892 = vsel %vm830, %v883, 0
      %v895 = vsel %vm830, %v884, 0
      %vm897 = vcmask 1043456
      %v899 = vsel %vm897, %v720, 0
      %901 = vmatprep.subr.mxu0 0.0
      %902 = vmatpush1.msra.mxu0 %v899
      %903 = vmatprep.subr.mxu0 0.0
      %904 = vmatpush1.msra.mxu0 0.0
      %905 = vmatprep.subr.mxu0 0.0
      %906 = vmatpush1.msra.mxu0 0.0
      %907 = vmatprep.subr.mxu0 0.0
      %908 = vmatpush1.msra.mxu0 0.0
      %909 = vmatprep.subr.mxu0 0.0
      %910 = vmatpush1.msra.mxu0 0.0
      %911 = vmatprep.subr.mxu0 0.0
      %912 = vmatpush1.msra.mxu0 0.0
      %913 = vmatprep.subr.mxu0 0.0
      %914 = vmatpush1.msra.mxu0 0.0
      %915 = vmatprep.subr.mxu0 0.0
      %916 = vmatpush1.msra.mxu0 0.0
      %917 = vmatprep.subr.mxu0 0.0
      %918 = vmatpush1.msra.mxu0 0.0
      %919 = vmatprep.subr.mxu0 0.0
      %920 = vmatpush1.msra.mxu0 0.0
      %921 = vmatprep.subr.mxu0 0.0
      %922 = vmatpush1.msra.mxu0 0.0
      %923 = vmatprep.subr.mxu0 0.0
      %924 = vmatpush1.msra.mxu0 0.0
      %925 = vmatprep.subr.mxu0 0.0
      %926 = vmatpush1.msra.mxu0 0.0
      %927 = vmatprep.subr.mxu0 0.0
      %928 = vmatpush1.msra.mxu0 0.0
      %929 = vmatprep.subr.mxu0 0.0
      %930 = vmatpush1.msra.mxu0 0.0
      %931 = vmatprep.subr.mxu0 0.0
      %932 = vmatpush1.msra.mxu0 0.0
      %933 = vmatprep.subr.mxu0 0.0
      %934 = vmatpush1.msra.mxu0 0.0
      %935 = vmatprep.subr.mxu0 0.0
      %936 = vmatpush1.msra.mxu0 0.0
      %937 = vmatprep.subr.mxu0 0.0
      %938 = vmatpush1.msra.mxu0 0.0
      %939 = vmatprep.subr.mxu0 0.0
      %940 = vmatpush1.msra.mxu0 0.0
      %941 = vmatprep.subr.mxu0 0.0
      %942 = vmatpush1.msra.mxu0 0.0
      %943 = vmatprep.subr.mxu0 0.0
      %944 = vmatpush1.msra.mxu0 0.0
      %945 = vmatprep.subr.mxu0 0.0
      %946 = vmatpush1.msra.mxu0 0.0
      %947 = vmatprep.subr.mxu0 0.0
      %948 = vmatpush1.msra.mxu0 0.0
      %949 = vmatprep.subr.mxu0 0.0
      %950 = vmatpush1.msra.mxu0 0.0
      %951 = vmatprep.subr.mxu0 0.0
      %952 = vmatpush1.msra.mxu0 0.0
      %953 = vmatprep.subr.mxu0 0.0
      %954 = vmatpush1.msra.mxu0 0.0
      %955 = vmatprep.subr.mxu0 0.0
      %956 = vmatpush1.msra.mxu0 0.0
      %957 = vmatprep.subr.mxu0 0.0
      %958 = vmatpush1.msra.mxu0 0.0
      %959 = vmatprep.subr.mxu0 0.0
      %960 = vmatpush1.msra.mxu0 0.0
      %961 = vmatprep.subr.mxu0 0.0
      %962 = vmatpush1.msra.mxu0 0.0
      %963 = vmatprep.subr.mxu0 0.0
      %964 = vmatpush1.msra.mxu0 0.0
      %965 = vmatprep.mubr.f32.mxu0 0.0
      %966 = vmatmul.mubr.f32.gmra.mrb[0].mxu0 %v886
      %v967 = vpop.f32.mrb[0].mxu0
      %v968 = vadd.f32 0.0, %v967
      %v969 = vpop.f32.mrb[0].mxu0
      %970 = vmatprep.mubr.f32.mxu0 0.0
      %971 = vmatmul.mubr.f32.gmra.mrb[0].mxu0 %v889
      %v972 = vpop.f32.mrb[0].mxu0
      %v973 = vadd.f32 0.0, %v972
      %v974 = vpop.f32.mrb[0].mxu0
      %975 = vmatprep.mubr.f32.mxu0 0.0
      %976 = vmatmul.mubr.f32.gmra.mrb[0].mxu0 %v892
      %v977 = vpop.f32.mrb[0].mxu0
      %v978 = vadd.f32 0.0, %v977
      %v979 = vpop.f32.mrb[0].mxu0
      %980 = vmatprep.mubr.f32.mxu0 0.0
      %981 = vmatmul.mubr.f32.gmra.mrb[0].mxu0 %v895
      %v982 = vpop.f32.mrb[0].mxu0
      %v983 = vadd.f32 0.0, %v982
      %v984 = vpop.f32.mrb[0].mxu0
      %985 = vdwg.mxu0
      %v986 = vmul.f32 %v517, %v968
      %v987 = vmul.f32 %v520, %v973
      %v988 = vmul.f32 %v525, %v978
      %v989 = vmul.f32 %v528, %v983
      %v990 = vsel %vm475, %v986, 0.0
      %v991 = vsel %vm475, %v987, 0.0
      %v992 = vadd.f32 %v990, %v991
      %v993 = vrot.slane %v992, 4
      %v994 = vadd.f32 %v992, %v993
      %v995 = vrot.slane %v994, 2
      %v996 = vadd.f32 %v994, %v995
      %v997 = vrot.slane %v996, 1
      %v998 = vadd.f32 %v996, %v997
      %v999 = vsel %vm475, %v988, 0.0
      %v1000 = vsel %vm475, %v989, 0.0
      %v1001 = vadd.f32 %v999, %v1000
      %v1002 = vrot.slane %v1001, 4
      %v1003 = vadd.f32 %v1001, %v1002
      %v1004 = vrot.slane %v1003, 2
      %v1005 = vadd.f32 %v1003, %v1004
      %v1006 = vrot.slane %v1005, 1
      %v1007 = vadd.f32 %v1005, %v1006
      %s1008 = scalar_lea.vmem %s335, 64
      %v1009 = vld [vmem:[%s1008] sm:$0xf]
      %v1010 = vld [vmem:[%s1008 + $0x4] sm:$0xf]
      %v1011 = vld [vmem:[%s1008 + $0x8] sm:$0xf]
      %v1012 = vld [vmem:[%s1008 + $0xc] sm:$0xf]
      %v1013 = vld [vmem:[%s1008 + $0x10] sm:$0xf]
      %v1014 = vld [vmem:[%s1008 + $0x14] sm:$0xf]
      %v1015 = vld [vmem:[%s1008 + $0x18] sm:$0xf]
      %v1016 = vld [vmem:[%s1008 + $0x1c] sm:$0xf]
      %v1017 = vpack.c.bf16 %v998, %v998
      %v1018 = vpack.c.bf16 %v1007, %v1007
      %v1019 = vlaneseq
      %v1020 = vshrl.u32 %v1019, 7
      %v1021 = vsub.s32 3, %v1020
      %v1022 = vrot.slane %v345, %v1021
      %v1025 = vunpack.c.l.b16 %v1017
      %v1026 = vunpack.c.l.b16 %v1018
      %vm1027 = vcmask 1041409
      %v1028 = vsel %vm1027, %v1026, %v1025
      %v1029 = vpack.c.b16 %v1028, %v1028
      %v1038 = vunpack.c.l.b16 %v1009
      %v1039 = vunpack.c.l.b16 %v1010
      %v1040 = vunpack.c.l.b16 %v1011
      %v1041 = vunpack.c.l.b16 %v1012
      %v1042 = vunpack.c.l.b16 %v1013
      %v1043 = vunpack.c.l.b16 %v1014
      %v1044 = vunpack.c.l.b16 %v1015
      %v1045 = vunpack.c.l.b16 %v1016
      %v1046 = vpack.c.b16 %v1039, %v1038
      %v1047 = vpack.c.b16 %v1041, %v1040
      %v1048 = vpack.c.b16 %v1043, %v1042
      %v1049 = vpack.c.b16 %v1045, %v1044
      %v1055 = vsel %vm475, %v1029, 0
      %1057 = vmatprep.subr.bf16.mxu0 0
      %1058 = vmatpush1.bf16.msra.mxu0 %v1046
      %1059 = vmatprep.subr.bf16.mxu0 0
      %1060 = vmatpush1.bf16.msra.mxu0 %v1047
      %1061 = vmatprep.subr.bf16.mxu0 0
      %1062 = vmatpush1.bf16.msra.mxu0 %v1048
      %1063 = vmatprep.subr.bf16.mxu0 0
      %1064 = vmatpush1.bf16.msra.mxu0 %v1049
      %1065 = vmatprep.subr.bf16.mxu0 0
      %1066 = vmatpush1.bf16.msra.mxu0 0
      %1067 = vmatprep.subr.bf16.mxu0 0
      %1068 = vmatpush1.bf16.msra.mxu0 0
      %1069 = vmatprep.subr.bf16.mxu0 0
      %1070 = vmatpush1.bf16.msra.mxu0 0
      %1071 = vmatprep.subr.bf16.mxu0 0
      %1072 = vmatpush1.bf16.msra.mxu0 0
      %1073 = vmatprep.subr.bf16.mxu0 0
      %1074 = vmatpush1.bf16.msra.mxu0 0
      %1075 = vmatprep.subr.bf16.mxu0 0
      %1076 = vmatpush1.bf16.msra.mxu0 0
      %1077 = vmatprep.subr.bf16.mxu0 0
      %1078 = vmatpush1.bf16.msra.mxu0 0
      %1079 = vmatprep.subr.bf16.mxu0 0
      %1080 = vmatpush1.bf16.msra.mxu0 0
      %1081 = vmatprep.subr.bf16.mxu0 0
      %1082 = vmatpush1.bf16.msra.mxu0 0
      %1083 = vmatprep.subr.bf16.mxu0 0
      %1084 = vmatpush1.bf16.msra.mxu0 0
      %1085 = vmatprep.subr.bf16.mxu0 0
      %1086 = vmatpush1.bf16.msra.mxu0 0
      %1087 = vmatprep.subr.bf16.mxu0 0
      %1088 = vmatpush1.bf16.msra.mxu0 0
      %1089 = vmatprep.mubr.bf16.mxu0 0
      %1090 = vmatmul.mubr.bf16.gmra.mrb[0].mxu0 %v1055
      %v1091 = vpop.f32.mrb[0].mxu0
      %v1092 = vadd.f32 %v1022, %v1091
      %v1093 = vpop.f32.mrb[0].mxu0
      %v1094 = vpop.f32.mrb[0].mxu0
      %v1095 = vpop.f32.mrb[0].mxu0
      %1096 = vdwg.mxu0
      %v1097 = vadd.f32 %v346, %v1092
      %vm1098 = vcmask 517120
      %1099 = vst.msk [vmem:[%s343] sm:$0x3] %vm1098, %v1097
      %p1100 = scmp.lt.s32.totalorder %s17, 3
      %s1101 = scalar_select %p1100, %s17, 3
      %s1102 = smul.addr %s1101, 2
      %s1103 = scalar_lea.vmem %s6, %s1102
      // Predicated region
      $region45: #{single_dhgcn_forward.3} parent=43 // pred_check
        %p1104 = pneg %p191
      $region46: #{single_dhgcn_forward.3} parent=43 // pred_check_branch
        %1106 = sbr.rel (%p1104) target = $region48
      $region47: #{single_dhgcn_forward.3} parent=43 // pred_region
        _
      $region48: #{single_dhgcn_forward.3} parent=43 // pred_fallthru
        _
    $region44: #{single_dhgcn_forward.3} parent=5 // pred_fallthru
      _
    %p1107 = scmp.le.s32.totalorder 2, %s12
    // Predicated region
    $region49: #{single_dhgcn_forward.3} parent=5 // pred_check
      %p1108 = pneg %p1107
    $region50: #{single_dhgcn_forward.3} parent=5 // pred_check_branch
      %1110 = sbr.rel (%p1108) target = $region52
    $region51: #{single_dhgcn_forward.3} parent=5 // pred_region
      %s1111 = ssub.s32 %s12, 2
      // Predicated region
      $region53: #{single_dhgcn_forward.3} parent=51 // pred_check
        %p1112 = pneg %p197
      $region54: #{single_dhgcn_forward.3} parent=51 // pred_check_branch
        %1114 = sbr.rel (%p1112) target = $region56
      $region55: #{single_dhgcn_forward.3} parent=51 // pred_region
        %p1115 = scmp.lt.s32.totalorder %s18, 3
        %s1116 = scalar_select %p1115, %s18, 3
        %s1117 = smul.addr %s1116, 2
        %s1118 = scalar_lea.vmem %s6, %s1117
      $region56: #{single_dhgcn_forward.3} parent=51 // pred_fallthru
        _
    $region52: #{single_dhgcn_forward.3} parent=5 // pred_fallthru
      _
  $region6: #{single_dhgcn_forward.3} parent=0 // loop_footer
    %s16 = sadd.s32 1, %s12
  $region7: #{single_dhgcn_forward.3} parent=0 // loop_footer_branch
    %11 = sbr.rel target = $region3
  $region8: #{single_dhgcn_forward.3} parent=0 // loop_exit
    _

// kernel: single_dhgcn_forward.4
$region0: #{single_dhgcn_forward.4}
  #allocation0 [shape = 'u32[]', space=smem, size = 0x4, offset = 0x4, fixed_abs, tag = 'smem constant byte address 0x4 - core index']
  #allocation1 [shape = 'u32[144,128]{1,0:T(1,128)}', space=vmem, size = 0x12000, scoped, tag = 'internal scratch']
  %s0 = inlined_call_operand.vmem [shape: bf16[4,32,32], index: 0, kind: input, shape index: {}]
  %s1 = inlined_call_operand.vmem [shape: s32[4,32,1], index: 1, kind: input, shape index: {}]
  %s2 = inlined_call_operand.vmem [shape: f32[4,2,64], index: 2, kind: input, shape index: {}]
  %s3 = inlined_call_operand.vmem [shape: bf16[4,32,64], index: 3, kind: input, shape index: {}]
  %s4 = inlined_call_operand.vmem [shape: bf16[4,2,64,64], index: 4, kind: input, shape index: {}]
  %s5 = inlined_call_operand.vmem [shape: f32[4,8,64], index: 5, kind: input, shape index: {}]
  %s6 = inlined_call_operand.vmem [shape: f32[4,32,64], index: 6, kind: output, shape index: {}]
  %s7 = sld [smem:[#allocation0]]
  $region57: #{single_dhgcn_forward.4} parent=0
    _
  %s9 = ssub.s32 1, %s7
  %s10 = scalar_select 0, %s9, %s7
  loop: start=0, step=1, limit=10
  $region2: #{single_dhgcn_forward.4} parent=0 // loop_pre_header
    _
  $region3: #{single_dhgcn_forward.4} parent=0 // loop_header
    %s12 = sphi 0, %s16
    %p13 = scmp.ge.s32.totalorder %s12, 10
    %s19 = sphi 0, %s31
    %s20 = sphi 0, %s27
    %s21 = sphi 0, %s19
    %s22 = sphi 0, %s20
    %s23 = sphi 0, %s21
    %s24 = sphi 0, %s22
    %s36 = sphi 0, %s38
    %s39 = sphi 0, %s36
    %s40 = sphi 0, %s39
    %s56 = sphi 0, %s40
    %s64 = sphi 0, %s66
    %s67 = sphi 0, %s64
    %s68 = sphi 0, %s67
    %s84 = sphi 0, %s68
    %s90 = sphi 0, %s92
    %s93 = sphi 0, %s90
    %s94 = sphi 0, %s93
    %s110 = sphi 0, %s94
    %s116 = sphi 0, %s118
    %s119 = sphi 0, %s116
    %s120 = sphi 0, %s119
    %s136 = sphi 0, %s120
    %s142 = sphi 0, %s144
    %s145 = sphi 0, %s142
    %s146 = sphi 0, %s145
    %s162 = sphi 0, %s146
    %s168 = sphi 0, %s170
    %s171 = sphi 0, %s168
    %s172 = sphi 0, %s171
    %s188 = sphi 0, %s172
    %s196 = sphi 0, %s198
    %s199 = sphi 0, %s196
    %s200 = sphi 0, %s199
    %s216 = sphi 0, %s200
  $region4: #{single_dhgcn_forward.4} parent=0 // loop_header_branch
    %15 = sbr.rel (%p13) target = $region8
  $region5: #{single_dhgcn_forward.4} parent=0 // loop_body
    %s17 = ssub.s32 %s12, 1
    %s18 = ssub.s32 %s12, 2
    %s25 = sadd.s32 1, %s20
    %p26 = scmp.ge.s32.totalorder %s25, 2
    %s27 = scalar_select %p26, 0, %s25
    %s28 = sadd.s32 1, %s19
    %s29 = scalar_select %p26, %s28, %s19
    %p30 = scmp.ge.s32.totalorder %s29, 4
    %s31 = scalar_select %p30, 0, %s29
    %s32 = ssub.s32 %s19, %s31
    %s33 = ssub.s32 %s20, %s27
    %s34 = sor.u32 %s32, %s33
    %p35 = scmp.eq.s32.totalorder %s34, 0
    %s37 = sadd.s32 %s36, 1
    %s38 = scalar_select %p35, %s36, %s37
    %p41 = pneg %p35
    %p42 = scmp.eq.s32.totalorder %s12, 7
    %p43 = por %p41, %p42
    %p44 = scmp.ne.s32.totalorder %s36, %s39
    %p45 = scmp.eq.s32.totalorder %s12, 0
    %p46 = por %p44, %p45
    %p47 = scmp.ne.s32.totalorder %s36, %s39
    %p48 = scmp.eq.s32.totalorder %s17, 7
    %p49 = por %p47, %p48
    %p50 = scmp.ne.s32.totalorder %s39, %s40
    %p51 = scmp.eq.s32.totalorder %s17, 0
    %p52 = por %p50, %p51
    %p53 = scmp.ne.s32.totalorder %s39, %s40
    %p54 = scmp.eq.s32.totalorder %s18, 7
    %p55 = por %p53, %p54
    %p57 = scmp.ne.s32.totalorder %s40, %s56
    %p58 = scmp.eq.s32.totalorder %s18, 0
    %p59 = por %p57, %p58
    %s60 = ssub.s32 %s19, %s31
    %s61 = ssub.s32 %s20, %s27
    %s62 = sor.u32 %s60, %s61
    %p63 = scmp.eq.s32.totalorder %s62, 0
    %s65 = sadd.s32 %s64, 1
    %s66 = scalar_select %p63, %s64, %s65
    %p69 = pneg %p63
    %p70 = scmp.eq.s32.totalorder %s12, 7
    %p71 = por %p69, %p70
    %p72 = scmp.ne.s32.totalorder %s64, %s67
    %p73 = scmp.eq.s32.totalorder %s12, 0
    %p74 = por %p72, %p73
    %p75 = scmp.ne.s32.totalorder %s64, %s67
    %p76 = scmp.eq.s32.totalorder %s17, 7
    %p77 = por %p75, %p76
    %p78 = scmp.ne.s32.totalorder %s67, %s68
    %p79 = scmp.eq.s32.totalorder %s17, 0
    %p80 = por %p78, %p79
    %p81 = scmp.ne.s32.totalorder %s67, %s68
    %p82 = scmp.eq.s32.totalorder %s18, 7
    %p83 = por %p81, %p82
    %p85 = scmp.ne.s32.totalorder %s68, %s84
    %p86 = scmp.eq.s32.totalorder %s18, 0
    %p87 = por %p85, %p86
    %s88 = ssub.s32 %s19, %s31
    %p89 = scmp.eq.s32.totalorder %s88, 0
    %s91 = sadd.s32 %s90, 1
    %s92 = scalar_select %p89, %s90, %s91
    %p95 = pneg %p89
    %p96 = scmp.eq.s32.totalorder %s12, 7
    %p97 = por %p95, %p96
    %p98 = scmp.ne.s32.totalorder %s90, %s93
    %p99 = scmp.eq.s32.totalorder %s12, 0
    %p100 = por %p98, %p99
    %p101 = scmp.ne.s32.totalorder %s90, %s93
    %p102 = scmp.eq.s32.totalorder %s17, 7
    %p103 = por %p101, %p102
    %p104 = scmp.ne.s32.totalorder %s93, %s94
    %p105 = scmp.eq.s32.totalorder %s17, 0
    %p106 = por %p104, %p105
    %p107 = scmp.ne.s32.totalorder %s93, %s94
    %p108 = scmp.eq.s32.totalorder %s18, 7
    %p109 = por %p107, %p108
    %p111 = scmp.ne.s32.totalorder %s94, %s110
    %p112 = scmp.eq.s32.totalorder %s18, 0
    %p113 = por %p111, %p112
    %s114 = ssub.s32 %s19, %s31
    %p115 = scmp.eq.s32.totalorder %s114, 0
    %s117 = sadd.s32 %s116, 1
    %s118 = scalar_select %p115, %s116, %s117
    %p121 = pneg %p115
    %p122 = scmp.eq.s32.totalorder %s12, 7
    %p123 = por %p121, %p122
    %p124 = scmp.ne.s32.totalorder %s116, %s119
    %p125 = scmp.eq.s32.totalorder %s12, 0
    %p126 = por %p124, %p125
    %p127 = scmp.ne.s32.totalorder %s116, %s119
    %p128 = scmp.eq.s32.totalorder %s17, 7
    %p129 = por %p127, %p128
    %p130 = scmp.ne.s32.totalorder %s119, %s120
    %p131 = scmp.eq.s32.totalorder %s17, 0
    %p132 = por %p130, %p131
    %p133 = scmp.ne.s32.totalorder %s119, %s120
    %p134 = scmp.eq.s32.totalorder %s18, 7
    %p135 = por %p133, %p134
    %p137 = scmp.ne.s32.totalorder %s120, %s136
    %p138 = scmp.eq.s32.totalorder %s18, 0
    %p139 = por %p137, %p138
    %s140 = ssub.s32 %s19, %s31
    %p141 = scmp.eq.s32.totalorder %s140, 0
    %s143 = sadd.s32 %s142, 1
    %s144 = scalar_select %p141, %s142, %s143
    %p147 = pneg %p141
    %p148 = scmp.eq.s32.totalorder %s12, 7
    %p149 = por %p147, %p148
    %p150 = scmp.ne.s32.totalorder %s142, %s145
    %p151 = scmp.eq.s32.totalorder %s12, 0
    %p152 = por %p150, %p151
    %p153 = scmp.ne.s32.totalorder %s142, %s145
    %p154 = scmp.eq.s32.totalorder %s17, 7
    %p155 = por %p153, %p154
    %p156 = scmp.ne.s32.totalorder %s145, %s146
    %p157 = scmp.eq.s32.totalorder %s17, 0
    %p158 = por %p156, %p157
    %p159 = scmp.ne.s32.totalorder %s145, %s146
    %p160 = scmp.eq.s32.totalorder %s18, 7
    %p161 = por %p159, %p160
    %p163 = scmp.ne.s32.totalorder %s146, %s162
    %p164 = scmp.eq.s32.totalorder %s18, 0
    %p165 = por %p163, %p164
    %s166 = ssub.s32 %s19, %s31
    %p167 = scmp.eq.s32.totalorder %s166, 0
    %s169 = sadd.s32 %s168, 1
    %s170 = scalar_select %p167, %s168, %s169
    %p173 = pneg %p167
    %p174 = scmp.eq.s32.totalorder %s12, 7
    %p175 = por %p173, %p174
    %p176 = scmp.ne.s32.totalorder %s168, %s171
    %p177 = scmp.eq.s32.totalorder %s12, 0
    %p178 = por %p176, %p177
    %p179 = scmp.ne.s32.totalorder %s168, %s171
    %p180 = scmp.eq.s32.totalorder %s17, 7
    %p181 = por %p179, %p180
    %p182 = scmp.ne.s32.totalorder %s171, %s172
    %p183 = scmp.eq.s32.totalorder %s17, 0
    %p184 = por %p182, %p183
    %p185 = scmp.ne.s32.totalorder %s171, %s172
    %p186 = scmp.eq.s32.totalorder %s18, 7
    %p187 = por %p185, %p186
    %p189 = scmp.ne.s32.totalorder %s172, %s188
    %p190 = scmp.eq.s32.totalorder %s18, 0
    %p191 = por %p189, %p190
    %s192 = ssub.s32 %s19, %s31
    %s193 = ssub.s32 %s20, %s27
    %s194 = sor.u32 %s192, %s193
    %p195 = scmp.eq.s32.totalorder %s194, 0
    %s197 = sadd.s32 %s196, 1
    %s198 = scalar_select %p195, %s196, %s197
    %p201 = pneg %p195
    %p202 = scmp.eq.s32.totalorder %s12, 7
    %p203 = por %p201, %p202
    %p204 = scmp.ne.s32.totalorder %s196, %s199
    %p205 = scmp.eq.s32.totalorder %s12, 0
    %p206 = por %p204, %p205
    %p207 = scmp.ne.s32.totalorder %s196, %s199
    %p208 = scmp.eq.s32.totalorder %s17, 7
    %p209 = por %p207, %p208
    %p210 = scmp.ne.s32.totalorder %s199, %s200
    %p211 = scmp.eq.s32.totalorder %s17, 0
    %p212 = por %p210, %p211
    %p213 = scmp.ne.s32.totalorder %s199, %s200
    %p214 = scmp.eq.s32.totalorder %s18, 7
    %p215 = por %p213, %p214
    %p217 = scmp.ne.s32.totalorder %s200, %s216
    %p218 = scmp.eq.s32.totalorder %s18, 0
    %p219 = por %p217, %p218
    %p220 = scmp.le.s32.totalorder 1, %s12
    %p221 = scmp.lt.s32.totalorder %s12, 9
    %p222 = pnand %p220, %p221
    %p223 = pneg %p222
    // Predicated region
    $region9: #{single_dhgcn_forward.4} parent=5 // pred_check
      _
    $region10: #{single_dhgcn_forward.4} parent=5 // pred_check_branch
      %225 = sbr.rel (%p222) target = $region12
    $region11: #{single_dhgcn_forward.4} parent=5 // pred_region
      %s226 = ssub.s32 %s12, 1
    $region12: #{single_dhgcn_forward.4} parent=5 // pred_fallthru
      _
    %p227 = scmp.lt.s32.totalorder %s12, 8
    // Predicated region
    $region13: #{single_dhgcn_forward.4} parent=5 // pred_check
      %p228 = pneg %p227
    $region14: #{single_dhgcn_forward.4} parent=5 // pred_check_branch
      %230 = sbr.rel (%p228) target = $region16
    $region15: #{single_dhgcn_forward.4} parent=5 // pred_region
      // Predicated region
      $region17: #{single_dhgcn_forward.4} parent=15 // pred_check
        %p231 = pneg %p46
      $region18: #{single_dhgcn_forward.4} parent=15 // pred_check_branch
        %233 = sbr.rel (%p231) target = $region20
      $region19: #{single_dhgcn_forward.4} parent=15 // pred_region
        %s234 = smul.u32 2, %s20
        %p235 = scmp.lt.s32.totalorder %s19, 3
        %s236 = scalar_select %p235, %s19, 3
        %p237 = scmp.lt.s32.totalorder %s234, 3
        %s238 = scalar_select %p237, %s234, 3
        %s239 = smul.addr %s236, 4
        %s240 = sadd.s32 %s238, %s239
        %s241 = smul.addr %s240, 4
        %s242 = scalar_lea.vmem %s0, %s241
        %s243 = smul.u32 2, %s20
      $region20: #{single_dhgcn_forward.4} parent=15 // pred_fallthru
        _
      // Predicated region
      $region21: #{single_dhgcn_forward.4} parent=15 // pred_check
        %p244 = pneg %p74
      $region22: #{single_dhgcn_forward.4} parent=15 // pred_check_branch
        %246 = sbr.rel (%p244) target = $region24
      $region23: #{single_dhgcn_forward.4} parent=15 // pred_region
        %s247 = smul.u32 2, %s20
        %p248 = scmp.lt.s32.totalorder %s19, 3
        %s249 = scalar_select %p248, %s19, 3
        %p250 = scmp.lt.s32.totalorder %s247, 3
        %s251 = scalar_select %p250, %s247, 3
        %s252 = smul.addr %s249, 4
        %s253 = sadd.s32 %s251, %s252
        %s254 = smul.addr %s253, 8
        %s255 = scalar_lea.vmem %s1, %s254
        %s256 = smul.u32 2, %s20
      $region24: #{single_dhgcn_forward.4} parent=15 // pred_fallthru
        _
      // Predicated region
      $region25: #{single_dhgcn_forward.4} parent=15 // pred_check
        %p257 = pneg %p100
      $region26: #{single_dhgcn_forward.4} parent=15 // pred_check_branch
        %259 = sbr.rel (%p257) target = $region28
      $region27: #{single_dhgcn_forward.4} parent=15 // pred_region
        %p260 = scmp.lt.s32.totalorder %s19, 3
        %s261 = scalar_select %p260, %s19, 3
        %s262 = smul.addr %s261, 2
        %s263 = scalar_lea.vmem %s2, %s262
      $region28: #{single_dhgcn_forward.4} parent=15 // pred_fallthru
        _
      // Predicated region
      $region29: #{single_dhgcn_forward.4} parent=15 // pred_check
        %p264 = pneg %p126
      $region30: #{single_dhgcn_forward.4} parent=15 // pred_check_branch
        %266 = sbr.rel (%p264) target = $region32
      $region31: #{single_dhgcn_forward.4} parent=15 // pred_region
        %p267 = scmp.lt.s32.totalorder %s19, 3
        %s268 = scalar_select %p267, %s19, 3
        %s269 = smul.addr %s268, 4
        %s270 = smul.addr %s269, 4
        %s271 = scalar_lea.vmem %s3, %s270
      $region32: #{single_dhgcn_forward.4} parent=15 // pred_fallthru
        _
      // Predicated region
      $region33: #{single_dhgcn_forward.4} parent=15 // pred_check
        %p272 = pneg %p152
      $region34: #{single_dhgcn_forward.4} parent=15 // pred_check_branch
        %274 = sbr.rel (%p272) target = $region36
      $region35: #{single_dhgcn_forward.4} parent=15 // pred_region
        %p275 = scmp.lt.s32.totalorder %s19, 3
        %s276 = scalar_select %p275, %s19, 3
        %s277 = smul.addr %s276, 16
        %s278 = smul.addr %s277, 4
        %s279 = scalar_lea.vmem %s4, %s278
      $region36: #{single_dhgcn_forward.4} parent=15 // pred_fallthru
        _
      // Predicated region
      $region37: #{single_dhgcn_forward.4} parent=15 // pred_check
        %p280 = pneg %p178
      $region38: #{single_dhgcn_forward.4} parent=15 // pred_check_branch
        %282 = sbr.rel (%p280) target = $region40
      $region39: #{single_dhgcn_forward.4} parent=15 // pred_region
        %p283 = scmp.lt.s32.totalorder %s19, 3
        %s284 = scalar_select %p283, %s19, 3
        %s285 = smul.addr %s284, 8
        %s286 = scalar_lea.vmem %s5, %s285
      $region40: #{single_dhgcn_forward.4} parent=15 // pred_fallthru
        _
    $region16: #{single_dhgcn_forward.4} parent=5 // pred_fallthru
      _
    %p287 = scmp.le.s32.totalorder 1, %s12
    %p288 = scmp.lt.s32.totalorder %s12, 9
    %p289 = pnand %p287, %p288
    %p290 = pneg %p289
    // Predicated region
    $region41: #{single_dhgcn_forward.4} parent=5 // pred_check
      _
    $region42: #{single_dhgcn_forward.4} parent=5 // pred_check_branch
      %292 = sbr.rel (%p289) target = $region44
    $region43: #{single_dhgcn_forward.4} parent=5 // pred_region
      %s293 = ssub.s32 %s12, 1
      %s294 = smul.u32 2, %s22
      %p295 = scmp.lt.s32.totalorder %s21, 3
      %s296 = scalar_select %p295, %s21, 3
      %p297 = scmp.lt.s32.totalorder %s294, 3
      %s298 = scalar_select %p297, %s294, 3
      %s299 = smul.addr %s296, 4
      %s300 = sadd.s32 %s298, %s299
      %s301 = smul.addr %s300, 4
      %s302 = scalar_lea.vmem %s0, %s301
      %p303 = pneg %p52
      %p304 = pneg %p49
      %s305 = smul.u32 2, %s22
      %p306 = scmp.lt.s32.totalorder %s21, 3
      %s307 = scalar_select %p306, %s21, 3
      %p308 = scmp.lt.s32.totalorder %s305, 3
      %s309 = scalar_select %p308, %s305, 3
      %s310 = smul.addr %s307, 4
      %s311 = sadd.s32 %s309, %s310
      %s312 = smul.addr %s311, 8
      %s313 = scalar_lea.vmem %s1, %s312
      %p314 = pneg %p80
      %p315 = pneg %p77
      %p316 = scmp.lt.s32.totalorder %s21, 3
      %s317 = scalar_select %p316, %s21, 3
      %s318 = smul.addr %s317, 2
      %s319 = scalar_lea.vmem %s2, %s318
      %p320 = pneg %p106
      %p321 = pneg %p103
      %p322 = scmp.lt.s32.totalorder %s21, 3
      %s323 = scalar_select %p322, %s21, 3
      %s324 = smul.addr %s323, 4
      %s325 = smul.addr %s324, 4
      %s326 = scalar_lea.vmem %s3, %s325
      %p327 = pneg %p132
      %p328 = pneg %p129
      %p329 = scmp.lt.s32.totalorder %s21, 3
      %s330 = scalar_select %p329, %s21, 3
      %s331 = smul.addr %s330, 16
      %s332 = smul.addr %s331, 4
      %s333 = scalar_lea.vmem %s4, %s332
      %p334 = pneg %p158
      %p335 = pneg %p155
      %p336 = scmp.lt.s32.totalorder %s21, 3
      %s337 = scalar_select %p336, %s21, 3
      %s338 = smul.addr %s337, 8
      %s339 = scalar_lea.vmem %s5, %s338
      %p340 = pneg %p184
      %p341 = pneg %p181
      %p342 = pneg %p212
      %p343 = pneg %p209
      %s344 = smul.u32 2, %s22
      %p345 = scmp.lt.s32.totalorder %s21, 3
      %s346 = scalar_select %p345, %s21, 3
      %p347 = scmp.lt.s32.totalorder %s344, 3
      %s348 = scalar_select %p347, %s344, 3
      %s349 = smul.addr %s346, 4
      %s350 = sadd.s32 %s348, %s349
      %s351 = smul.addr %s350, 8
      %s352 = scalar_lea.vmem %s6, %s351
      %s353 = smul.u32 2, %s22
      %p354 = scmp.lt.s32.totalorder %s21, 3
      %s355 = scalar_select %p354, %s21, 3
      %p356 = scmp.lt.s32.totalorder %s353, 3
      %s357 = scalar_select %p356, %s353, 3
      %s358 = smul.addr %s355, 4
      %s359 = sadd.s32 %s357, %s358
      %s360 = smul.addr %s359, 4
      %s361 = scalar_lea.vmem %s0, %s360
      %s362 = smul.u32 2, %s22
      %s363 = smul.u32 2, %s22
      %p364 = scmp.lt.s32.totalorder %s21, 3
      %s365 = scalar_select %p364, %s21, 3
      %p366 = scmp.lt.s32.totalorder %s363, 3
      %s367 = scalar_select %p366, %s363, 3
      %s368 = smul.addr %s365, 4
      %s369 = sadd.s32 %s367, %s368
      %s370 = smul.addr %s369, 8
      %s371 = scalar_lea.vmem %s1, %s370
      %s372 = smul.u32 2, %s22
      %p373 = scmp.lt.s32.totalorder %s21, 3
      %s374 = scalar_select %p373, %s21, 3
      %s375 = smul.addr %s374, 2
      %s376 = scalar_lea.vmem %s2, %s375
      %p377 = scmp.lt.s32.totalorder %s21, 3
      %s378 = scalar_select %p377, %s21, 3
      %s379 = smul.addr %s378, 4
      %s380 = smul.addr %s379, 4
      %s381 = scalar_lea.vmem %s3, %s380
      %p382 = scmp.lt.s32.totalorder %s21, 3
      %s383 = scalar_select %p382, %s21, 3
      %s384 = smul.addr %s383, 16
      %s385 = smul.addr %s384, 4
      %s386 = scalar_lea.vmem %s4, %s385
      %p387 = scmp.lt.s32.totalorder %s21, 3
      %s388 = scalar_select %p387, %s21, 3
      %s389 = smul.addr %s388, 8
      %s390 = scalar_lea.vmem %s5, %s389
      %s391 = smul.u32 2, %s22
      %p392 = scmp.lt.s32.totalorder %s21, 3
      %s393 = scalar_select %p392, %s21, 3
      %p394 = scmp.lt.s32.totalorder %s391, 3
      %s395 = scalar_select %p394, %s391, 3
      %s396 = smul.addr %s393, 4
      %s397 = sadd.s32 %s395, %s396
      %s398 = smul.addr %s397, 8
      %s399 = scalar_lea.vmem %s6, %s398
      %s400 = smul.u32 2, %s22
      %v402 = vld [vmem:[%s390] sm:$0xff]
      %v403 = vld [vmem:[%s361] sm:$0xf]
      %v404 = vld [vmem:[%s361 + $0x4] sm:$0xf]
      %v405 = vld [vmem:[%s381] sm:$0xf]
      %v406 = vld [vmem:[%s381 + $0x4] sm:$0xf]
      %v407 = vld [vmem:[%s381 + $0x8] sm:$0xf]
      %v408 = vld [vmem:[%s381 + $0xc] sm:$0xf]
      %v409 = vlaneseq
      %v410 = vshrl.u32 %v409, 7
      %v411 = vsub.s32 0, %v410
      %v412 = vrot.slane %v402, %v411
      %v415 = vunpack.c.l.b16 %v403
      %v416 = vunpack.c.l.b16 %v404
      %v417 = vpack.c.b16 %v416, %v415
      %v422 = vunpack.c.l.b16 %v405
      %v423 = vunpack.c.l.b16 %v406
      %v424 = vunpack.c.l.b16 %v407
      %v425 = vunpack.c.l.b16 %v408
      %v426 = vpack.c.b16 %v423, %v422
      %v427 = vpack.c.b16 %v425, %v424
      %vm430 = vcmask 261120
      %v432 = vsel %vm430, %v417, 0
      %434 = vmatprep.subr.bf16.mxu0 0
      %435 = vmatpush1.bf16.msra.mxu0 %v426
      %436 = vmatprep.subr.bf16.mxu0 0
      %437 = vmatpush1.bf16.msra.mxu0 %v427
      %438 = vmatprep.subr.bf16.mxu0 0
      %439 = vmatpush1.bf16.msra.mxu0 0
      %440 = vmatprep.subr.bf16.mxu0 0
      %441 = vmatpush1.bf16.msra.mxu0 0
      %442 = vmatprep.subr.bf16.mxu0 0
      %443 = vmatpush1.bf16.msra.mxu0 0
      %444 = vmatprep.subr.bf16.mxu0 0
      %445 = vmatpush1.bf16.msra.mxu0 0
      %446 = vmatprep.subr.bf16.mxu0 0
      %447 = vmatpush1.bf16.msra.mxu0 0
      %448 = vmatprep.subr.bf16.mxu0 0
      %449 = vmatpush1.bf16.msra.mxu0 0
      %450 = vmatprep.subr.bf16.mxu0 0
      %451 = vmatpush1.bf16.msra.mxu0 0
      %452 = vmatprep.subr.bf16.mxu0 0
      %453 = vmatpush1.bf16.msra.mxu0 0
      %454 = vmatprep.subr.bf16.mxu0 0
      %455 = vmatpush1.bf16.msra.mxu0 0
      %456 = vmatprep.subr.bf16.mxu0 0
      %457 = vmatpush1.bf16.msra.mxu0 0
      %458 = vmatprep.subr.bf16.mxu0 0
      %459 = vmatpush1.bf16.msra.mxu0 0
      %460 = vmatprep.subr.bf16.mxu0 0
      %461 = vmatpush1.bf16.msra.mxu0 0
      %462 = vmatprep.subr.bf16.mxu0 0
      %463 = vmatpush1.bf16.msra.mxu0 0
      %464 = vmatprep.subr.bf16.mxu0 0
      %465 = vmatpush1.bf16.msra.mxu0 0
      %466 = vmatprep.mubr.bf16.mxu0 0
      %467 = vmatmul.mubr.bf16.gmra.mrb[0].mxu0 %v432
      %v468 = vpop.f32.mrb[0].mxu0
      %v469 = vadd.f32 %v412, %v468
      %v470 = vpop.f32.mrb[0].mxu0
      %v471 = vpop.f32.mrb[0].mxu0
      %v472 = vadd.f32 %v412, %v471
      %v473 = vpop.f32.mrb[0].mxu0
      %474 = vdwg.mxu0
      %v475 = vld [vmem:[%s371] sm:$0xff]
      %v476 = vld [vmem:[%s371 + $0x8] sm:$0xff]
      %v477 = vlaneseq
      %v478 = vand.u32 %v477, 127
      %479 = vset.pattern.permute.xlu0 0
      %480 = vperm.xlu0 %479, %v475
      %v481 = vpop.permute.xlu0 %480
      %482 = vset.pattern.permute.xlu0 0
      %483 = vperm.xlu0 %482, %v476
      %v484 = vpop.permute.xlu0 %483
      %vm485 = vcmp.eq.s32.totalorder %v481, %v478
      %vm486 = vcmp.eq.s32.totalorder %v484, %v478
      %v487 = vsel %vm485, 1, 0
      %v488 = vsel %vm486, 1, 0
      %v489 = vcvt.s32.f32 %v487
      %v490 = vcvt.s32.f32 %v488
      %v491 = vld [vmem:[%s376] sm:$0x3]
      %vm492 = vcmask 15360
      %v494 = vsel %vm492, %v489, 0
      %v497 = vsel %vm492, %v490, 0
      %vm499 = vcmask 1041408
      %v501 = vsel %vm499, %v491, 0
      %503 = vmatprep.subr.mxu0 0.0
      %504 = vmatpush1.msra.mxu0 %v501
      %505 = vmatprep.subr.mxu0 0.0
      %506 = vmatpush1.msra.mxu0 0.0
      %507 = vmatprep.subr.mxu0 0.0
      %508 = vmatpush1.msra.mxu0 0.0
      %509 = vmatprep.subr.mxu0 0.0
      %510 = vmatpush1.msra.mxu0 0.0
      %511 = vmatprep.subr.mxu0 0.0
      %512 = vmatpush1.msra.mxu0 0.0
      %513 = vmatprep.subr.mxu0 0.0
      %514 = vmatpush1.msra.mxu0 0.0
      %515 = vmatprep.subr.mxu0 0.0
      %516 = vmatpush1.msra.mxu0 0.0
      %517 = vmatprep.subr.mxu0 0.0
      %518 = vmatpush1.msra.mxu0 0.0
      %519 = vmatprep.subr.mxu0 0.0
      %520 = vmatpush1.msra.mxu0 0.0
      %521 = vmatprep.subr.mxu0 0.0
      %522 = vmatpush1.msra.mxu0 0.0
      %523 = vmatprep.subr.mxu0 0.0
      %524 = vmatpush1.msra.mxu0 0.0
      %525 = vmatprep.subr.mxu0 0.0
      %526 = vmatpush1.msra.mxu0 0.0
      %527 = vmatprep.subr.mxu0 0.0
      %528 = vmatpush1.msra.mxu0 0.0
      %529 = vmatprep.subr.mxu0 0.0
      %530 = vmatpush1.msra.mxu0 0.0
      %531 = vmatprep.subr.mxu0 0.0
      %532 = vmatpush1.msra.mxu0 0.0
      %533 = vmatprep.subr.mxu0 0.0
      %534 = vmatpush1.msra.mxu0 0.0
      %535 = vmatprep.subr.mxu0 0.0
      %536 = vmatpush1.msra.mxu0 0.0
      %537 = vmatprep.subr.mxu0 0.0
      %538 = vmatpush1.msra.mxu0 0.0
      %539 = vmatprep.subr.mxu0 0.0
      %540 = vmatpush1.msra.mxu0 0.0
      %541 = vmatprep.subr.mxu0 0.0
      %542 = vmatpush1.msra.mxu0 0.0
      %543 = vmatprep.subr.mxu0 0.0
      %544 = vmatpush1.msra.mxu0 0.0
      %545 = vmatprep.subr.mxu0 0.0
      %546 = vmatpush1.msra.mxu0 0.0
      %547 = vmatprep.subr.mxu0 0.0
      %548 = vmatpush1.msra.mxu0 0.0
      %549 = vmatprep.subr.mxu0 0.0
      %550 = vmatpush1.msra.mxu0 0.0
      %551 = vmatprep.subr.mxu0 0.0
      %552 = vmatpush1.msra.mxu0 0.0
      %553 = vmatprep.subr.mxu0 0.0
      %554 = vmatpush1.msra.mxu0 0.0
      %555 = vmatprep.subr.mxu0 0.0
      %556 = vmatpush1.msra.mxu0 0.0
      %557 = vmatprep.subr.mxu0 0.0
      %558 = vmatpush1.msra.mxu0 0.0
      %559 = vmatprep.subr.mxu0 0.0
      %560 = vmatpush1.msra.mxu0 0.0
      %561 = vmatprep.subr.mxu0 0.0
      %562 = vmatpush1.msra.mxu0 0.0
      %563 = vmatprep.subr.mxu0 0.0
      %564 = vmatpush1.msra.mxu0 0.0
      %565 = vmatprep.subr.mxu0 0.0
      %566 = vmatpush1.msra.mxu0 0.0
      %567 = vmatprep.mubr.f32.mxu0 0.0
      %568 = vmatmul.mubr.f32.gmra.mrb[0].mxu0 %v494
      %v569 = vpop.f32.mrb[0].mxu0
      %v570 = vadd.f32 0.0, %v569
      %v571 = vpop.f32.mrb[0].mxu0
      %572 = vmatprep.mubr.f32.mxu0 0.0
      %573 = vmatmul.mubr.f32.gmra.mrb[0].mxu0 %v497
      %v574 = vpop.f32.mrb[0].mxu0
      %v575 = vadd.f32 0.0, %v574
      %v576 = vpop.f32.mrb[0].mxu0
      %577 = vdwg.mxu0
      %v578 = vld [vmem:[%s386] sm:$0xf]
      %v579 = vld [vmem:[%s386 + $0x4] sm:$0xf]
      %v580 = vld [vmem:[%s386 + $0x8] sm:$0xf]
      %v581 = vld [vmem:[%s386 + $0xc] sm:$0xf]
      %v582 = vld [vmem:[%s386 + $0x10] sm:$0xf]
      %v583 = vld [vmem:[%s386 + $0x14] sm:$0xf]
      %v584 = vld [vmem:[%s386 + $0x18] sm:$0xf]
      %v585 = vld [vmem:[%s386 + $0x1c] sm:$0xf]
      %v586 = vpack.c.bf16 %v472, %v469
      %s587 = scalar_lea.vmem %s386, 32
      %v588 = vld [vmem:[%s587] sm:$0xf]
      %v589 = vld [vmem:[%s587 + $0x4] sm:$0xf]
      %v590 = vld [vmem:[%s587 + $0x8] sm:$0xf]
      %v591 = vld [vmem:[%s587 + $0xc] sm:$0xf]
      %v592 = vld [vmem:[%s587 + $0x10] sm:$0xf]
      %v593 = vld [vmem:[%s587 + $0x14] sm:$0xf]
      %v594 = vld [vmem:[%s587 + $0x18] sm:$0xf]
      %v595 = vld [vmem:[%s587 + $0x1c] sm:$0xf]
      %v596 = vpack.c.bf16 %v575, %v570
      %v605 = vunpack.c.l.b16 %v588
      %v606 = vunpack.c.l.b16 %v589
      %v607 = vunpack.c.l.b16 %v590
      %v608 = vunpack.c.l.b16 %v591
      %v609 = vunpack.c.l.b16 %v592
      %v610 = vunpack.c.l.b16 %v593
      %v611 = vunpack.c.l.b16 %v594
      %v612 = vunpack.c.l.b16 %v595
      %v613 = vpack.c.b16 %v606, %v605
      %v614 = vpack.c.b16 %v608, %v607
      %v615 = vpack.c.b16 %v610, %v609
      %v616 = vpack.c.b16 %v612, %v611
      %vm621 = vcmask 523264
      %v623 = vsel %vm621, %v596, 0
      %625 = vmatprep.subr.bf16.mxu0 0
      %626 = vmatpush1.bf16.msra.mxu0 %v613
      %627 = vmatprep.subr.bf16.mxu0 0
      %628 = vmatpush1.bf16.msra.mxu0 %v614
      %629 = vmatprep.subr.bf16.mxu0 0
      %630 = vmatpush1.bf16.msra.mxu0 %v615
      %631 = vmatprep.subr.bf16.mxu0 0
      %632 = vmatpush1.bf16.msra.mxu0 %v616
      %633 = vmatprep.subr.bf16.mxu0 0
      %634 = vmatpush1.bf16.msra.mxu0 0
      %635 = vmatprep.subr.bf16.mxu0 0
      %636 = vmatpush1.bf16.msra.mxu0 0
      %637 = vmatprep.subr.bf16.mxu0 0
      %638 = vmatpush1.bf16.msra.mxu0 0
      %639 = vmatprep.subr.bf16.mxu0 0
      %640 = vmatpush1.bf16.msra.mxu0 0
      %641 = vmatprep.subr.bf16.mxu0 0
      %642 = vmatpush1.bf16.msra.mxu0 0
      %643 = vmatprep.subr.bf16.mxu0 0
      %644 = vmatpush1.bf16.msra.mxu0 0
      %645 = vmatprep.subr.bf16.mxu0 0
      %646 = vmatpush1.bf16.msra.mxu0 0
      %647 = vmatprep.subr.bf16.mxu0 0
      %648 = vmatpush1.bf16.msra.mxu0 0
      %649 = vmatprep.subr.bf16.mxu0 0
      %650 = vmatpush1.bf16.msra.mxu0 0
      %651 = vmatprep.subr.bf16.mxu0 0
      %652 = vmatpush1.bf16.msra.mxu0 0
      %653 = vmatprep.subr.bf16.mxu0 0
      %654 = vmatpush1.bf16.msra.mxu0 0
      %655 = vmatprep.subr.bf16.mxu0 0
      %656 = vmatpush1.bf16.msra.mxu0 0
      %657 = vmatprep.mubr.bf16.mxu0 0
      %658 = vmatmul.mubr.bf16.gmra.mrb[0].mxu0 %v623
      %v659 = vpop.f32.mrb[0].mxu0
      %v660 = vadd.f32 0.0, %v659
      %v661 = vpop.f32.mrb[0].mxu0
      %v662 = vpop.f32.mrb[0].mxu0
      %v663 = vadd.f32 0.0, %v662
      %v664 = vpop.f32.mrb[0].mxu0
      %665 = vdwg.mxu0
      %v674 = vunpack.c.l.b16 %v578
      %v675 = vunpack.c.l.b16 %v579
      %v676 = vunpack.c.l.b16 %v580
      %v677 = vunpack.c.l.b16 %v581
      %v678 = vunpack.c.l.b16 %v582
      %v679 = vunpack.c.l.b16 %v583
      %v680 = vunpack.c.l.b16 %v584
      %v681 = vunpack.c.l.b16 %v585
      %v682 = vpack.c.b16 %v675, %v674
      %v683 = vpack.c.b16 %v677, %v676
      %v684 = vpack.c.b16 %v679, %v678
      %v685 = vpack.c.b16 %v681, %v680
      %v691 = vsel %vm621, %v586, 0
      %693 = vmatprep.subr.bf16.mxu0 0
      %694 = vmatpush1.bf16.msra.mxu0 %v682
      %695 = vmatprep.subr.bf16.mxu0 0
      %696 = vmatpush1.bf16.msra.mxu0 %v683
      %697 = vmatprep.subr.bf16.mxu0 0
      %698 = vmatpush1.bf16.msra.mxu0 %v684
      %699 = vmatprep.subr.bf16.mxu0 0
      %700 = vmatpush1.bf16.msra.mxu0 %v685
      %701 = vmatprep.subr.bf16.mxu0 0
      %702 = vmatpush1.bf16.msra.mxu0 0
      %703 = vmatprep.subr.bf16.mxu0 0
      %704 = vmatpush1.bf16.msra.mxu0 0
      %705 = vmatprep.subr.bf16.mxu0 0
      %706 = vmatpush1.bf16.msra.mxu0 0
      %707 = vmatprep.subr.bf16.mxu0 0
      %708 = vmatpush1.bf16.msra.mxu0 0
      %709 = vmatprep.subr.bf16.mxu0 0
      %710 = vmatpush1.bf16.msra.mxu0 0
      %711 = vmatprep.subr.bf16.mxu0 0
      %712 = vmatpush1.bf16.msra.mxu0 0
      %713 = vmatprep.subr.bf16.mxu0 0
      %714 = vmatpush1.bf16.msra.mxu0 0
      %715 = vmatprep.subr.bf16.mxu0 0
      %716 = vmatpush1.bf16.msra.mxu0 0
      %717 = vmatprep.subr.bf16.mxu0 0
      %718 = vmatpush1.bf16.msra.mxu0 0
      %719 = vmatprep.subr.bf16.mxu0 0
      %720 = vmatpush1.bf16.msra.mxu0 0
      %721 = vmatprep.subr.bf16.mxu0 0
      %722 = vmatpush1.bf16.msra.mxu0 0
      %723 = vmatprep.subr.bf16.mxu0 0
      %724 = vmatpush1.bf16.msra.mxu0 0
      %725 = vmatprep.mubr.bf16.mxu0 0
      %726 = vmatmul.mubr.bf16.gmra.mrb[0].mxu0 %v691
      %v727 = vpop.f32.mrb[0].mxu0
      %v728 = vadd.f32 %v660, %v727
      %v729 = vpop.f32.mrb[0].mxu0
      %v730 = vpop.f32.mrb[0].mxu0
      %v731 = vadd.f32 %v663, %v730
      %v732 = vpop.f32.mrb[0].mxu0
      %733 = vdwg.mxu0
      %v734 = vlaneseq
      %v735 = vshrl.u32 %v734, 7
      %v736 = vsub.s32 4, %v735
      %v737 = vrot.slane %v402, %v736
      %v738 = vadd.f32 %v728, %v737
      %v739 = vadd.f32 %v731, %v737
      %vm740 = vcmp.ge.f32.partialorder %v738, 0.0
      %vm741 = vcmp.ge.f32.partialorder %v739, 0.0
      %v742 = vmul.f32 %v738, 0.01
      %v743 = vmul.f32 %v739, 0.01
      %v744 = vsel %vm740, %v738, %v742
      %v745 = vsel %vm741, %v739, %v743
      %746 = vst.msk [vmem:[%s399] sm:$0xff] %vm621, %v744
      %747 = vst.msk [vmem:[%s399 + $0x8] sm:$0xff] %vm621, %v745
      %s748 = smul.u32 2, %s22
      %p749 = scmp.lt.s32.totalorder %s21, 3
      %s750 = scalar_select %p749, %s21, 3
      %p751 = scmp.lt.s32.totalorder %s748, 3
      %s752 = scalar_select %p751, %s748, 3
      %s753 = smul.addr %s750, 4
      %s754 = sadd.s32 %s752, %s753
      %s755 = smul.addr %s754, 8
      %s756 = scalar_lea.vmem %s6, %s755
      // Predicated region
      $region45: #{single_dhgcn_forward.4} parent=43 // pred_check
        %p757 = pneg %p209
      $region46: #{single_dhgcn_forward.4} parent=43 // pred_check_branch
        %759 = sbr.rel (%p757) target = $region48
      $region47: #{single_dhgcn_forward.4} parent=43 // pred_region
        %s760 = smul.u32 2, %s22
      $region48: #{single_dhgcn_forward.4} parent=43 // pred_fallthru
        _
    $region44: #{single_dhgcn_forward.4} parent=5 // pred_fallthru
      _
    %p761 = scmp.le.s32.totalorder 2, %s12
    // Predicated region
    $region49: #{single_dhgcn_forward.4} parent=5 // pred_check
      %p762 = pneg %p761
    $region50: #{single_dhgcn_forward.4} parent=5 // pred_check_branch
      %764 = sbr.rel (%p762) target = $region52
    $region51: #{single_dhgcn_forward.4} parent=5 // pred_region
      %s765 = ssub.s32 %s12, 2
      // Predicated region
      $region53: #{single_dhgcn_forward.4} parent=51 // pred_check
        %p766 = pneg %p215
      $region54: #{single_dhgcn_forward.4} parent=51 // pred_check_branch
        %768 = sbr.rel (%p766) target = $region56
      $region55: #{single_dhgcn_forward.4} parent=51 // pred_region
        %s769 = smul.u32 2, %s24
        %p770 = scmp.lt.s32.totalorder %s23, 3
        %s771 = scalar_select %p770, %s23, 3
        %p772 = scmp.lt.s32.totalorder %s769, 3
        %s773 = scalar_select %p772, %s769, 3
        %s774 = smul.addr %s771, 4
        %s775 = sadd.s32 %s773, %s774
        %s776 = smul.addr %s775, 8
        %s777 = scalar_lea.vmem %s6, %s776
      $region56: #{single_dhgcn_forward.4} parent=51 // pred_fallthru
        _
    $region52: #{single_dhgcn_forward.4} parent=5 // pred_fallthru
      _
  $region6: #{single_dhgcn_forward.4} parent=0 // loop_footer
    %s16 = sadd.s32 1, %s12
  $region7: #{single_dhgcn_forward.4} parent=0 // loop_footer_branch
    %11 = sbr.rel target = $region3
  $region8: #{single_dhgcn_forward.4} parent=0 // loop_exit
    _

// kernel: single_dhgcn_forward.5
$region0: #{single_dhgcn_forward.5}
  #allocation0 [shape = 'u32[]', space=smem, size = 0x4, offset = 0x4, fixed_abs, tag = 'smem constant byte address 0x4 - core index']
  #allocation1 [shape = 'u32[144,128]{1,0:T(1,128)}', space=vmem, size = 0x12000, scoped, tag = 'internal scratch']
  %s0 = inlined_call_operand.vmem [shape: f32[2,4,64], index: 0, kind: input, shape index: {}]
  %s1 = inlined_call_operand.vmem [shape: f32[2,1,4], index: 1, kind: input, shape index: {}]
  %s2 = inlined_call_operand.vmem [shape: f32[2,4,1], index: 2, kind: input, shape index: {}]
  %s3 = inlined_call_operand.vmem [shape: bf16[3,2,64,32], index: 3, kind: input, shape index: {}]
  %s4 = inlined_call_operand.vmem [shape: f32[3,2,1,32], index: 4, kind: input, shape index: {}]
  %s5 = inlined_call_operand.vmem [shape: bf16[2,32,64], index: 5, kind: input, shape index: {}]
  %s6 = inlined_call_operand.vmem [shape: f32[8,64], index: 6, kind: input, shape index: {}]
  %s7 = inlined_call_operand.vmem [shape: bf16[64,256], index: 7, kind: input, shape index: {}]
  %s8 = inlined_call_operand.vmem [shape: f32[1,256], index: 8, kind: input, shape index: {}]
  %s9 = inlined_call_operand.vmem [shape: bf16[256,64], index: 9, kind: input, shape index: {}]
  %s10 = inlined_call_operand.vmem [shape: f32[2,4,64], index: 10, kind: output, shape index: {}]
  %s11 = sld [smem:[#allocation0]]
  $region73: #{single_dhgcn_forward.5} parent=0
    _
  %s13 = ssub.s32 1, %s11
  %s14 = scalar_select 0, %s13, %s11
  loop: start=0, step=1, limit=4
  $region2: #{single_dhgcn_forward.5} parent=0 // loop_pre_header
    _
  $region3: #{single_dhgcn_forward.5} parent=0 // loop_header
    %s16 = sphi 0, %s20
    %p17 = scmp.ge.s32.totalorder %s16, 4
    %s26 = sphi 0, %s28
    %s29 = sphi 0, %s26
    %s30 = sphi 0, %s29
    %s46 = sphi 0, %s30
    %s52 = sphi 0, %s54
    %s55 = sphi 0, %s52
    %s56 = sphi 0, %s55
    %s72 = sphi 0, %s56
    %s78 = sphi 0, %s80
    %s81 = sphi 0, %s78
    %s82 = sphi 0, %s81
    %s98 = sphi 0, %s82
    %s102 = sphi 0, %s102
    %s104 = sphi 0, %s102
    %s105 = sphi 0, %s104
    %s119 = sphi 0, %s105
    %s123 = sphi 0, %s123
    %s125 = sphi 0, %s123
    %s126 = sphi 0, %s125
    %s140 = sphi 0, %s126
    %s144 = sphi 0, %s144
    %s146 = sphi 0, %s144
    %s147 = sphi 0, %s146
    %s161 = sphi 0, %s147
    %s165 = sphi 0, %s165
    %s167 = sphi 0, %s165
    %s168 = sphi 0, %s167
    %s182 = sphi 0, %s168
    %s186 = sphi 0, %s186
    %s188 = sphi 0, %s186
    %s189 = sphi 0, %s188
    %s203 = sphi 0, %s189
    %s207 = sphi 0, %s207
    %s209 = sphi 0, %s207
    %s210 = sphi 0, %s209
    %s224 = sphi 0, %s210
    %s228 = sphi 0, %s228
    %s230 = sphi 0, %s228
    %s231 = sphi 0, %s230
    %s245 = sphi 0, %s231
    %s251 = sphi 0, %s253
    %s254 = sphi 0, %s251
    %s255 = sphi 0, %s254
    %s271 = sphi 0, %s255
  $region4: #{single_dhgcn_forward.5} parent=0 // loop_header_branch
    %19 = sbr.rel (%p17) target = $region8
  $region5: #{single_dhgcn_forward.5} parent=0 // loop_body
    %s21 = ssub.s32 %s16, 1
    %s22 = ssub.s32 %s16, 2
    %s23 = sadd.s32 %s16, 1
    %s24 = ssub.s32 %s16, %s23
    %p25 = scmp.eq.s32.totalorder %s24, 0
    %s27 = sadd.s32 %s26, 1
    %s28 = scalar_select %p25, %s26, %s27
    %p31 = pneg %p25
    %p32 = scmp.eq.s32.totalorder %s16, 1
    %p33 = por %p31, %p32
    %p34 = scmp.ne.s32.totalorder %s26, %s29
    %p35 = scmp.eq.s32.totalorder %s16, 0
    %p36 = por %p34, %p35
    %p37 = scmp.ne.s32.totalorder %s26, %s29
    %p38 = scmp.eq.s32.totalorder %s21, 1
    %p39 = por %p37, %p38
    %p40 = scmp.ne.s32.totalorder %s29, %s30
    %p41 = scmp.eq.s32.totalorder %s21, 0
    %p42 = por %p40, %p41
    %p43 = scmp.ne.s32.totalorder %s29, %s30
    %p44 = scmp.eq.s32.totalorder %s22, 1
    %p45 = por %p43, %p44
    %p47 = scmp.ne.s32.totalorder %s30, %s46
    %p48 = scmp.eq.s32.totalorder %s22, 0
    %p49 = por %p47, %p48
    %s50 = ssub.s32 %s16, %s23
    %p51 = scmp.eq.s32.totalorder %s50, 0
    %s53 = sadd.s32 %s52, 1
    %s54 = scalar_select %p51, %s52, %s53
    %p57 = pneg %p51
    %p58 = scmp.eq.s32.totalorder %s16, 1
    %p59 = por %p57, %p58
    %p60 = scmp.ne.s32.totalorder %s52, %s55
    %p61 = scmp.eq.s32.totalorder %s16, 0
    %p62 = por %p60, %p61
    %p63 = scmp.ne.s32.totalorder %s52, %s55
    %p64 = scmp.eq.s32.totalorder %s21, 1
    %p65 = por %p63, %p64
    %p66 = scmp.ne.s32.totalorder %s55, %s56
    %p67 = scmp.eq.s32.totalorder %s21, 0
    %p68 = por %p66, %p67
    %p69 = scmp.ne.s32.totalorder %s55, %s56
    %p70 = scmp.eq.s32.totalorder %s22, 1
    %p71 = por %p69, %p70
    %p73 = scmp.ne.s32.totalorder %s56, %s72
    %p74 = scmp.eq.s32.totalorder %s22, 0
    %p75 = por %p73, %p74
    %s76 = ssub.s32 %s16, %s23
    %p77 = scmp.eq.s32.totalorder %s76, 0
    %s79 = sadd.s32 %s78, 1
    %s80 = scalar_select %p77, %s78, %s79
    %p83 = pneg %p77
    %p84 = scmp.eq.s32.totalorder %s16, 1
    %p85 = por %p83, %p84
    %p86 = scmp.ne.s32.totalorder %s78, %s81
    %p87 = scmp.eq.s32.totalorder %s16, 0
    %p88 = por %p86, %p87
    %p89 = scmp.ne.s32.totalorder %s78, %s81
    %p90 = scmp.eq.s32.totalorder %s21, 1
    %p91 = por %p89, %p90
    %p92 = scmp.ne.s32.totalorder %s81, %s82
    %p93 = scmp.eq.s32.totalorder %s21, 0
    %p94 = por %p92, %p93
    %p95 = scmp.ne.s32.totalorder %s81, %s82
    %p96 = scmp.eq.s32.totalorder %s22, 1
    %p97 = por %p95, %p96
    %p99 = scmp.ne.s32.totalorder %s82, %s98
    %p100 = scmp.eq.s32.totalorder %s22, 0
    %p101 = por %p99, %p100
    %s103 = sadd.s32 %s102, 1
    %p106 = scmp.eq.s32.totalorder %s16, 1
    %p107 = scmp.ne.s32.totalorder %s102, %s104
    %p108 = scmp.eq.s32.totalorder %s16, 0
    %p109 = por %p107, %p108
    %p110 = scmp.ne.s32.totalorder %s102, %s104
    %p111 = scmp.eq.s32.totalorder %s21, 1
    %p112 = por %p110, %p111
    %p113 = scmp.ne.s32.totalorder %s104, %s105
    %p114 = scmp.eq.s32.totalorder %s21, 0
    %p115 = por %p113, %p114
    %p116 = scmp.ne.s32.totalorder %s104, %s105
    %p117 = scmp.eq.s32.totalorder %s22, 1
    %p118 = por %p116, %p117
    %p120 = scmp.ne.s32.totalorder %s105, %s119
    %p121 = scmp.eq.s32.totalorder %s22, 0
    %p122 = por %p120, %p121
    %s124 = sadd.s32 %s123, 1
    %p127 = scmp.eq.s32.totalorder %s16, 1
    %p128 = scmp.ne.s32.totalorder %s123, %s125
    %p129 = scmp.eq.s32.totalorder %s16, 0
    %p130 = por %p128, %p129
    %p131 = scmp.ne.s32.totalorder %s123, %s125
    %p132 = scmp.eq.s32.totalorder %s21, 1
    %p133 = por %p131, %p132
    %p134 = scmp.ne.s32.totalorder %s125, %s126
    %p135 = scmp.eq.s32.totalorder %s21, 0
    %p136 = por %p134, %p135
    %p137 = scmp.ne.s32.totalorder %s125, %s126
    %p138 = scmp.eq.s32.totalorder %s22, 1
    %p139 = por %p137, %p138
    %p141 = scmp.ne.s32.totalorder %s126, %s140
    %p142 = scmp.eq.s32.totalorder %s22, 0
    %p143 = por %p141, %p142
    %s145 = sadd.s32 %s144, 1
    %p148 = scmp.eq.s32.totalorder %s16, 1
    %p149 = scmp.ne.s32.totalorder %s144, %s146
    %p150 = scmp.eq.s32.totalorder %s16, 0
    %p151 = por %p149, %p150
    %p152 = scmp.ne.s32.totalorder %s144, %s146
    %p153 = scmp.eq.s32.totalorder %s21, 1
    %p154 = por %p152, %p153
    %p155 = scmp.ne.s32.totalorder %s146, %s147
    %p156 = scmp.eq.s32.totalorder %s21, 0
    %p157 = por %p155, %p156
    %p158 = scmp.ne.s32.totalorder %s146, %s147
    %p159 = scmp.eq.s32.totalorder %s22, 1
    %p160 = por %p158, %p159
    %p162 = scmp.ne.s32.totalorder %s147, %s161
    %p163 = scmp.eq.s32.totalorder %s22, 0
    %p164 = por %p162, %p163
    %s166 = sadd.s32 %s165, 1
    %p169 = scmp.eq.s32.totalorder %s16, 1
    %p170 = scmp.ne.s32.totalorder %s165, %s167
    %p171 = scmp.eq.s32.totalorder %s16, 0
    %p172 = por %p170, %p171
    %p173 = scmp.ne.s32.totalorder %s165, %s167
    %p174 = scmp.eq.s32.totalorder %s21, 1
    %p175 = por %p173, %p174
    %p176 = scmp.ne.s32.totalorder %s167, %s168
    %p177 = scmp.eq.s32.totalorder %s21, 0
    %p178 = por %p176, %p177
    %p179 = scmp.ne.s32.totalorder %s167, %s168
    %p180 = scmp.eq.s32.totalorder %s22, 1
    %p181 = por %p179, %p180
    %p183 = scmp.ne.s32.totalorder %s168, %s182
    %p184 = scmp.eq.s32.totalorder %s22, 0
    %p185 = por %p183, %p184
    %s187 = sadd.s32 %s186, 1
    %p190 = scmp.eq.s32.totalorder %s16, 1
    %p191 = scmp.ne.s32.totalorder %s186, %s188
    %p192 = scmp.eq.s32.totalorder %s16, 0
    %p193 = por %p191, %p192
    %p194 = scmp.ne.s32.totalorder %s186, %s188
    %p195 = scmp.eq.s32.totalorder %s21, 1
    %p196 = por %p194, %p195
    %p197 = scmp.ne.s32.totalorder %s188, %s189
    %p198 = scmp.eq.s32.totalorder %s21, 0
    %p199 = por %p197, %p198
    %p200 = scmp.ne.s32.totalorder %s188, %s189
    %p201 = scmp.eq.s32.totalorder %s22, 1
    %p202 = por %p200, %p201
    %p204 = scmp.ne.s32.totalorder %s189, %s203
    %p205 = scmp.eq.s32.totalorder %s22, 0
    %p206 = por %p204, %p205
    %s208 = sadd.s32 %s207, 1
    %p211 = scmp.eq.s32.totalorder %s16, 1
    %p212 = scmp.ne.s32.totalorder %s207, %s209
    %p213 = scmp.eq.s32.totalorder %s16, 0
    %p214 = por %p212, %p213
    %p215 = scmp.ne.s32.totalorder %s207, %s209
    %p216 = scmp.eq.s32.totalorder %s21, 1
    %p217 = por %p215, %p216
    %p218 = scmp.ne.s32.totalorder %s209, %s210
    %p219 = scmp.eq.s32.totalorder %s21, 0
    %p220 = por %p218, %p219
    %p221 = scmp.ne.s32.totalorder %s209, %s210
    %p222 = scmp.eq.s32.totalorder %s22, 1
    %p223 = por %p221, %p222
    %p225 = scmp.ne.s32.totalorder %s210, %s224
    %p226 = scmp.eq.s32.totalorder %s22, 0
    %p227 = por %p225, %p226
    %s229 = sadd.s32 %s228, 1
    %p232 = scmp.eq.s32.totalorder %s16, 1
    %p233 = scmp.ne.s32.totalorder %s228, %s230
    %p234 = scmp.eq.s32.totalorder %s16, 0
    %p235 = por %p233, %p234
    %p236 = scmp.ne.s32.totalorder %s228, %s230
    %p237 = scmp.eq.s32.totalorder %s21, 1
    %p238 = por %p236, %p237
    %p239 = scmp.ne.s32.totalorder %s230, %s231
    %p240 = scmp.eq.s32.totalorder %s21, 0
    %p241 = por %p239, %p240
    %p242 = scmp.ne.s32.totalorder %s230, %s231
    %p243 = scmp.eq.s32.totalorder %s22, 1
    %p244 = por %p242, %p243
    %p246 = scmp.ne.s32.totalorder %s231, %s245
    %p247 = scmp.eq.s32.totalorder %s22, 0
    %p248 = por %p246, %p247
    %s249 = ssub.s32 %s16, %s23
    %p250 = scmp.eq.s32.totalorder %s249, 0
    %s252 = sadd.s32 %s251, 1
    %s253 = scalar_select %p250, %s251, %s252
    %p256 = pneg %p250
    %p257 = scmp.eq.s32.totalorder %s16, 1
    %p258 = por %p256, %p257
    %p259 = scmp.ne.s32.totalorder %s251, %s254
    %p260 = scmp.eq.s32.totalorder %s16, 0
    %p261 = por %p259, %p260
    %p262 = scmp.ne.s32.totalorder %s251, %s254
    %p263 = scmp.eq.s32.totalorder %s21, 1
    %p264 = por %p262, %p263
    %p265 = scmp.ne.s32.totalorder %s254, %s255
    %p266 = scmp.eq.s32.totalorder %s21, 0
    %p267 = por %p265, %p266
    %p268 = scmp.ne.s32.totalorder %s254, %s255
    %p269 = scmp.eq.s32.totalorder %s22, 1
    %p270 = por %p268, %p269
    %p272 = scmp.ne.s32.totalorder %s255, %s271
    %p273 = scmp.eq.s32.totalorder %s22, 0
    %p274 = por %p272, %p273
    %p275 = scmp.le.s32.totalorder 1, %s16
    %p276 = scmp.lt.s32.totalorder %s16, 3
    %p277 = pnand %p275, %p276
    %p278 = pneg %p277
    // Predicated region
    $region9: #{single_dhgcn_forward.5} parent=5 // pred_check
      _
    $region10: #{single_dhgcn_forward.5} parent=5 // pred_check_branch
      %280 = sbr.rel (%p277) target = $region12
    $region11: #{single_dhgcn_forward.5} parent=5 // pred_region
      %s281 = ssub.s32 %s16, 1
      // Predicated region
      $region13: #{single_dhgcn_forward.5} parent=11 // pred_check
        %p282 = pneg %p115
      $region14: #{single_dhgcn_forward.5} parent=11 // pred_check_branch
        %284 = sbr.rel (%p282) target = $region16
      $region15: #{single_dhgcn_forward.5} parent=11 // pred_region
        _
      $region16: #{single_dhgcn_forward.5} parent=11 // pred_fallthru
        _
      // Predicated region
      $region17: #{single_dhgcn_forward.5} parent=11 // pred_check
        %p285 = pneg %p136
      $region18: #{single_dhgcn_forward.5} parent=11 // pred_check_branch
        %287 = sbr.rel (%p285) target = $region20
      $region19: #{single_dhgcn_forward.5} parent=11 // pred_region
        _
      $region20: #{single_dhgcn_forward.5} parent=11 // pred_fallthru
        _
      // Predicated region
      $region21: #{single_dhgcn_forward.5} parent=11 // pred_check
        %p288 = pneg %p157
      $region22: #{single_dhgcn_forward.5} parent=11 // pred_check_branch
        %290 = sbr.rel (%p288) target = $region24
      $region23: #{single_dhgcn_forward.5} parent=11 // pred_region
        _
      $region24: #{single_dhgcn_forward.5} parent=11 // pred_fallthru
        _
      // Predicated region
      $region25: #{single_dhgcn_forward.5} parent=11 // pred_check
        %p291 = pneg %p178
      $region26: #{single_dhgcn_forward.5} parent=11 // pred_check_branch
        %293 = sbr.rel (%p291) target = $region28
      $region27: #{single_dhgcn_forward.5} parent=11 // pred_region
        _
      $region28: #{single_dhgcn_forward.5} parent=11 // pred_fallthru
        _
      // Predicated region
      $region29: #{single_dhgcn_forward.5} parent=11 // pred_check
        %p294 = pneg %p199
      $region30: #{single_dhgcn_forward.5} parent=11 // pred_check_branch
        %296 = sbr.rel (%p294) target = $region32
      $region31: #{single_dhgcn_forward.5} parent=11 // pred_region
        _
      $region32: #{single_dhgcn_forward.5} parent=11 // pred_fallthru
        _
      // Predicated region
      $region33: #{single_dhgcn_forward.5} parent=11 // pred_check
        %p297 = pneg %p220
      $region34: #{single_dhgcn_forward.5} parent=11 // pred_check_branch
        %299 = sbr.rel (%p297) target = $region36
      $region35: #{single_dhgcn_forward.5} parent=11 // pred_region
        _
      $region36: #{single_dhgcn_forward.5} parent=11 // pred_fallthru
        _
      // Predicated region
      $region37: #{single_dhgcn_forward.5} parent=11 // pred_check
        %p300 = pneg %p241
      $region38: #{single_dhgcn_forward.5} parent=11 // pred_check_branch
        %302 = sbr.rel (%p300) target = $region40
      $region39: #{single_dhgcn_forward.5} parent=11 // pred_region
        _
      $region40: #{single_dhgcn_forward.5} parent=11 // pred_fallthru
        _
    $region12: #{single_dhgcn_forward.5} parent=5 // pred_fallthru
      _
    %p303 = scmp.lt.s32.totalorder %s16, 2
    // Predicated region
    $region41: #{single_dhgcn_forward.5} parent=5 // pred_check
      %p304 = pneg %p303
    $region42: #{single_dhgcn_forward.5} parent=5 // pred_check_branch
      %306 = sbr.rel (%p304) target = $region44
    $region43: #{single_dhgcn_forward.5} parent=5 // pred_region
      // Predicated region
      $region45: #{single_dhgcn_forward.5} parent=43 // pred_check
        %p307 = pneg %p36
      $region46: #{single_dhgcn_forward.5} parent=43 // pred_check_branch
        %309 = sbr.rel (%p307) target = $region48
      $region47: #{single_dhgcn_forward.5} parent=43 // pred_region
        %p310 = scmp.lt.s32.totalorder %s16, 1
        %s311 = scalar_select %p310, %s16, 1
        %s312 = smul.addr %s311, 4
        %s313 = scalar_lea.vmem %s0, %s312
      $region48: #{single_dhgcn_forward.5} parent=43 // pred_fallthru
        _
      // Predicated region
      $region49: #{single_dhgcn_forward.5} parent=43 // pred_check
        %p314 = pneg %p62
      $region50: #{single_dhgcn_forward.5} parent=43 // pred_check_branch
        %316 = sbr.rel (%p314) target = $region52
      $region51: #{single_dhgcn_forward.5} parent=43 // pred_region
        %p317 = scmp.lt.s32.totalorder %s16, 1
        %s318 = scalar_select %p317, %s16, 1
        %s319 = scalar_lea.vmem %s1, %s318
      $region52: #{single_dhgcn_forward.5} parent=43 // pred_fallthru
        _
      // Predicated region
      $region53: #{single_dhgcn_forward.5} parent=43 // pred_check
        %p320 = pneg %p88
      $region54: #{single_dhgcn_forward.5} parent=43 // pred_check_branch
        %322 = sbr.rel (%p320) target = $region56
      $region55: #{single_dhgcn_forward.5} parent=43 // pred_region
        %p323 = scmp.lt.s32.totalorder %s16, 1
        %s324 = scalar_select %p323, %s16, 1
        %s325 = smul.addr %s324, 4
        %s326 = scalar_lea.vmem %s2, %s325
      $region56: #{single_dhgcn_forward.5} parent=43 // pred_fallthru
        _
    $region44: #{single_dhgcn_forward.5} parent=5 // pred_fallthru
      _
    %p327 = scmp.le.s32.totalorder 1, %s16
    %p328 = scmp.lt.s32.totalorder %s16, 3
    %p329 = pnand %p327, %p328
    %p330 = pneg %p329
    // Predicated region
    $region57: #{single_dhgcn_forward.5} parent=5 // pred_check
      _
    $region58: #{single_dhgcn_forward.5} parent=5 // pred_check_branch
      %332 = sbr.rel (%p329) target = $region60
    $region59: #{single_dhgcn_forward.5} parent=5 // pred_region
      %s333 = ssub.s32 %s16, 1
      %p334 = scmp.lt.s32.totalorder %s21, 1
      %s335 = scalar_select %p334, %s21, 1
      %s336 = smul.addr %s335, 4
      %s337 = scalar_lea.vmem %s0, %s336
      %p338 = pneg %p42
      %p339 = pneg %p39
      %p340 = scmp.lt.s32.totalorder %s21, 1
      %s341 = scalar_select %p340, %s21, 1
      %s342 = scalar_lea.vmem %s1, %s341
      %p343 = pneg %p68
      %p344 = pneg %p65
      %p345 = scmp.lt.s32.totalorder %s21, 1
      %s346 = scalar_select %p345, %s21, 1
      %s347 = smul.addr %s346, 4
      %s348 = scalar_lea.vmem %s2, %s347
      %p349 = pneg %p94
      %p350 = pneg %p91
      %p351 = pneg %p115
      %p352 = pneg %p112
      %p353 = pneg %p136
      %p354 = pneg %p133
      %p355 = pneg %p157
      %p356 = pneg %p154
      %p357 = pneg %p178
      %p358 = pneg %p175
      %p359 = pneg %p199
      %p360 = pneg %p196
      %p361 = pneg %p220
      %p362 = pneg %p217
      %p363 = pneg %p241
      %p364 = pneg %p238
      %p365 = pneg %p267
      %p366 = pneg %p264
      %p367 = scmp.lt.s32.totalorder %s21, 1
      %s368 = scalar_select %p367, %s21, 1
      %s369 = smul.addr %s368, 4
      %s370 = scalar_lea.vmem %s10, %s369
      %p371 = scmp.lt.s32.totalorder %s21, 1
      %s372 = scalar_select %p371, %s21, 1
      %s373 = smul.addr %s372, 4
      %s374 = scalar_lea.vmem %s0, %s373
      %p375 = scmp.lt.s32.totalorder %s21, 1
      %s376 = scalar_select %p375, %s21, 1
      %s377 = scalar_lea.vmem %s1, %s376
      %p378 = scmp.lt.s32.totalorder %s21, 1
      %s379 = scalar_select %p378, %s21, 1
      %s380 = smul.addr %s379, 4
      %s381 = scalar_lea.vmem %s2, %s380
      %p382 = scmp.lt.s32.totalorder %s21, 1
      %s383 = scalar_select %p382, %s21, 1
      %s384 = smul.addr %s383, 4
      %s385 = scalar_lea.vmem %s10, %s384
      %v387 = vld [vmem:[%s374] sm:$0xf]
      %v388 = vpack.c.bf16 %v387, %v387
      %v389 = vld [vmem:[%s377] sm:$0x1]
      %v390 = vld [vmem:[%s6] sm:$0xff]
      %v391 = vld [vmem:[%s3] sm:$0xf]
      %v392 = vld [vmem:[%s3 + $0x4] sm:$0xf]
      %v393 = vld [vmem:[%s3 + $0x8] sm:$0xf]
      %v394 = vld [vmem:[%s3 + $0xc] sm:$0xf]
      %v395 = vld [vmem:[%s3 + $0x10] sm:$0xf]
      %v396 = vld [vmem:[%s3 + $0x14] sm:$0xf]
      %v397 = vld [vmem:[%s3 + $0x18] sm:$0xf]
      %v398 = vld [vmem:[%s3 + $0x1c] sm:$0xf]
      %v399 = vld [vmem:[%s4] sm:$0x1]
      %v401 = vlaneseq
      %v402 = vshrl.u32 %v401, 7
      %v403 = vsub.s32 0, %v402
      %v404 = vrot.slane %v399, %v403
      %v414 = vunpack.c.l.b16 %v391
      %v415 = vunpack.c.l.b16 %v392
      %v416 = vunpack.c.l.b16 %v393
      %v417 = vunpack.c.l.b16 %v394
      %v418 = vunpack.c.l.b16 %v395
      %v419 = vunpack.c.l.b16 %v396
      %v420 = vunpack.c.l.b16 %v397
      %v421 = vunpack.c.l.b16 %v398
      %v422 = vpack.c.b16 %v415, %v414
      %v423 = vpack.c.b16 %v417, %v416
      %v424 = vpack.c.b16 %v419, %v418
      %v425 = vpack.c.b16 %v421, %v420
      %vm430 = vcmask 523264
      %v432 = vsel %vm430, %v388, 0
      %434 = vmatprep.subr.bf16.mxu0 0
      %435 = vmatpush1.bf16.msra.mxu0 %v422
      %436 = vmatprep.subr.bf16.mxu0 0
      %437 = vmatpush1.bf16.msra.mxu0 %v423
      %438 = vmatprep.subr.bf16.mxu0 0
      %439 = vmatpush1.bf16.msra.mxu0 %v424
      %440 = vmatprep.subr.bf16.mxu0 0
      %441 = vmatpush1.bf16.msra.mxu0 %v425
      %442 = vmatprep.subr.bf16.mxu0 0
      %443 = vmatpush1.bf16.msra.mxu0 0
      %444 = vmatprep.subr.bf16.mxu0 0
      %445 = vmatpush1.bf16.msra.mxu0 0
      %446 = vmatprep.subr.bf16.mxu0 0
      %447 = vmatpush1.bf16.msra.mxu0 0
      %448 = vmatprep.subr.bf16.mxu0 0
      %449 = vmatpush1.bf16.msra.mxu0 0
      %450 = vmatprep.subr.bf16.mxu0 0
      %451 = vmatpush1.bf16.msra.mxu0 0
      %452 = vmatprep.subr.bf16.mxu0 0
      %453 = vmatpush1.bf16.msra.mxu0 0
      %454 = vmatprep.subr.bf16.mxu0 0
      %455 = vmatpush1.bf16.msra.mxu0 0
      %456 = vmatprep.subr.bf16.mxu0 0
      %457 = vmatpush1.bf16.msra.mxu0 0
      %458 = vmatprep.subr.bf16.mxu0 0
      %459 = vmatpush1.bf16.msra.mxu0 0
      %460 = vmatprep.subr.bf16.mxu0 0
      %461 = vmatpush1.bf16.msra.mxu0 0
      %462 = vmatprep.subr.bf16.mxu0 0
      %463 = vmatpush1.bf16.msra.mxu0 0
      %464 = vmatprep.subr.bf16.mxu0 0
      %465 = vmatpush1.bf16.msra.mxu0 0
      %466 = vmatprep.mubr.bf16.mxu0 0
      %467 = vmatmul.mubr.bf16.gmra.mrb[0].mxu0 %v432
      %v468 = vpop.f32.mrb[0].mxu0
      %v469 = vadd.f32 %v404, %v468
      %v470 = vpop.f32.mrb[0].mxu0
      %v471 = vpop.f32.mrb[0].mxu0
      %v472 = vpop.f32.mrb[0].mxu0
      %473 = vdwg.mxu0
      %s474 = scalar_lea.vmem %s3, 64
      %v475 = vld [vmem:[%s474] sm:$0xf]
      %v476 = vld [vmem:[%s474 + $0x4] sm:$0xf]
      %v477 = vld [vmem:[%s474 + $0x8] sm:$0xf]
      %v478 = vld [vmem:[%s474 + $0xc] sm:$0xf]
      %v479 = vld [vmem:[%s474 + $0x10] sm:$0xf]
      %v480 = vld [vmem:[%s474 + $0x14] sm:$0xf]
      %v481 = vld [vmem:[%s474 + $0x18] sm:$0xf]
      %v482 = vld [vmem:[%s474 + $0x1c] sm:$0xf]
      %s483 = scalar_lea.vmem %s4, 2
      %v484 = vld [vmem:[%s483] sm:$0x1]
      %v486 = vlaneseq
      %v487 = vshrl.u32 %v486, 7
      %v488 = vsub.s32 0, %v487
      %v489 = vrot.slane %v484, %v488
      %v499 = vunpack.c.l.b16 %v475
      %v500 = vunpack.c.l.b16 %v476
      %v501 = vunpack.c.l.b16 %v477
      %v502 = vunpack.c.l.b16 %v478
      %v503 = vunpack.c.l.b16 %v479
      %v504 = vunpack.c.l.b16 %v480
      %v505 = vunpack.c.l.b16 %v481
      %v506 = vunpack.c.l.b16 %v482
      %v507 = vpack.c.b16 %v500, %v499
      %v508 = vpack.c.b16 %v502, %v501
      %v509 = vpack.c.b16 %v504, %v503
      %v510 = vpack.c.b16 %v506, %v505
      %515 = vmatprep.subr.bf16.mxu0 0
      %516 = vmatpush1.bf16.msra.mxu0 %v507
      %517 = vmatprep.subr.bf16.mxu0 0
      %518 = vmatpush1.bf16.msra.mxu0 %v508
      %519 = vmatprep.subr.bf16.mxu0 0
      %520 = vmatpush1.bf16.msra.mxu0 %v509
      %521 = vmatprep.subr.bf16.mxu0 0
      %522 = vmatpush1.bf16.msra.mxu0 %v510
      %523 = vmatprep.subr.bf16.mxu0 0
      %524 = vmatpush1.bf16.msra.mxu0 0
      %525 = vmatprep.subr.bf16.mxu0 0
      %526 = vmatpush1.bf16.msra.mxu0 0
      %527 = vmatprep.subr.bf16.mxu0 0
      %528 = vmatpush1.bf16.msra.mxu0 0
      %529 = vmatprep.subr.bf16.mxu0 0
      %530 = vmatpush1.bf16.msra.mxu0 0
      %531 = vmatprep.subr.bf16.mxu0 0
      %532 = vmatpush1.bf16.msra.mxu0 0
      %533 = vmatprep.subr.bf16.mxu0 0
      %534 = vmatpush1.bf16.msra.mxu0 0
      %535 = vmatprep.subr.bf16.mxu0 0
      %536 = vmatpush1.bf16.msra.mxu0 0
      %537 = vmatprep.subr.bf16.mxu0 0
      %538 = vmatpush1.bf16.msra.mxu0 0
      %539 = vmatprep.subr.bf16.mxu0 0
      %540 = vmatpush1.bf16.msra.mxu0 0
      %541 = vmatprep.subr.bf16.mxu0 0
      %542 = vmatpush1.bf16.msra.mxu0 0
      %543 = vmatprep.subr.bf16.mxu0 0
      %544 = vmatpush1.bf16.msra.mxu0 0
      %545 = vmatprep.subr.bf16.mxu0 0
      %546 = vmatpush1.bf16.msra.mxu0 0
      %547 = vmatprep.mubr.bf16.mxu0 0
      %548 = vmatmul.mubr.bf16.gmra.mrb[0].mxu0 %v432
      %v549 = vpop.f32.mrb[0].mxu0
      %v550 = vadd.f32 %v489, %v549
      %v551 = vpop.f32.mrb[0].mxu0
      %v552 = vpop.f32.mrb[0].mxu0
      %v553 = vpop.f32.mrb[0].mxu0
      %554 = vdwg.mxu0
      %s555 = scalar_lea.vmem %s3, 128
      %v556 = vld [vmem:[%s555] sm:$0xf]
      %v557 = vld [vmem:[%s555 + $0x4] sm:$0xf]
      %v558 = vld [vmem:[%s555 + $0x8] sm:$0xf]
      %v559 = vld [vmem:[%s555 + $0xc] sm:$0xf]
      %v560 = vld [vmem:[%s555 + $0x10] sm:$0xf]
      %v561 = vld [vmem:[%s555 + $0x14] sm:$0xf]
      %v562 = vld [vmem:[%s555 + $0x18] sm:$0xf]
      %v563 = vld [vmem:[%s555 + $0x1c] sm:$0xf]
      %s564 = scalar_lea.vmem %s4, 4
      %v565 = vld [vmem:[%s564] sm:$0x1]
      %v567 = vlaneseq
      %v568 = vshrl.u32 %v567, 7
      %v569 = vsub.s32 0, %v568
      %v570 = vrot.slane %v565, %v569
      %v580 = vunpack.c.l.b16 %v556
      %v581 = vunpack.c.l.b16 %v557
      %v582 = vunpack.c.l.b16 %v558
      %v583 = vunpack.c.l.b16 %v559
      %v584 = vunpack.c.l.b16 %v560
      %v585 = vunpack.c.l.b16 %v561
      %v586 = vunpack.c.l.b16 %v562
      %v587 = vunpack.c.l.b16 %v563
      %v588 = vpack.c.b16 %v581, %v580
      %v589 = vpack.c.b16 %v583, %v582
      %v590 = vpack.c.b16 %v585, %v584
      %v591 = vpack.c.b16 %v587, %v586
      %596 = vmatprep.subr.bf16.mxu0 0
      %597 = vmatpush1.bf16.msra.mxu0 %v588
      %598 = vmatprep.subr.bf16.mxu0 0
      %599 = vmatpush1.bf16.msra.mxu0 %v589
      %600 = vmatprep.subr.bf16.mxu0 0
      %601 = vmatpush1.bf16.msra.mxu0 %v590
      %602 = vmatprep.subr.bf16.mxu0 0
      %603 = vmatpush1.bf16.msra.mxu0 %v591
      %604 = vmatprep.subr.bf16.mxu0 0
      %605 = vmatpush1.bf16.msra.mxu0 0
      %606 = vmatprep.subr.bf16.mxu0 0
      %607 = vmatpush1.bf16.msra.mxu0 0
      %608 = vmatprep.subr.bf16.mxu0 0
      %609 = vmatpush1.bf16.msra.mxu0 0
      %610 = vmatprep.subr.bf16.mxu0 0
      %611 = vmatpush1.bf16.msra.mxu0 0
      %612 = vmatprep.subr.bf16.mxu0 0
      %613 = vmatpush1.bf16.msra.mxu0 0
      %614 = vmatprep.subr.bf16.mxu0 0
      %615 = vmatpush1.bf16.msra.mxu0 0
      %616 = vmatprep.subr.bf16.mxu0 0
      %617 = vmatpush1.bf16.msra.mxu0 0
      %618 = vmatprep.subr.bf16.mxu0 0
      %619 = vmatpush1.bf16.msra.mxu0 0
      %620 = vmatprep.subr.bf16.mxu0 0
      %621 = vmatpush1.bf16.msra.mxu0 0
      %622 = vmatprep.subr.bf16.mxu0 0
      %623 = vmatpush1.bf16.msra.mxu0 0
      %624 = vmatprep.subr.bf16.mxu0 0
      %625 = vmatpush1.bf16.msra.mxu0 0
      %626 = vmatprep.subr.bf16.mxu0 0
      %627 = vmatpush1.bf16.msra.mxu0 0
      %628 = vmatprep.mubr.bf16.mxu0 0
      %629 = vmatmul.mubr.bf16.gmra.mrb[0].mxu0 %v432
      %v630 = vpop.f32.mrb[0].mxu0
      %v631 = vadd.f32 %v570, %v630
      %v632 = vpop.f32.mrb[0].mxu0
      %v633 = vpop.f32.mrb[0].mxu0
      %v634 = vpop.f32.mrb[0].mxu0
      %635 = vdwg.mxu0
      %vm636 = vcmask 261120
      %v638 = vsel %vm636, %v469, 0
      %v641 = vsel %vm636, %v550, 0
      %643 = vmatprep.subr.mxu0 0.0
      %644 = vmatpush1.xpose.msra.mxu0 %v641
      %645 = vmatprep.subr.mxu0 0.0
      %646 = vmatpush1.xpose.msra.mxu0 0.0
      %647 = vmatprep.subr.mxu0 0.0
      %648 = vmatpush1.xpose.msra.mxu0 0.0
      %649 = vmatprep.subr.mxu0 0.0
      %650 = vmatpush1.xpose.msra.mxu0 0.0
      %651 = vmatprep.subr.mxu0 0.0
      %652 = vmatpush1.xpose.msra.mxu0 0.0
      %653 = vmatprep.subr.mxu0 0.0
      %654 = vmatpush1.xpose.msra.mxu0 0.0
      %655 = vmatprep.subr.mxu0 0.0
      %656 = vmatpush1.xpose.msra.mxu0 0.0
      %657 = vmatprep.subr.mxu0 0.0
      %658 = vmatpush1.xpose.msra.mxu0 0.0
      %659 = vmatprep.subr.mxu0 0.0
      %660 = vmatpush1.xpose.msra.mxu0 0.0
      %661 = vmatprep.subr.mxu0 0.0
      %662 = vmatpush1.xpose.msra.mxu0 0.0
      %663 = vmatprep.subr.mxu0 0.0
      %664 = vmatpush1.xpose.msra.mxu0 0.0
      %665 = vmatprep.subr.mxu0 0.0
      %666 = vmatpush1.xpose.msra.mxu0 0.0
      %667 = vmatprep.subr.mxu0 0.0
      %668 = vmatpush1.xpose.msra.mxu0 0.0
      %669 = vmatprep.subr.mxu0 0.0
      %670 = vmatpush1.xpose.msra.mxu0 0.0
      %671 = vmatprep.subr.mxu0 0.0
      %672 = vmatpush1.xpose.msra.mxu0 0.0
      %673 = vmatprep.subr.mxu0 0.0
      %674 = vmatpush1.xpose.msra.mxu0 0.0
      %675 = vmatprep.subr.mxu0 0.0
      %676 = vmatpush1.xpose.msra.mxu0 0.0
      %677 = vmatprep.subr.mxu0 0.0
      %678 = vmatpush1.xpose.msra.mxu0 0.0
      %679 = vmatprep.subr.mxu0 0.0
      %680 = vmatpush1.xpose.msra.mxu0 0.0
      %681 = vmatprep.subr.mxu0 0.0
      %682 = vmatpush1.xpose.msra.mxu0 0.0
      %683 = vmatprep.subr.mxu0 0.0
      %684 = vmatpush1.xpose.msra.mxu0 0.0
      %685 = vmatprep.subr.mxu0 0.0
      %686 = vmatpush1.xpose.msra.mxu0 0.0
      %687 = vmatprep.subr.mxu0 0.0
      %688 = vmatpush1.xpose.msra.mxu0 0.0
      %689 = vmatprep.subr.mxu0 0.0
      %690 = vmatpush1.xpose.msra.mxu0 0.0
      %691 = vmatprep.subr.mxu0 0.0
      %692 = vmatpush1.xpose.msra.mxu0 0.0
      %693 = vmatprep.subr.mxu0 0.0
      %694 = vmatpush1.xpose.msra.mxu0 0.0
      %695 = vmatprep.subr.mxu0 0.0
      %696 = vmatpush1.xpose.msra.mxu0 0.0
      %697 = vmatprep.subr.mxu0 0.0
      %698 = vmatpush1.xpose.msra.mxu0 0.0
      %699 = vmatprep.subr.mxu0 0.0
      %700 = vmatpush1.xpose.msra.mxu0 0.0
      %701 = vmatprep.subr.mxu0 0.0
      %702 = vmatpush1.xpose.msra.mxu0 0.0
      %703 = vmatprep.subr.mxu0 0.0
      %704 = vmatpush1.xpose.msra.mxu0 0.0
      %705 = vmatprep.subr.mxu0 0.0
      %706 = vmatpush1.xpose.msra.mxu0 0.0
      %707 = vmatprep.mubr.f32.mxu0 0.0
      %708 = vmatmul.mubr.f32.gmra.mrb[0].mxu0 %v638
      %v709 = vpop.f32.mrb[0].mxu0
      %v710 = vadd.f32 0.0, %v709
      %v711 = vpop.f32.mrb[0].mxu0
      %712 = vdwg.mxu0
      %v713 = vmul.f32 %v710, 0.17677669
      %v715 = vlaneseq
      %v716 = vshrl.u32 %v715, 7
      %v717 = vsub.s32 0, %v716
      %v718 = vrot.slane %v389, %v717
      %v720 = vadd.f32 %v713, %v718
      %vm721 = vcmask 27648
      %v722 = vsel %vm721, %v720, -inf
      %723 = vmax.xlane.f32.xlu0 %v722
      %v724 = vpop.xlane.xlu0 %723
      %v725 = vsub.f32 %v720, %v724
      %v726 = vmul.f32 %v725, 1.442695
      %v727 = vpow.pop %v726
      %v728 = vsel %vm721, %v727, 0.0
      %729 = vadd.xlane.f32.xlu0 %v728
      %v730 = vpop.xlane.xlu0 %729
      %v731 = vrcp.pop %v730
      %v732 = vmul.f32 %v727, %v731
      %vm733 = vcmask 31744
      %v735 = vsel %vm733, %v732, 0
      %vm737 = vcmask 1043456
      %v739 = vsel %vm737, %v631, 0
      %741 = vmatprep.subr.mxu0 0.0
      %742 = vmatpush1.msra.mxu0 %v739
      %743 = vmatprep.subr.mxu0 0.0
      %744 = vmatpush1.msra.mxu0 0.0
      %745 = vmatprep.subr.mxu0 0.0
      %746 = vmatpush1.msra.mxu0 0.0
      %747 = vmatprep.subr.mxu0 0.0
      %748 = vmatpush1.msra.mxu0 0.0
      %749 = vmatprep.subr.mxu0 0.0
      %750 = vmatpush1.msra.mxu0 0.0
      %751 = vmatprep.subr.mxu0 0.0
      %752 = vmatpush1.msra.mxu0 0.0
      %753 = vmatprep.subr.mxu0 0.0
      %754 = vmatpush1.msra.mxu0 0.0
      %755 = vmatprep.subr.mxu0 0.0
      %756 = vmatpush1.msra.mxu0 0.0
      %757 = vmatprep.subr.mxu0 0.0
      %758 = vmatpush1.msra.mxu0 0.0
      %759 = vmatprep.subr.mxu0 0.0
      %760 = vmatpush1.msra.mxu0 0.0
      %761 = vmatprep.subr.mxu0 0.0
      %762 = vmatpush1.msra.mxu0 0.0
      %763 = vmatprep.subr.mxu0 0.0
      %764 = vmatpush1.msra.mxu0 0.0
      %765 = vmatprep.subr.mxu0 0.0
      %766 = vmatpush1.msra.mxu0 0.0
      %767 = vmatprep.subr.mxu0 0.0
      %768 = vmatpush1.msra.mxu0 0.0
      %769 = vmatprep.subr.mxu0 0.0
      %770 = vmatpush1.msra.mxu0 0.0
      %771 = vmatprep.subr.mxu0 0.0
      %772 = vmatpush1.msra.mxu0 0.0
      %773 = vmatprep.subr.mxu0 0.0
      %774 = vmatpush1.msra.mxu0 0.0
      %775 = vmatprep.subr.mxu0 0.0
      %776 = vmatpush1.msra.mxu0 0.0
      %777 = vmatprep.subr.mxu0 0.0
      %778 = vmatpush1.msra.mxu0 0.0
      %779 = vmatprep.subr.mxu0 0.0
      %780 = vmatpush1.msra.mxu0 0.0
      %781 = vmatprep.subr.mxu0 0.0
      %782 = vmatpush1.msra.mxu0 0.0
      %783 = vmatprep.subr.mxu0 0.0
      %784 = vmatpush1.msra.mxu0 0.0
      %785 = vmatprep.subr.mxu0 0.0
      %786 = vmatpush1.msra.mxu0 0.0
      %787 = vmatprep.subr.mxu0 0.0
      %788 = vmatpush1.msra.mxu0 0.0
      %789 = vmatprep.subr.mxu0 0.0
      %790 = vmatpush1.msra.mxu0 0.0
      %791 = vmatprep.subr.mxu0 0.0
      %792 = vmatpush1.msra.mxu0 0.0
      %793 = vmatprep.subr.mxu0 0.0
      %794 = vmatpush1.msra.mxu0 0.0
      %795 = vmatprep.subr.mxu0 0.0
      %796 = vmatpush1.msra.mxu0 0.0
      %797 = vmatprep.subr.mxu0 0.0
      %798 = vmatpush1.msra.mxu0 0.0
      %799 = vmatprep.subr.mxu0 0.0
      %800 = vmatpush1.msra.mxu0 0.0
      %801 = vmatprep.subr.mxu0 0.0
      %802 = vmatpush1.msra.mxu0 0.0
      %803 = vmatprep.subr.mxu0 0.0
      %804 = vmatpush1.msra.mxu0 0.0
      %805 = vmatprep.mubr.f32.mxu0 0.0
      %806 = vmatmul.mubr.f32.gmra.mrb[0].mxu0 %v735
      %v807 = vpop.f32.mrb[0].mxu0
      %v808 = vadd.f32 0.0, %v807
      %v809 = vpop.f32.mrb[0].mxu0
      %810 = vdwg.mxu0
      %v811 = vld [vmem:[%s5] sm:$0xf]
      %v812 = vld [vmem:[%s5 + $0x4] sm:$0xf]
      %v813 = vld [vmem:[%s5 + $0x8] sm:$0xf]
      %v814 = vld [vmem:[%s5 + $0xc] sm:$0xf]
      %v815 = vpack.c.bf16 %v808, %v808
      %s816 = scalar_lea.vmem %s3, 32
      %v817 = vld [vmem:[%s816] sm:$0xf]
      %v818 = vld [vmem:[%s816 + $0x4] sm:$0xf]
      %v819 = vld [vmem:[%s816 + $0x8] sm:$0xf]
      %v820 = vld [vmem:[%s816 + $0xc] sm:$0xf]
      %v821 = vld [vmem:[%s816 + $0x10] sm:$0xf]
      %v822 = vld [vmem:[%s816 + $0x14] sm:$0xf]
      %v823 = vld [vmem:[%s816 + $0x18] sm:$0xf]
      %v824 = vld [vmem:[%s816 + $0x1c] sm:$0xf]
      %s825 = scalar_lea.vmem %s4, 1
      %v826 = vld [vmem:[%s825] sm:$0x1]
      %v828 = vlaneseq
      %v829 = vshrl.u32 %v828, 7
      %v830 = vsub.s32 0, %v829
      %v831 = vrot.slane %v826, %v830
      %v841 = vunpack.c.l.b16 %v817
      %v842 = vunpack.c.l.b16 %v818
      %v843 = vunpack.c.l.b16 %v819
      %v844 = vunpack.c.l.b16 %v820
      %v845 = vunpack.c.l.b16 %v821
      %v846 = vunpack.c.l.b16 %v822
      %v847 = vunpack.c.l.b16 %v823
      %v848 = vunpack.c.l.b16 %v824
      %v849 = vpack.c.b16 %v842, %v841
      %v850 = vpack.c.b16 %v844, %v843
      %v851 = vpack.c.b16 %v846, %v845
      %v852 = vpack.c.b16 %v848, %v847
      %857 = vmatprep.subr.bf16.mxu0 0
      %858 = vmatpush1.bf16.msra.mxu0 %v849
      %859 = vmatprep.subr.bf16.mxu0 0
      %860 = vmatpush1.bf16.msra.mxu0 %v850
      %861 = vmatprep.subr.bf16.mxu0 0
      %862 = vmatpush1.bf16.msra.mxu0 %v851
      %863 = vmatprep.subr.bf16.mxu0 0
      %864 = vmatpush1.bf16.msra.mxu0 %v852
      %865 = vmatprep.subr.bf16.mxu0 0
      %866 = vmatpush1.bf16.msra.mxu0 0
      %867 = vmatprep.subr.bf16.mxu0 0
      %868 = vmatpush1.bf16.msra.mxu0 0
      %869 = vmatprep.subr.bf16.mxu0 0
      %870 = vmatpush1.bf16.msra.mxu0 0
      %871 = vmatprep.subr.bf16.mxu0 0
      %872 = vmatpush1.bf16.msra.mxu0 0
      %873 = vmatprep.subr.bf16.mxu0 0
      %874 = vmatpush1.bf16.msra.mxu0 0
      %875 = vmatprep.subr.bf16.mxu0 0
      %876 = vmatpush1.bf16.msra.mxu0 0
      %877 = vmatprep.subr.bf16.mxu0 0
      %878 = vmatpush1.bf16.msra.mxu0 0
      %879 = vmatprep.subr.bf16.mxu0 0
      %880 = vmatpush1.bf16.msra.mxu0 0
      %881 = vmatprep.subr.bf16.mxu0 0
      %882 = vmatpush1.bf16.msra.mxu0 0
      %883 = vmatprep.subr.bf16.mxu0 0
      %884 = vmatpush1.bf16.msra.mxu0 0
      %885 = vmatprep.subr.bf16.mxu0 0
      %886 = vmatpush1.bf16.msra.mxu0 0
      %887 = vmatprep.subr.bf16.mxu0 0
      %888 = vmatpush1.bf16.msra.mxu0 0
      %889 = vmatprep.mubr.bf16.mxu0 0
      %890 = vmatmul.mubr.bf16.gmra.mrb[0].mxu0 %v432
      %v891 = vpop.f32.mrb[0].mxu0
      %v892 = vadd.f32 %v831, %v891
      %v893 = vpop.f32.mrb[0].mxu0
      %v894 = vpop.f32.mrb[0].mxu0
      %v895 = vpop.f32.mrb[0].mxu0
      %896 = vdwg.mxu0
      %s897 = scalar_lea.vmem %s3, 96
      %v898 = vld [vmem:[%s897] sm:$0xf]
      %v899 = vld [vmem:[%s897 + $0x4] sm:$0xf]
      %v900 = vld [vmem:[%s897 + $0x8] sm:$0xf]
      %v901 = vld [vmem:[%s897 + $0xc] sm:$0xf]
      %v902 = vld [vmem:[%s897 + $0x10] sm:$0xf]
      %v903 = vld [vmem:[%s897 + $0x14] sm:$0xf]
      %v904 = vld [vmem:[%s897 + $0x18] sm:$0xf]
      %v905 = vld [vmem:[%s897 + $0x1c] sm:$0xf]
      %s906 = scalar_lea.vmem %s4, 3
      %v907 = vld [vmem:[%s906] sm:$0x1]
      %v909 = vlaneseq
      %v910 = vshrl.u32 %v909, 7
      %v911 = vsub.s32 0, %v910
      %v912 = vrot.slane %v907, %v911
      %v922 = vunpack.c.l.b16 %v898
      %v923 = vunpack.c.l.b16 %v899
      %v924 = vunpack.c.l.b16 %v900
      %v925 = vunpack.c.l.b16 %v901
      %v926 = vunpack.c.l.b16 %v902
      %v927 = vunpack.c.l.b16 %v903
      %v928 = vunpack.c.l.b16 %v904
      %v929 = vunpack.c.l.b16 %v905
      %v930 = vpack.c.b16 %v923, %v922
      %v931 = vpack.c.b16 %v925, %v924
      %v932 = vpack.c.b16 %v927, %v926
      %v933 = vpack.c.b16 %v929, %v928
      %938 = vmatprep.subr.bf16.mxu0 0
      %939 = vmatpush1.bf16.msra.mxu0 %v930
      %940 = vmatprep.subr.bf16.mxu0 0
      %941 = vmatpush1.bf16.msra.mxu0 %v931
      %942 = vmatprep.subr.bf16.mxu0 0
      %943 = vmatpush1.bf16.msra.mxu0 %v932
      %944 = vmatprep.subr.bf16.mxu0 0
      %945 = vmatpush1.bf16.msra.mxu0 %v933
      %946 = vmatprep.subr.bf16.mxu0 0
      %947 = vmatpush1.bf16.msra.mxu0 0
      %948 = vmatprep.subr.bf16.mxu0 0
      %949 = vmatpush1.bf16.msra.mxu0 0
      %950 = vmatprep.subr.bf16.mxu0 0
      %951 = vmatpush1.bf16.msra.mxu0 0
      %952 = vmatprep.subr.bf16.mxu0 0
      %953 = vmatpush1.bf16.msra.mxu0 0
      %954 = vmatprep.subr.bf16.mxu0 0
      %955 = vmatpush1.bf16.msra.mxu0 0
      %956 = vmatprep.subr.bf16.mxu0 0
      %957 = vmatpush1.bf16.msra.mxu0 0
      %958 = vmatprep.subr.bf16.mxu0 0
      %959 = vmatpush1.bf16.msra.mxu0 0
      %960 = vmatprep.subr.bf16.mxu0 0
      %961 = vmatpush1.bf16.msra.mxu0 0
      %962 = vmatprep.subr.bf16.mxu0 0
      %963 = vmatpush1.bf16.msra.mxu0 0
      %964 = vmatprep.subr.bf16.mxu0 0
      %965 = vmatpush1.bf16.msra.mxu0 0
      %966 = vmatprep.subr.bf16.mxu0 0
      %967 = vmatpush1.bf16.msra.mxu0 0
      %968 = vmatprep.subr.bf16.mxu0 0
      %969 = vmatpush1.bf16.msra.mxu0 0
      %970 = vmatprep.mubr.bf16.mxu0 0
      %971 = vmatmul.mubr.bf16.gmra.mrb[0].mxu0 %v432
      %v972 = vpop.f32.mrb[0].mxu0
      %v973 = vadd.f32 %v912, %v972
      %v974 = vpop.f32.mrb[0].mxu0
      %v975 = vpop.f32.mrb[0].mxu0
      %v976 = vpop.f32.mrb[0].mxu0
      %977 = vdwg.mxu0
      %s978 = scalar_lea.vmem %s3, 160
      %v979 = vld [vmem:[%s978] sm:$0xf]
      %v980 = vld [vmem:[%s978 + $0x4] sm:$0xf]
      %v981 = vld [vmem:[%s978 + $0x8] sm:$0xf]
      %v982 = vld [vmem:[%s978 + $0xc] sm:$0xf]
      %v983 = vld [vmem:[%s978 + $0x10] sm:$0xf]
      %v984 = vld [vmem:[%s978 + $0x14] sm:$0xf]
      %v985 = vld [vmem:[%s978 + $0x18] sm:$0xf]
      %v986 = vld [vmem:[%s978 + $0x1c] sm:$0xf]
      %s987 = scalar_lea.vmem %s4, 5
      %v988 = vld [vmem:[%s987] sm:$0x1]
      %v990 = vlaneseq
      %v991 = vshrl.u32 %v990, 7
      %v992 = vsub.s32 0, %v991
      %v993 = vrot.slane %v988, %v992
      %v1003 = vunpack.c.l.b16 %v979
      %v1004 = vunpack.c.l.b16 %v980
      %v1005 = vunpack.c.l.b16 %v981
      %v1006 = vunpack.c.l.b16 %v982
      %v1007 = vunpack.c.l.b16 %v983
      %v1008 = vunpack.c.l.b16 %v984
      %v1009 = vunpack.c.l.b16 %v985
      %v1010 = vunpack.c.l.b16 %v986
      %v1011 = vpack.c.b16 %v1004, %v1003
      %v1012 = vpack.c.b16 %v1006, %v1005
      %v1013 = vpack.c.b16 %v1008, %v1007
      %v1014 = vpack.c.b16 %v1010, %v1009
      %1019 = vmatprep.subr.bf16.mxu0 0
      %1020 = vmatpush1.bf16.msra.mxu0 %v1011
      %1021 = vmatprep.subr.bf16.mxu0 0
      %1022 = vmatpush1.bf16.msra.mxu0 %v1012
      %1023 = vmatprep.subr.bf16.mxu0 0
      %1024 = vmatpush1.bf16.msra.mxu0 %v1013
      %1025 = vmatprep.subr.bf16.mxu0 0
      %1026 = vmatpush1.bf16.msra.mxu0 %v1014
      %1027 = vmatprep.subr.bf16.mxu0 0
      %1028 = vmatpush1.bf16.msra.mxu0 0
      %1029 = vmatprep.subr.bf16.mxu0 0
      %1030 = vmatpush1.bf16.msra.mxu0 0
      %1031 = vmatprep.subr.bf16.mxu0 0
      %1032 = vmatpush1.bf16.msra.mxu0 0
      %1033 = vmatprep.subr.bf16.mxu0 0
      %1034 = vmatpush1.bf16.msra.mxu0 0
      %1035 = vmatprep.subr.bf16.mxu0 0
      %1036 = vmatpush1.bf16.msra.mxu0 0
      %1037 = vmatprep.subr.bf16.mxu0 0
      %1038 = vmatpush1.bf16.msra.mxu0 0
      %1039 = vmatprep.subr.bf16.mxu0 0
      %1040 = vmatpush1.bf16.msra.mxu0 0
      %1041 = vmatprep.subr.bf16.mxu0 0
      %1042 = vmatpush1.bf16.msra.mxu0 0
      %1043 = vmatprep.subr.bf16.mxu0 0
      %1044 = vmatpush1.bf16.msra.mxu0 0
      %1045 = vmatprep.subr.bf16.mxu0 0
      %1046 = vmatpush1.bf16.msra.mxu0 0
      %1047 = vmatprep.subr.bf16.mxu0 0
      %1048 = vmatpush1.bf16.msra.mxu0 0
      %1049 = vmatprep.subr.bf16.mxu0 0
      %1050 = vmatpush1.bf16.msra.mxu0 0
      %1051 = vmatprep.mubr.bf16.mxu0 0
      %1052 = vmatmul.mubr.bf16.gmra.mrb[0].mxu0 %v432
      %v1053 = vpop.f32.mrb[0].mxu0
      %v1054 = vadd.f32 %v993, %v1053
      %v1055 = vpop.f32.mrb[0].mxu0
      %v1056 = vpop.f32.mrb[0].mxu0
      %v1057 = vpop.f32.mrb[0].mxu0
      %1058 = vdwg.mxu0
      %v1060 = vsel %vm636, %v892, 0
      %v1063 = vsel %vm636, %v973, 0
      %1065 = vmatprep.subr.mxu0 0.0
      %1066 = vmatpush1.xpose.msra.mxu0 %v1063
      %1067 = vmatprep.subr.mxu0 0.0
      %1068 = vmatpush1.xpose.msra.mxu0 0.0
      %1069 = vmatprep.subr.mxu0 0.0
      %1070 = vmatpush1.xpose.msra.mxu0 0.0
      %1071 = vmatprep.subr.mxu0 0.0
      %1072 = vmatpush1.xpose.msra.mxu0 0.0
      %1073 = vmatprep.subr.mxu0 0.0
      %1074 = vmatpush1.xpose.msra.mxu0 0.0
      %1075 = vmatprep.subr.mxu0 0.0
      %1076 = vmatpush1.xpose.msra.mxu0 0.0
      %1077 = vmatprep.subr.mxu0 0.0
      %1078 = vmatpush1.xpose.msra.mxu0 0.0
      %1079 = vmatprep.subr.mxu0 0.0
      %1080 = vmatpush1.xpose.msra.mxu0 0.0
      %1081 = vmatprep.subr.mxu0 0.0
      %1082 = vmatpush1.xpose.msra.mxu0 0.0
      %1083 = vmatprep.subr.mxu0 0.0
      %1084 = vmatpush1.xpose.msra.mxu0 0.0
      %1085 = vmatprep.subr.mxu0 0.0
      %1086 = vmatpush1.xpose.msra.mxu0 0.0
      %1087 = vmatprep.subr.mxu0 0.0
      %1088 = vmatpush1.xpose.msra.mxu0 0.0
      %1089 = vmatprep.subr.mxu0 0.0
      %1090 = vmatpush1.xpose.msra.mxu0 0.0
      %1091 = vmatprep.subr.mxu0 0.0
      %1092 = vmatpush1.xpose.msra.mxu0 0.0
      %1093 = vmatprep.subr.mxu0 0.0
      %1094 = vmatpush1.xpose.msra.mxu0 0.0
      %1095 = vmatprep.subr.mxu0 0.0
      %1096 = vmatpush1.xpose.msra.mxu0 0.0
      %1097 = vmatprep.subr.mxu0 0.0
      %1098 = vmatpush1.xpose.msra.mxu0 0.0
      %1099 = vmatprep.subr.mxu0 0.0
      %1100 = vmatpush1.xpose.msra.mxu0 0.0
      %1101 = vmatprep.subr.mxu0 0.0
      %1102 = vmatpush1.xpose.msra.mxu0 0.0
      %1103 = vmatprep.subr.mxu0 0.0
      %1104 = vmatpush1.xpose.msra.mxu0 0.0
      %1105 = vmatprep.subr.mxu0 0.0
      %1106 = vmatpush1.xpose.msra.mxu0 0.0
      %1107 = vmatprep.subr.mxu0 0.0
      %1108 = vmatpush1.xpose.msra.mxu0 0.0
      %1109 = vmatprep.subr.mxu0 0.0
      %1110 = vmatpush1.xpose.msra.mxu0 0.0
      %1111 = vmatprep.subr.mxu0 0.0
      %1112 = vmatpush1.xpose.msra.mxu0 0.0
      %1113 = vmatprep.subr.mxu0 0.0
      %1114 = vmatpush1.xpose.msra.mxu0 0.0
      %1115 = vmatprep.subr.mxu0 0.0
      %1116 = vmatpush1.xpose.msra.mxu0 0.0
      %1117 = vmatprep.subr.mxu0 0.0
      %1118 = vmatpush1.xpose.msra.mxu0 0.0
      %1119 = vmatprep.subr.mxu0 0.0
      %1120 = vmatpush1.xpose.msra.mxu0 0.0
      %1121 = vmatprep.subr.mxu0 0.0
      %1122 = vmatpush1.xpose.msra.mxu0 0.0
      %1123 = vmatprep.subr.mxu0 0.0
      %1124 = vmatpush1.xpose.msra.mxu0 0.0
      %1125 = vmatprep.subr.mxu0 0.0
      %1126 = vmatpush1.xpose.msra.mxu0 0.0
      %1127 = vmatprep.subr.mxu0 0.0
      %1128 = vmatpush1.xpose.msra.mxu0 0.0
      %1129 = vmatprep.mubr.f32.mxu0 0.0
      %1130 = vmatmul.mubr.f32.gmra.mrb[0].mxu0 %v1060
      %v1131 = vpop.f32.mrb[0].mxu0
      %v1132 = vadd.f32 0.0, %v1131
      %v1133 = vpop.f32.mrb[0].mxu0
      %1134 = vdwg.mxu0
      %v1135 = vmul.f32 %v1132, 0.17677669
      %v1136 = vadd.f32 %v1135, %v718
      %v1137 = vsel %vm721, %v1136, -inf
      %1138 = vmax.xlane.f32.xlu0 %v1137
      %v1139 = vpop.xlane.xlu0 %1138
      %v1140 = vsub.f32 %v1136, %v1139
      %v1141 = vmul.f32 %v1140, 1.442695
      %v1142 = vpow.pop %v1141
      %v1143 = vsel %vm721, %v1142, 0.0
      %1144 = vadd.xlane.f32.xlu0 %v1143
      %v1145 = vpop.xlane.xlu0 %1144
      %v1146 = vrcp.pop %v1145
      %v1147 = vmul.f32 %v1142, %v1146
      %v1149 = vsel %vm733, %v1147, 0
      %v1152 = vsel %vm737, %v1054, 0
      %1154 = vmatprep.subr.mxu0 0.0
      %1155 = vmatpush1.msra.mxu0 %v1152
      %1156 = vmatprep.subr.mxu0 0.0
      %1157 = vmatpush1.msra.mxu0 0.0
      %1158 = vmatprep.subr.mxu0 0.0
      %1159 = vmatpush1.msra.mxu0 0.0
      %1160 = vmatprep.subr.mxu0 0.0
      %1161 = vmatpush1.msra.mxu0 0.0
      %1162 = vmatprep.subr.mxu0 0.0
      %1163 = vmatpush1.msra.mxu0 0.0
      %1164 = vmatprep.subr.mxu0 0.0
      %1165 = vmatpush1.msra.mxu0 0.0
      %1166 = vmatprep.subr.mxu0 0.0
      %1167 = vmatpush1.msra.mxu0 0.0
      %1168 = vmatprep.subr.mxu0 0.0
      %1169 = vmatpush1.msra.mxu0 0.0
      %1170 = vmatprep.subr.mxu0 0.0
      %1171 = vmatpush1.msra.mxu0 0.0
      %1172 = vmatprep.subr.mxu0 0.0
      %1173 = vmatpush1.msra.mxu0 0.0
      %1174 = vmatprep.subr.mxu0 0.0
      %1175 = vmatpush1.msra.mxu0 0.0
      %1176 = vmatprep.subr.mxu0 0.0
      %1177 = vmatpush1.msra.mxu0 0.0
      %1178 = vmatprep.subr.mxu0 0.0
      %1179 = vmatpush1.msra.mxu0 0.0
      %1180 = vmatprep.subr.mxu0 0.0
      %1181 = vmatpush1.msra.mxu0 0.0
      %1182 = vmatprep.subr.mxu0 0.0
      %1183 = vmatpush1.msra.mxu0 0.0
      %1184 = vmatprep.subr.mxu0 0.0
      %1185 = vmatpush1.msra.mxu0 0.0
      %1186 = vmatprep.subr.mxu0 0.0
      %1187 = vmatpush1.msra.mxu0 0.0
      %1188 = vmatprep.subr.mxu0 0.0
      %1189 = vmatpush1.msra.mxu0 0.0
      %1190 = vmatprep.subr.mxu0 0.0
      %1191 = vmatpush1.msra.mxu0 0.0
      %1192 = vmatprep.subr.mxu0 0.0
      %1193 = vmatpush1.msra.mxu0 0.0
      %1194 = vmatprep.subr.mxu0 0.0
      %1195 = vmatpush1.msra.mxu0 0.0
      %1196 = vmatprep.subr.mxu0 0.0
      %1197 = vmatpush1.msra.mxu0 0.0
      %1198 = vmatprep.subr.mxu0 0.0
      %1199 = vmatpush1.msra.mxu0 0.0
      %1200 = vmatprep.subr.mxu0 0.0
      %1201 = vmatpush1.msra.mxu0 0.0
      %1202 = vmatprep.subr.mxu0 0.0
      %1203 = vmatpush1.msra.mxu0 0.0
      %1204 = vmatprep.subr.mxu0 0.0
      %1205 = vmatpush1.msra.mxu0 0.0
      %1206 = vmatprep.subr.mxu0 0.0
      %1207 = vmatpush1.msra.mxu0 0.0
      %1208 = vmatprep.subr.mxu0 0.0
      %1209 = vmatpush1.msra.mxu0 0.0
      %1210 = vmatprep.subr.mxu0 0.0
      %1211 = vmatpush1.msra.mxu0 0.0
      %1212 = vmatprep.subr.mxu0 0.0
      %1213 = vmatpush1.msra.mxu0 0.0
      %1214 = vmatprep.subr.mxu0 0.0
      %1215 = vmatpush1.msra.mxu0 0.0
      %1216 = vmatprep.subr.mxu0 0.0
      %1217 = vmatpush1.msra.mxu0 0.0
      %1218 = vmatprep.mubr.f32.mxu0 0.0
      %1219 = vmatmul.mubr.f32.gmra.mrb[0].mxu0 %v1149
      %v1220 = vpop.f32.mrb[0].mxu0
      %v1221 = vadd.f32 0.0, %v1220
      %v1222 = vpop.f32.mrb[0].mxu0
      %1223 = vdwg.mxu0
      %s1224 = scalar_lea.vmem %s5, 16
      %v1225 = vld [vmem:[%s1224] sm:$0xf]
      %v1226 = vld [vmem:[%s1224 + $0x4] sm:$0xf]
      %v1227 = vld [vmem:[%s1224 + $0x8] sm:$0xf]
      %v1228 = vld [vmem:[%s1224 + $0xc] sm:$0xf]
      %v1229 = vpack.c.bf16 %v1221, %v1221
      %v1234 = vunpack.c.l.b16 %v1225
      %v1235 = vunpack.c.l.b16 %v1226
      %v1236 = vunpack.c.l.b16 %v1227
      %v1237 = vunpack.c.l.b16 %v1228
      %v1238 = vpack.c.b16 %v1235, %v1234
      %v1239 = vpack.c.b16 %v1237, %v1236
      %v1243 = vsel %vm636, %v1229, 0
      %1245 = vmatprep.subr.bf16.mxu0 0
      %1246 = vmatpush1.bf16.msra.mxu0 %v1238
      %1247 = vmatprep.subr.bf16.mxu0 0
      %1248 = vmatpush1.bf16.msra.mxu0 %v1239
      %1249 = vmatprep.subr.bf16.mxu0 0
      %1250 = vmatpush1.bf16.msra.mxu0 0
      %1251 = vmatprep.subr.bf16.mxu0 0
      %1252 = vmatpush1.bf16.msra.mxu0 0
      %1253 = vmatprep.subr.bf16.mxu0 0
      %1254 = vmatpush1.bf16.msra.mxu0 0
      %1255 = vmatprep.subr.bf16.mxu0 0
      %1256 = vmatpush1.bf16.msra.mxu0 0
      %1257 = vmatprep.subr.bf16.mxu0 0
      %1258 = vmatpush1.bf16.msra.mxu0 0
      %1259 = vmatprep.subr.bf16.mxu0 0
      %1260 = vmatpush1.bf16.msra.mxu0 0
      %1261 = vmatprep.subr.bf16.mxu0 0
      %1262 = vmatpush1.bf16.msra.mxu0 0
      %1263 = vmatprep.subr.bf16.mxu0 0
      %1264 = vmatpush1.bf16.msra.mxu0 0
      %1265 = vmatprep.subr.bf16.mxu0 0
      %1266 = vmatpush1.bf16.msra.mxu0 0
      %1267 = vmatprep.subr.bf16.mxu0 0
      %1268 = vmatpush1.bf16.msra.mxu0 0
      %1269 = vmatprep.subr.bf16.mxu0 0
      %1270 = vmatpush1.bf16.msra.mxu0 0
      %1271 = vmatprep.subr.bf16.mxu0 0
      %1272 = vmatpush1.bf16.msra.mxu0 0
      %1273 = vmatprep.subr.bf16.mxu0 0
      %1274 = vmatpush1.bf16.msra.mxu0 0
      %1275 = vmatprep.subr.bf16.mxu0 0
      %1276 = vmatpush1.bf16.msra.mxu0 0
      %1277 = vmatprep.mubr.bf16.mxu0 0
      %1278 = vmatmul.mubr.bf16.gmra.mrb[0].mxu0 %v1243
      %v1279 = vpop.f32.mrb[0].mxu0
      %v1280 = vadd.f32 0.0, %v1279
      %v1281 = vpop.f32.mrb[0].mxu0
      %v1282 = vpop.f32.mrb[0].mxu0
      %v1283 = vpop.f32.mrb[0].mxu0
      %1284 = vdwg.mxu0
      %v1289 = vunpack.c.l.b16 %v811
      %v1290 = vunpack.c.l.b16 %v812
      %v1291 = vunpack.c.l.b16 %v813
      %v1292 = vunpack.c.l.b16 %v814
      %v1293 = vpack.c.b16 %v1290, %v1289
      %v1294 = vpack.c.b16 %v1292, %v1291
      %v1298 = vsel %vm636, %v815, 0
      %1300 = vmatprep.subr.bf16.mxu0 0
      %1301 = vmatpush1.bf16.msra.mxu0 %v1293
      %1302 = vmatprep.subr.bf16.mxu0 0
      %1303 = vmatpush1.bf16.msra.mxu0 %v1294
      %1304 = vmatprep.subr.bf16.mxu0 0
      %1305 = vmatpush1.bf16.msra.mxu0 0
      %1306 = vmatprep.subr.bf16.mxu0 0
      %1307 = vmatpush1.bf16.msra.mxu0 0
      %1308 = vmatprep.subr.bf16.mxu0 0
      %1309 = vmatpush1.bf16.msra.mxu0 0
      %1310 = vmatprep.subr.bf16.mxu0 0
      %1311 = vmatpush1.bf16.msra.mxu0 0
      %1312 = vmatprep.subr.bf16.mxu0 0
      %1313 = vmatpush1.bf16.msra.mxu0 0
      %1314 = vmatprep.subr.bf16.mxu0 0
      %1315 = vmatpush1.bf16.msra.mxu0 0
      %1316 = vmatprep.subr.bf16.mxu0 0
      %1317 = vmatpush1.bf16.msra.mxu0 0
      %1318 = vmatprep.subr.bf16.mxu0 0
      %1319 = vmatpush1.bf16.msra.mxu0 0
      %1320 = vmatprep.subr.bf16.mxu0 0
      %1321 = vmatpush1.bf16.msra.mxu0 0
      %1322 = vmatprep.subr.bf16.mxu0 0
      %1323 = vmatpush1.bf16.msra.mxu0 0
      %1324 = vmatprep.subr.bf16.mxu0 0
      %1325 = vmatpush1.bf16.msra.mxu0 0
      %1326 = vmatprep.subr.bf16.mxu0 0
      %1327 = vmatpush1.bf16.msra.mxu0 0
      %1328 = vmatprep.subr.bf16.mxu0 0
      %1329 = vmatpush1.bf16.msra.mxu0 0
      %1330 = vmatprep.subr.bf16.mxu0 0
      %1331 = vmatpush1.bf16.msra.mxu0 0
      %1332 = vmatprep.mubr.bf16.mxu0 0
      %1333 = vmatmul.mubr.bf16.gmra.mrb[0].mxu0 %v1298
      %v1334 = vpop.f32.mrb[0].mxu0
      %v1335 = vadd.f32 %v1280, %v1334
      %v1336 = vpop.f32.mrb[0].mxu0
      %v1337 = vpop.f32.mrb[0].mxu0
      %v1338 = vpop.f32.mrb[0].mxu0
      %1339 = vdwg.mxu0
      %v1340 = vlaneseq
      %v1341 = vshrl.u32 %v1340, 7
      %v1342 = vsub.s32 0, %v1341
      %v1343 = vrot.slane %v390, %v1342
      %v1344 = vadd.f32 %v1335, %v1343
      %v1345 = vadd.f32 %v387, %v1344
      %vm1346 = vcmask 519168
      %v1347 = vsel %vm1346, %v1345, 0.0
      %1348 = vadd.xlane.f32.xlu0 %v1347
      %v1349 = vpop.xlane.xlu0 %1348
      %v1350 = vrcp.pop 64.0
      %v1351 = vmul.f32 %v1349, %v1350
      %v1352 = vsub.f32 %v1345, %v1351
      %v1353 = vmul.f32 %v1352, %v1352
      %v1354 = vsel %vm1346, %v1353, 0.0
      %1355 = vadd.xlane.f32.xlu0 %v1354
      %v1356 = vpop.xlane.xlu0 %1355
      %v1357 = vmul.f32 %v1356, %v1350
      %v1358 = vadd.f32 %v1357, 1e-05
      %v1359 = vrsqrt.pop %v1358
      %v1360 = vmul.f32 %v1352, %v1359
      %v1361 = vlaneseq
      %v1362 = vshrl.u32 %v1361, 7
      %v1363 = vsub.s32 1, %v1362
      %v1364 = vrot.slane %v390, %v1363
      %v1365 = vmul.f32 %v1360, %v1364
      %v1366 = vlaneseq
      %v1367 = vshrl.u32 %v1366, 7
      %v1368 = vsub.s32 2, %v1367
      %v1369 = vrot.slane %v390, %v1368
      %v1370 = vadd.f32 %v1365, %v1369
      %v1371 = vld [vmem:[%s7] sm:$0xff]
      %v1372 = vld [vmem:[%s7 + $0x8] sm:$0xff]
      %v1373 = vld [vmem:[%s7 + $0x10] sm:$0xff]
      %v1374 = vld [vmem:[%s7 + $0x18] sm:$0xff]
      %v1375 = vld [vmem:[%s7 + $0x20] sm:$0xff]
      %v1376 = vld [vmem:[%s7 + $0x28] sm:$0xff]
      %v1377 = vld [vmem:[%s7 + $0x30] sm:$0xff]
      %v1378 = vld [vmem:[%s7 + $0x38] sm:$0xff]
      %v1379 = vpack.c.bf16 %v1370, %v1370
      %v1380 = vld [vmem:[%s8] sm:$0x3]
      %v1382 = vlaneseq
      %v1383 = vshrl.u32 %v1382, 7
      %v1384 = vsub.s32 0, %v1383
      %v1385 = vrot.slane %v1380, %v1384
      %v1386 = vlaneseq
      %v1387 = vshrl.u32 %v1386, 7
      %v1388 = vsub.s32 1, %v1387
      %v1389 = vrot.slane %v1380, %v1388
      %v1400 = vunpack.c.l.b16 %v1371
      %v1401 = vunpack.c.h.b16 %v1371
      %v1402 = vunpack.c.l.b16 %v1372
      %v1403 = vunpack.c.h.b16 %v1372
      %v1404 = vunpack.c.l.b16 %v1373
      %v1405 = vunpack.c.h.b16 %v1373
      %v1406 = vunpack.c.l.b16 %v1374
      %v1407 = vunpack.c.h.b16 %v1374
      %v1408 = vunpack.c.l.b16 %v1375
      %v1409 = vunpack.c.h.b16 %v1375
      %v1410 = vunpack.c.l.b16 %v1376
      %v1411 = vunpack.c.h.b16 %v1376
      %v1412 = vunpack.c.l.b16 %v1377
      %v1413 = vunpack.c.h.b16 %v1377
      %v1414 = vunpack.c.l.b16 %v1378
      %v1415 = vunpack.c.h.b16 %v1378
      %v1416 = vpack.c.b16 %v1402, %v1400
      %v1417 = vpack.c.b16 %v1403, %v1401
      %v1418 = vpack.c.b16 %v1406, %v1404
      %v1419 = vpack.c.b16 %v1407, %v1405
      %v1420 = vpack.c.b16 %v1410, %v1408
      %v1421 = vpack.c.b16 %v1411, %v1409
      %v1422 = vpack.c.b16 %v1414, %v1412
      %v1423 = vpack.c.b16 %v1415, %v1413
      %v1433 = vsel %vm430, %v1379, 0
      %1435 = vmatprep.subr.bf16.mxu0 %v1417
      %1436 = vmatpush1.bf16.msra.mxu0 %v1416
      %1437 = vmatprep.subr.bf16.mxu0 %v1419
      %1438 = vmatpush1.bf16.msra.mxu0 %v1418
      %1439 = vmatprep.subr.bf16.mxu0 %v1421
      %1440 = vmatpush1.bf16.msra.mxu0 %v1420
      %1441 = vmatprep.subr.bf16.mxu0 %v1423
      %1442 = vmatpush1.bf16.msra.mxu0 %v1422
      %1443 = vmatprep.subr.bf16.mxu0 0
      %1444 = vmatpush1.bf16.msra.mxu0 0
      %1445 = vmatprep.subr.bf16.mxu0 0
      %1446 = vmatpush1.bf16.msra.mxu0 0
      %1447 = vmatprep.subr.bf16.mxu0 0
      %1448 = vmatpush1.bf16.msra.mxu0 0
      %1449 = vmatprep.subr.bf16.mxu0 0
      %1450 = vmatpush1.bf16.msra.mxu0 0
      %1451 = vmatprep.subr.bf16.mxu0 0
      %1452 = vmatpush1.bf16.msra.mxu0 0
      %1453 = vmatprep.subr.bf16.mxu0 0
      %1454 = vmatpush1.bf16.msra.mxu0 0
      %1455 = vmatprep.subr.bf16.mxu0 0
      %1456 = vmatpush1.bf16.msra.mxu0 0
      %1457 = vmatprep.subr.bf16.mxu0 0
      %1458 = vmatpush1.bf16.msra.mxu0 0
      %1459 = vmatprep.subr.bf16.mxu0 0
      %1460 = vmatpush1.bf16.msra.mxu0 0
      %1461 = vmatprep.subr.bf16.mxu0 0
      %1462 = vmatpush1.bf16.msra.mxu0 0
      %1463 = vmatprep.subr.bf16.mxu0 0
      %1464 = vmatpush1.bf16.msra.mxu0 0
      %1465 = vmatprep.subr.bf16.mxu0 0
      %1466 = vmatpush1.bf16.msra.mxu0 0
      %1467 = vmatprep.mubr.bf16.mxu0 0
      %1468 = vmatmul.mubr.bf16.gmra.mrb[0].mxu0 %v1433
      %v1469 = vpop.f32.mrb[0].mxu0
      %v1470 = vadd.f32 %v1385, %v1469
      %v1471 = vpop.f32.mrb[0].mxu0
      %v1472 = vadd.f32 %v1389, %v1471
      %v1473 = vpop.f32.mrb[0].mxu0
      %v1474 = vpop.f32.mrb[0].mxu0
      %1475 = vdwg.mxu0
      %v1476 = vmul.f32 %v1470, 0.5
      %v1477 = vmul.f32 %v1472, 0.5
      %v1478 = vmul.f32 %v1470, 0.70710677
      %v1479 = vmul.f32 %v1472, 0.70710677
      %v1480 = vand.u32 2147483647, %v1478
      %v1481 = vand.u32 2147483647, %v1479
      %v1482 = vmul.f32 %v1480, 0.3275911
      %v1483 = vmul.f32 %v1481, 0.3275911
      %v1484 = vadd.f32 %v1482, 1.0
      %v1485 = vadd.f32 %v1483, 1.0
      %v1486 = vrcp.pop %v1484
      %v1487 = vmul.f32 1.0, %v1486
      %v1488 = vrcp.pop %v1485
      %v1489 = vmul.f32 1.0, %v1488
      %v1490 = vmul.f32 %v1487, 1.0614054
      %v1491 = vmul.f32 %v1489, 1.0614054
      %v1492 = vadd.f32 %v1490, -1.4531521
      %v1493 = vadd.f32 %v1491, -1.4531521
      %v1494 = vmul.f32 %v1492, %v1487
      %v1495 = vmul.f32 %v1493, %v1489
      %v1496 = vadd.f32 %v1494, 1.4214138
      %v1497 = vadd.f32 %v1495, 1.4214138
      %v1498 = vmul.f32 %v1496, %v1487
      %v1499 = vmul.f32 %v1497, %v1489
      %v1500 = vadd.f32 %v1498, -0.28449672
      %v1501 = vadd.f32 %v1499, -0.28449672
      %v1502 = vmul.f32 %v1500, %v1487
      %v1503 = vmul.f32 %v1501, %v1489
      %v1504 = vadd.f32 %v1502, 0.2548296
      %v1505 = vadd.f32 %v1503, 0.2548296
      %v1506 = vmul.f32 %v1504, %v1487
      %v1507 = vmul.f32 %v1505, %v1489
      %v1508 = vsub.f32 0.0, %v1480
      %v1509 = vsub.f32 0.0, %v1481
      %v1510 = vmul.f32 %v1508, %v1480
      %v1511 = vmul.f32 %v1509, %v1481
      %v1512 = vmul.f32 %v1510, 1.442695
      %v1513 = vpow.pop %v1512
      %v1514 = vmul.f32 %v1511, 1.442695
      %v1515 = vpow.pop %v1514
      %v1516 = vmul.f32 %v1506, %v1513
      %v1517 = vmul.f32 %v1507, %v1515
      %v1518 = vsub.f32 1.0, %v1516
      %v1519 = vsub.f32 1.0, %v1517
      %vm1520 = vcmp.ge.f32.partialorder %v1478, 0.0
      %vm1521 = vcmp.ge.f32.partialorder %v1479, 0.0
      %v1522 = vsub.f32 0.0, %v1518
      %v1523 = vsub.f32 0.0, %v1519
      %v1524 = vsel %vm1520, %v1518, %v1522
      %v1525 = vsel %vm1521, %v1519, %v1523
      %v1526 = vadd.f32 %v1524, 1.0
      %v1527 = vadd.f32 %v1525, 1.0
      %v1528 = vmul.f32 %v1476, %v1526
      %v1529 = vmul.f32 %v1477, %v1527
      %v1530 = vld [vmem:[%s9] sm:$0xf]
      %v1531 = vld [vmem:[%s9 + $0x4] sm:$0xf]
      %v1532 = vld [vmem:[%s9 + $0x8] sm:$0xf]
      %v1533 = vld [vmem:[%s9 + $0xc] sm:$0xf]
      %v1534 = vld [vmem:[%s9 + $0x10] sm:$0xf]
      %v1535 = vld [vmem:[%s9 + $0x14] sm:$0xf]
      %v1536 = vld [vmem:[%s9 + $0x18] sm:$0xf]
      %v1537 = vld [vmem:[%s9 + $0x1c] sm:$0xf]
      %v1538 = vld [vmem:[%s9 + $0x20] sm:$0xf]
      %v1539 = vld [vmem:[%s9 + $0x24] sm:$0xf]
      %v1540 = vld [vmem:[%s9 + $0x28] sm:$0xf]
      %v1541 = vld [vmem:[%s9 + $0x2c] sm:$0xf]
      %v1542 = vld [vmem:[%s9 + $0x30] sm:$0xf]
      %v1543 = vld [vmem:[%s9 + $0x34] sm:$0xf]
      %v1544 = vld [vmem:[%s9 + $0x38] sm:$0xf]
      %v1545 = vld [vmem:[%s9 + $0x3c] sm:$0xf]
      %v1546 = vld [vmem:[%s9 + $0x40] sm:$0xf]
      %v1547 = vld [vmem:[%s9 + $0x44] sm:$0xf]
      %v1548 = vld [vmem:[%s9 + $0x48] sm:$0xf]
      %v1549 = vld [vmem:[%s9 + $0x4c] sm:$0xf]
      %v1550 = vld [vmem:[%s9 + $0x50] sm:$0xf]
      %v1551 = vld [vmem:[%s9 + $0x54] sm:$0xf]
      %v1552 = vld [vmem:[%s9 + $0x58] sm:$0xf]
      %v1553 = vld [vmem:[%s9 + $0x5c] sm:$0xf]
      %v1554 = vld [vmem:[%s9 + $0x60] sm:$0xf]
      %v1555 = vld [vmem:[%s9 + $0x64] sm:$0xf]
      %v1556 = vld [vmem:[%s9 + $0x68] sm:$0xf]
      %v1557 = vld [vmem:[%s9 + $0x6c] sm:$0xf]
      %v1558 = vld [vmem:[%s9 + $0x70] sm:$0xf]
      %v1559 = vld [vmem:[%s9 + $0x74] sm:$0xf]
      %v1560 = vld [vmem:[%s9 + $0x78] sm:$0xf]
      %v1561 = vld [vmem:[%s9 + $0x7c] sm:$0xf]
      %v1562 = vpack.c.bf16 %v1528, %v1528
      %v1563 = vpack.c.bf16 %v1529, %v1529
      %v1564 = vlaneseq
      %v1565 = vshrl.u32 %v1564, 7
      %v1566 = vsub.s32 5, %v1565
      %v1567 = vrot.slane %v390, %v1566
      %v1600 = vunpack.c.l.b16 %v1530
      %v1601 = vunpack.c.l.b16 %v1531
      %v1602 = vunpack.c.l.b16 %v1532
      %v1603 = vunpack.c.l.b16 %v1533
      %v1604 = vunpack.c.l.b16 %v1534
      %v1605 = vunpack.c.l.b16 %v1535
      %v1606 = vunpack.c.l.b16 %v1536
      %v1607 = vunpack.c.l.b16 %v1537
      %v1608 = vunpack.c.l.b16 %v1538
      %v1609 = vunpack.c.l.b16 %v1539
      %v1610 = vunpack.c.l.b16 %v1540
      %v1611 = vunpack.c.l.b16 %v1541
      %v1612 = vunpack.c.l.b16 %v1542
      %v1613 = vunpack.c.l.b16 %v1543
      %v1614 = vunpack.c.l.b16 %v1544
      %v1615 = vunpack.c.l.b16 %v1545
      %v1616 = vunpack.c.l.b16 %v1546
      %v1617 = vunpack.c.l.b16 %v1547
      %v1618 = vunpack.c.l.b16 %v1548
      %v1619 = vunpack.c.l.b16 %v1549
      %v1620 = vunpack.c.l.b16 %v1550
      %v1621 = vunpack.c.l.b16 %v1551
      %v1622 = vunpack.c.l.b16 %v1552
      %v1623 = vunpack.c.l.b16 %v1553
      %v1624 = vunpack.c.l.b16 %v1554
      %v1625 = vunpack.c.l.b16 %v1555
      %v1626 = vunpack.c.l.b16 %v1556
      %v1627 = vunpack.c.l.b16 %v1557
      %v1628 = vunpack.c.l.b16 %v1558
      %v1629 = vunpack.c.l.b16 %v1559
      %v1630 = vunpack.c.l.b16 %v1560
      %v1631 = vunpack.c.l.b16 %v1561
      %v1632 = vpack.c.b16 %v1601, %v1600
      %v1633 = vpack.c.b16 %v1603, %v1602
      %v1634 = vpack.c.b16 %v1605, %v1604
      %v1635 = vpack.c.b16 %v1607, %v1606
      %v1636 = vpack.c.b16 %v1609, %v1608
      %v1637 = vpack.c.b16 %v1611, %v1610
      %v1638 = vpack.c.b16 %v1613, %v1612
      %v1639 = vpack.c.b16 %v1615, %v1614
      %v1640 = vpack.c.b16 %v1617, %v1616
      %v1641 = vpack.c.b16 %v1619, %v1618
      %v1642 = vpack.c.b16 %v1621, %v1620
      %v1643 = vpack.c.b16 %v1623, %v1622
      %v1644 = vpack.c.b16 %v1625, %v1624
      %v1645 = vpack.c.b16 %v1627, %v1626
      %v1646 = vpack.c.b16 %v1629, %v1628
      %v1647 = vpack.c.b16 %v1631, %v1630
      %1664 = vmatprep.subr.bf16.mxu0 0
      %1665 = vmatpush1.bf16.msra.mxu0 %v1632
      %1666 = vmatprep.subr.bf16.mxu0 0
      %1667 = vmatpush1.bf16.msra.mxu0 %v1633
      %1668 = vmatprep.subr.bf16.mxu0 0
      %1669 = vmatpush1.bf16.msra.mxu0 %v1634
      %1670 = vmatprep.subr.bf16.mxu0 0
      %1671 = vmatpush1.bf16.msra.mxu0 %v1635
      %1672 = vmatprep.subr.bf16.mxu0 0
      %1673 = vmatpush1.bf16.msra.mxu0 %v1636
      %1674 = vmatprep.subr.bf16.mxu0 0
      %1675 = vmatpush1.bf16.msra.mxu0 %v1637
      %1676 = vmatprep.subr.bf16.mxu0 0
      %1677 = vmatpush1.bf16.msra.mxu0 %v1638
      %1678 = vmatprep.subr.bf16.mxu0 0
      %1679 = vmatpush1.bf16.msra.mxu0 %v1639
      %1680 = vmatprep.subr.bf16.mxu0 0
      %1681 = vmatpush1.bf16.msra.mxu0 %v1640
      %1682 = vmatprep.subr.bf16.mxu0 0
      %1683 = vmatpush1.bf16.msra.mxu0 %v1641
      %1684 = vmatprep.subr.bf16.mxu0 0
      %1685 = vmatpush1.bf16.msra.mxu0 %v1642
      %1686 = vmatprep.subr.bf16.mxu0 0
      %1687 = vmatpush1.bf16.msra.mxu0 %v1643
      %1688 = vmatprep.subr.bf16.mxu0 0
      %1689 = vmatpush1.bf16.msra.mxu0 %v1644
      %1690 = vmatprep.subr.bf16.mxu0 0
      %1691 = vmatpush1.bf16.msra.mxu0 %v1645
      %1692 = vmatprep.subr.bf16.mxu0 0
      %1693 = vmatpush1.bf16.msra.mxu0 %v1646
      %1694 = vmatprep.subr.bf16.mxu0 0
      %1695 = vmatpush1.bf16.msra.mxu0 %v1647
      %1696 = vmatprep.mubr.bf16.mxu0 %v1563
      %1697 = vmatmul.mubr.bf16.gmra.mrb[0].mxu0 %v1562
      %v1698 = vpop.f32.mrb[0].mxu0
      %v1699 = vadd.f32 %v1567, %v1698
      %v1700 = vpop.f32.mrb[0].mxu0
      %v1701 = vpop.f32.mrb[0].mxu0
      %v1702 = vpop.f32.mrb[0].mxu0
      %1703 = vdwg.mxu0
      %v1704 = vadd.f32 %v1370, %v1699
      %v1705 = vsel %vm1346, %v1704, 0.0
      %1706 = vadd.xlane.f32.xlu0 %v1705
      %v1707 = vpop.xlane.xlu0 %1706
      %v1708 = vmul.f32 %v1707, %v1350
      %v1709 = vsub.f32 %v1704, %v1708
      %v1710 = vmul.f32 %v1709, %v1709
      %v1711 = vsel %vm1346, %v1710, 0.0
      %1712 = vadd.xlane.f32.xlu0 %v1711
      %v1713 = vpop.xlane.xlu0 %1712
      %v1714 = vmul.f32 %v1713, %v1350
      %v1715 = vadd.f32 %v1714, 1e-05
      %v1716 = vrsqrt.pop %v1715
      %v1717 = vmul.f32 %v1709, %v1716
      %v1718 = vlaneseq
      %v1719 = vshrl.u32 %v1718, 7
      %v1720 = vsub.s32 3, %v1719
      %v1721 = vrot.slane %v390, %v1720
      %v1722 = vmul.f32 %v1717, %v1721
      %v1723 = vlaneseq
      %v1724 = vshrl.u32 %v1723, 7
      %v1725 = vsub.s32 4, %v1724
      %v1726 = vrot.slane %v390, %v1725
      %v1727 = vadd.f32 %v1722, %v1726
      %v1728 = vld [vmem:[%s381] sm:$0xf]
      %1730 = vset.pattern.permute.xlu0 0
      %1731 = vperm.xlu0 %1730, %v1728
      %v1732 = vpop.permute.xlu0 %1731
      %v1734 = vmul.f32 %v1727, %v1732
      %1735 = vst.msk [vmem:[%s385] sm:$0xf] %vm1346, %v1734
      %p1736 = scmp.lt.s32.totalorder %s21, 1
      %s1737 = scalar_select %p1736, %s21, 1
      %s1738 = smul.addr %s1737, 4
      %s1739 = scalar_lea.vmem %s10, %s1738
      // Predicated region
      $region61: #{single_dhgcn_forward.5} parent=59 // pred_check
        %p1740 = pneg %p264
      $region62: #{single_dhgcn_forward.5} parent=59 // pred_check_branch
        %1742 = sbr.rel (%p1740) target = $region64
      $region63: #{single_dhgcn_forward.5} parent=59 // pred_region
        _
      $region64: #{single_dhgcn_forward.5} parent=59 // pred_fallthru
        _
    $region60: #{single_dhgcn_forward.5} parent=5 // pred_fallthru
      _
    %p1743 = scmp.le.s32.totalorder 2, %s16
    // Predicated region
    $region65: #{single_dhgcn_forward.5} parent=5 // pred_check
      %p1744 = pneg %p1743
    $region66: #{single_dhgcn_forward.5} parent=5 // pred_check_branch
      %1746 = sbr.rel (%p1744) target = $region68
    $region67: #{single_dhgcn_forward.5} parent=5 // pred_region
      %s1747 = ssub.s32 %s16, 2
      // Predicated region
      $region69: #{single_dhgcn_forward.5} parent=67 // pred_check
        %p1748 = pneg %p270
      $region70: #{single_dhgcn_forward.5} parent=67 // pred_check_branch
        %1750 = sbr.rel (%p1748) target = $region72
      $region71: #{single_dhgcn_forward.5} parent=67 // pred_region
        %p1751 = scmp.lt.s32.totalorder %s22, 1
        %s1752 = scalar_select %p1751, %s22, 1
        %s1753 = smul.addr %s1752, 4
        %s1754 = scalar_lea.vmem %s10, %s1753
      $region72: #{single_dhgcn_forward.5} parent=67 // pred_fallthru
        _
    $region68: #{single_dhgcn_forward.5} parent=5 // pred_fallthru
      _
  $region6: #{single_dhgcn_forward.5} parent=0 // loop_footer
    %s20 = sadd.s32 1, %s16
  $region7: #{single_dhgcn_forward.5} parent=0 // loop_footer_branch
    %15 = sbr.rel target = $region3
  $region8: #{single_dhgcn_forward.5} parent=0 // loop_exit
    _

</llo_original>
